<compile_context>
chip_gen: v7x
topology: tpu7x:2x2x1
jax: 0.10.0
libtpu: 0.0.40
codegen_flags: <defaults>
</compile_context>

<pallas_src>
import functools

import jax
import jax.numpy as jnp
from jax import lax
from jax.experimental import pallas as pl
from jax.experimental.pallas import tpu as pltpu

BN_EPS = 1e-5  # PyTorch BatchNorm2d default


# ---------------------------------------------------------------------------
# Fused kernel: conv (KHxKW, stride/dilation/groups) + folded BN + ReLU
# ---------------------------------------------------------------------------
def _conv_bn_act_kernel(x_ref, w_ref, b_ref, o_ref, *scratch, H, W, Cin, Cout,
                        KH, KW, stride, dilation, pad, Hout, Wout, groups,
                        apply_relu):
    """One batch element, channels-last.  w_ref holds BN-folded weights."""
    w = w_ref[...]                                     # (KH, KW, Cin//groups, Cout)

    if scratch:
        # In-kernel zero padding: pre-zero the VMEM scratch, write the interior.
        xpad_ref = scratch[0]
        xpad_ref[...] = jnp.zeros((H + 2 * pad, W + 2 * pad, Cin), jnp.float32)
        xpad_ref[pad:pad + H, pad:pad + W, :] = x_ref[...]
        xp = xpad_ref[...].astype(w.dtype)             # (H+2p, W+2p, Cin)
    else:
        xp = x_ref[...].astype(w.dtype)                # (H, W, Cin)

    cin_pg = Cin // groups
    cout_pg = Cout // groups

    acc = jnp.zeros((Hout * Wout, Cout), jnp.float32)
    for dy in range(KH):
        for dx in range(KW):
            y0 = dy * dilation
            x0 = dx * dilation
            if stride == 1:
                patch = xp[y0:y0 + Hout, x0:x0 + Wout, :]
            else:
                # Strided tap slice; structurally supported but not exercised by
                # the stride=1 demo configs below.
                patch = lax.slice(
                    xp, (y0, x0, 0),
                    (y0 + (Hout - 1) * stride + 1,
                     x0 + (Wout - 1) * stride + 1, Cin),
                    (stride, stride, 1))
            patch = patch.reshape(Hout * Wout, Cin)
            w_tap = w[dy, dx]                           # (Cin//groups, Cout)
            if groups == 1:
                acc = acc + jnp.dot(patch, w_tap,
                                    preferred_element_type=jnp.float32)
            else:
                parts = [
                    jnp.dot(patch[:, g * cin_pg:(g + 1) * cin_pg],
                            w_tap[:, g * cout_pg:(g + 1) * cout_pg],
                            preferred_element_type=jnp.float32)
                    for g in range(groups)
                ]
                acc = acc + jnp.concatenate(parts, axis=-1)

    acc = acc + b_ref[...]                              # (1, Cout) broadcast, f32
    if apply_relu:
        acc = jnp.maximum(acc, 0.0)
    o_ref[...] = acc.reshape(Hout, Wout, Cout).astype(o_ref.dtype)


# ---------------------------------------------------------------------------
# Wrapper: matches BasicConv.forward (inference)
# ---------------------------------------------------------------------------
def basic_conv_forward(x_nchw, params, *, kernel_size, stride=1, padding=0,
                       dilation=1, groups=1, relu=True, bn=True, bias=False,
                       eps=BN_EPS, compute_dtype=jnp.float32):
    B, Cin, H, W = x_nchw.shape
    KH = KW = int(kernel_size)
    w = params["w"]                                     # (KH, KW, Cin//groups, Cout)
    Cout = w.shape[-1]
    assert Cin % groups == 0 and Cout % groups == 0

    conv_b = params["conv_b"] if bias else jnp.zeros((Cout,), jnp.float32)

    # --- Fold inference BatchNorm into the conv weights/bias (f32). ---
    if bn:
        scale = params["bn_gamma"] / jnp.sqrt(params["bn_var"] + eps)   # (Cout,)
        w_eff = w * scale[None, None, None, :]
        b_eff = (conv_b - params["bn_mean"]) * scale + params["bn_beta"]
    else:
        w_eff = w
        b_eff = conv_b

    # Weights DMA'd at the MXU compute dtype (bf16 halves the weight tile).
    w_eff = w_eff.astype(compute_dtype)
    b_eff = b_eff.astype(jnp.float32).reshape(1, Cout)

    Hout = (H + 2 * padding - dilation * (KH - 1) - 1) // stride + 1
    Wout = (W + 2 * padding - dilation * (KW - 1) - 1) // stride + 1

    x_nhwc = jnp.transpose(x_nchw, (0, 2, 3, 1))        # channels-last for the kernel

    kernel = functools.partial(
        _conv_bn_act_kernel, H=H, W=W, Cin=Cin, Cout=Cout, KH=KH, KW=KW,
        stride=stride, dilation=dilation, pad=padding, Hout=Hout, Wout=Wout,
        groups=groups, apply_relu=relu)

    scratch_shapes = []
    if padding > 0:
        scratch_shapes.append(
            pltpu.VMEM((H + 2 * padding, W + 2 * padding, Cin), jnp.float32))

    out_nhwc = pl.pallas_call(
        kernel,
        out_shape=jax.ShapeDtypeStruct((B, Hout, Wout, Cout), jnp.float32),
        grid=(B,),
        in_specs=[
            pl.BlockSpec((None, H, W, Cin), lambda b: (b, 0, 0, 0)),
            pl.BlockSpec((KH, KW, Cin // groups, Cout), lambda b: (0, 0, 0, 0)),
            pl.BlockSpec((1, Cout), lambda b: (0, 0)),
        ],
        out_specs=pl.BlockSpec((None, Hout, Wout, Cout), lambda b: (b, 0, 0, 0)),
        scratch_shapes=scratch_shapes,
        compiler_params=pltpu.CompilerParams(
            dimension_semantics=("parallel",)),        # shards batch over v7x's 2 TCs
    )(x_nhwc, w_eff, b_eff)

    return jnp.transpose(out_nhwc, (0, 3, 1, 2))        # back to NCHW


# ---------------------------------------------------------------------------
# Pure-JAX reference (correctness check only)
# ---------------------------------------------------------------------------
def reference_forward(x_nchw, params, *, kernel_size, stride=1, padding=0,
                      dilation=1, groups=1, relu=True, bn=True, bias=False,
                      eps=BN_EPS):
    x = jnp.transpose(x_nchw, (0, 2, 3, 1))
    out = lax.conv_general_dilated(
        x, params["w"], window_strides=(stride, stride),
        padding=[(padding, padding), (padding, padding)],
        rhs_dilation=(dilation, dilation),
        dimension_numbers=("NHWC", "HWIO", "NHWC"),
        feature_group_count=groups)
    if bias:
        out = out + params["conv_b"][None, None, None, :]
    if bn:
        scale = params["bn_gamma"] / jnp.sqrt(params["bn_var"] + eps)
        out = (out - params["bn_mean"]) * scale + params["bn_beta"]
    if relu:
        out = jnp.maximum(out, 0.0)
    return jnp.transpose(out, (0, 3, 1, 2))


# ---------------------------------------------------------------------------
# Deterministic synthetic parameters (weights stored HWIO; PyTorch OIHW weights
# would be converted via w.transpose(2, 3, 1, 0)).
# ---------------------------------------------------------------------------
def init_params(key, cin, cout, kernel_size, groups=1):
    k1, k2, k3, k4, k5, k6 = jax.random.split(key, 6)
    return dict(
        w=0.1 * jax.random.normal(
            k1, (kernel_size, kernel_size, cin // groups, cout), jnp.float32),
        conv_b=0.1 * jax.random.normal(k2, (cout,), jnp.float32),
        bn_gamma=1.0 + 0.1 * jax.random.normal(k3, (cout,), jnp.float32),
        bn_beta=0.1 * jax.random.normal(k4, (cout,), jnp.float32),
        bn_mean=0.1 * jax.random.normal(k5, (cout,), jnp.float32),
        bn_var=0.5 + jax.random.uniform(k6, (cout,), jnp.float32),
    )


if __name__ == "__main__":
    key = jax.random.PRNGKey(0)
    kx, kp1, kp2 = jax.random.split(key, 3)

    B, Cin, H, W = 2, 16, 16, 16
    x = jax.random.normal(kx, (B, Cin, H, W), dtype=jnp.float32)

    # Config A: BasicConv(16, 64, kernel_size=3, padding=1)  -> conv + BN + ReLU
    Cout_a = 64
    pa = init_params(kp1, Cin, Cout_a, kernel_size=3)
    out_a = jax.block_until_ready(
        basic_conv_forward(x, pa, kernel_size=3, padding=1, relu=True, bn=True))
    assert out_a.shape == (B, Cout_a, H, W), out_a.shape
    ref_a = jax.block_until_ready(
        reference_forward(x, pa, kernel_size=3, padding=1, relu=True, bn=True))
    err_a = float(jnp.max(jnp.abs(out_a - ref_a)))
    assert jnp.allclose(out_a, ref_a, rtol=2e-3, atol=2e-3), f"A max err {err_a}"

    # Config A with bf16 MXU operands (f32 accumulation) — perf path; looser tol
    # because the operands themselves are bf16-rounded.
    out_a16 = jax.block_until_ready(
        basic_conv_forward(x, pa, kernel_size=3, padding=1, relu=True, bn=True,
                           compute_dtype=jnp.bfloat16))
    err_a16 = float(jnp.max(jnp.abs(out_a16 - ref_a)))
    assert jnp.allclose(out_a16, ref_a, rtol=5e-2, atol=5e-2), f"A bf16 err {err_a16}"

    # Config B: BasicConv(16, 32, kernel_size=1, relu=False)  (pointwise, no pad)
    Cout_b = 32
    pb = init_params(kp2, Cin, Cout_b, kernel_size=1)
    out_b = jax.block_until_ready(
        basic_conv_forward(x, pb, kernel_size=1, padding=0, relu=False, bn=True))
    assert out_b.shape == (B, Cout_b, H, W), out_b.shape
    ref_b = jax.block_until_ready(
        reference_forward(x, pb, kernel_size=1, padding=0, relu=False, bn=True))
    err_b = float(jnp.max(jnp.abs(out_b - ref_b)))
    assert jnp.allclose(out_b, ref_b, rtol=2e-3, atol=2e-3), f"B max err {err_b}"

    print("KERNEL_OK")
</pallas_src>

<mosaic_0001>
module attributes {stable_mosaic.version = 11 : i64} {
  func.func @_conv_bn_act_kernel(%arg0: i32, %arg1: memref<1x16x16x16xf32, #tpu.memory_space<vmem>>, %arg2: memref<3x3x16x64xf32, #tpu.memory_space<vmem>>, %arg3: memref<1x64xf32, #tpu.memory_space<vmem>>, %arg4: memref<1x16x16x64xf32, #tpu.memory_space<vmem>>, %arg5: memref<18x18x16xf32, #tpu.memory_space<vmem>>) attributes {dimension_semantics = [#tpu.dimension_semantics<parallel>], iteration_bounds = array<i64: 2>, scalar_prefetch = 0 : i64, scratch_operands = 1 : i64, tpu.core_type = #tpu.core_type<tc>, window_params = [{transform_indices = @transform_0, window_bounds = array<i64: 1, 16, 16, 16>}, {pipeline_mode = #tpu.pipeline_mode<synchronous>, transform_indices = @transform_1, window_bounds = array<i64: 3, 3, 16, 64>}, {pipeline_mode = #tpu.pipeline_mode<synchronous>, transform_indices = @transform_2, window_bounds = array<i64: 1, 64>}, {transform_indices = @transform_3, window_bounds = array<i64: 1, 16, 16, 64>}]} {
    %c0 = arith.constant 0 : index
    %c0_0 = arith.constant 0 : index
    %c0_1 = arith.constant 0 : index
    %c0_2 = arith.constant 0 : index
    %0 = vector.load %arg2[%c0, %c0_0, %c0_1, %c0_2] : memref<3x3x16x64xf32, #tpu.memory_space<vmem>>, vector<3x3x16x64xf32>
    %cst = arith.constant 0.000000e+00 : f32
    %1 = vector.broadcast %cst : f32 to vector<18x18x16xf32>
    %c0_3 = arith.constant 0 : index
    %c0_4 = arith.constant 0 : index
    %c0_5 = arith.constant 0 : index
    %2 = vector.load %arg5[%c0_3, %c0_4, %c0_5] : memref<18x18x16xf32, #tpu.memory_space<vmem>>, vector<18x18x16xf32>
    tpu.vector_store %arg5[%c0_3, %c0_4, %c0_5], %1 {strides = array<i32>} : memref<18x18x16xf32, #tpu.memory_space<vmem>>, vector<18x18x16xf32>,
    %c0_6 = arith.constant 0 : index
    %c0_7 = arith.constant 0 : index
    %c0_8 = arith.constant 0 : index
    %c0_9 = arith.constant 0 : index
    %3 = vector.load %arg1[%c0_6, %c0_7, %c0_8, %c0_9] : memref<1x16x16x16xf32, #tpu.memory_space<vmem>>, vector<1x16x16x16xf32>
    %4 = vector.shape_cast %3 : vector<1x16x16x16xf32> to vector<16x16x16xf32>
    %c1 = arith.constant 1 : index
    %c1_10 = arith.constant 1 : index
    %c0_11 = arith.constant 0 : index
    %5 = vector.load %arg5[%c1, %c1_10, %c0_11] : memref<18x18x16xf32, #tpu.memory_space<vmem>>, vector<16x16x16xf32>
    tpu.vector_store %arg5[%c1, %c1_10, %c0_11], %4 {strides = array<i32>} : memref<18x18x16xf32, #tpu.memory_space<vmem>>, vector<16x16x16xf32>,
    %c0_12 = arith.constant 0 : index
    %c0_13 = arith.constant 0 : index
    %c0_14 = arith.constant 0 : index
    %6 = vector.load %arg5[%c0_12, %c0_13, %c0_14] : memref<18x18x16xf32, #tpu.memory_space<vmem>>, vector<18x18x16xf32>
    %cst_15 = arith.constant 0.000000e+00 : f32
    %7 = vector.broadcast %cst_15 : f32 to vector<256x64xf32>
    %8 = vector.extract_strided_slice %6 {offsets = [0, 0, 0], sizes = [16, 16, 16], strides = [1, 1, 1]} : vector<18x18x16xf32> to vector<16x16x16xf32>
    %9 = vector.shape_cast %8 : vector<16x16x16xf32> to vector<256x16xf32>
    %10 = vector.extract_strided_slice %0 {offsets = [0, 0, 0, 0], sizes = [1, 1, 16, 64], strides = [1, 1, 1, 1]} : vector<3x3x16x64xf32> to vector<1x1x16x64xf32>
    %11 = vector.shape_cast %10 : vector<1x1x16x64xf32> to vector<16x64xf32>
    %cst_16 = arith.constant dense<0.000000e+00> : vector<256x64xf32>
    %12 = tpu.matmul %9, %11, %cst_16 {dimension_numbers = #tpu.dot_dimension_numbers<[1], [0], [0], [1], [0, 0, 1, 1], [], []>} : vector<256x16xf32>, vector<16x64xf32>, vector<256x64xf32> -> vector<256x64xf32>
    %13 = arith.addf %7, %12 : vector<256x64xf32>
    %14 = vector.extract_strided_slice %6 {offsets = [0, 1, 0], sizes = [16, 16, 16], strides = [1, 1, 1]} : vector<18x18x16xf32> to vector<16x16x16xf32>
    %15 = vector.shape_cast %14 : vector<16x16x16xf32> to vector<256x16xf32>
    %16 = vector.extract_strided_slice %0 {offsets = [0, 1, 0, 0], sizes = [1, 1, 16, 64], strides = [1, 1, 1, 1]} : vector<3x3x16x64xf32> to vector<1x1x16x64xf32>
    %17 = vector.shape_cast %16 : vector<1x1x16x64xf32> to vector<16x64xf32>
    %cst_17 = arith.constant dense<0.000000e+00> : vector<256x64xf32>
    %18 = tpu.matmul %15, %17, %cst_17 {dimension_numbers = #tpu.dot_dimension_numbers<[1], [0], [0], [1], [0, 0, 1, 1], [], []>} : vector<256x16xf32>, vector<16x64xf32>, vector<256x64xf32> -> vector<256x64xf32>
    %19 = arith.addf %13, %18 : vector<256x64xf32>
    %20 = vector.extract_strided_slice %6 {offsets = [0, 2, 0], sizes = [16, 16, 16], strides = [1, 1, 1]} : vector<18x18x16xf32> to vector<16x16x16xf32>
    %21 = vector.shape_cast %20 : vector<16x16x16xf32> to vector<256x16xf32>
    %22 = vector.extract_strided_slice %0 {offsets = [0, 2, 0, 0], sizes = [1, 1, 16, 64], strides = [1, 1, 1, 1]} : vector<3x3x16x64xf32> to vector<1x1x16x64xf32>
    %23 = vector.shape_cast %22 : vector<1x1x16x64xf32> to vector<16x64xf32>
    %cst_18 = arith.constant dense<0.000000e+00> : vector<256x64xf32>
    %24 = tpu.matmul %21, %23, %cst_18 {dimension_numbers = #tpu.dot_dimension_numbers<[1], [0], [0], [1], [0, 0, 1, 1], [], []>} : vector<256x16xf32>, vector<16x64xf32>, vector<256x64xf32> -> vector<256x64xf32>
    %25 = arith.addf %19, %24 : vector<256x64xf32>
    %26 = vector.extract_strided_slice %6 {offsets = [1, 0, 0], sizes = [16, 16, 16], strides = [1, 1, 1]} : vector<18x18x16xf32> to vector<16x16x16xf32>
    %27 = vector.shape_cast %26 : vector<16x16x16xf32> to vector<256x16xf32>
    %28 = vector.extract_strided_slice %0 {offsets = [1, 0, 0, 0], sizes = [1, 1, 16, 64], strides = [1, 1, 1, 1]} : vector<3x3x16x64xf32> to vector<1x1x16x64xf32>
    %29 = vector.shape_cast %28 : vector<1x1x16x64xf32> to vector<16x64xf32>
    %cst_19 = arith.constant dense<0.000000e+00> : vector<256x64xf32>
    %30 = tpu.matmul %27, %29, %cst_19 {dimension_numbers = #tpu.dot_dimension_numbers<[1], [0], [0], [1], [0, 0, 1, 1], [], []>} : vector<256x16xf32>, vector<16x64xf32>, vector<256x64xf32> -> vector<256x64xf32>
    %31 = arith.addf %25, %30 : vector<256x64xf32>
    %32 = vector.extract_strided_slice %6 {offsets = [1, 1, 0], sizes = [16, 16, 16], strides = [1, 1, 1]} : vector<18x18x16xf32> to vector<16x16x16xf32>
    %33 = vector.shape_cast %32 : vector<16x16x16xf32> to vector<256x16xf32>
    %34 = vector.extract_strided_slice %0 {offsets = [1, 1, 0, 0], sizes = [1, 1, 16, 64], strides = [1, 1, 1, 1]} : vector<3x3x16x64xf32> to vector<1x1x16x64xf32>
    %35 = vector.shape_cast %34 : vector<1x1x16x64xf32> to vector<16x64xf32>
    %cst_20 = arith.constant dense<0.000000e+00> : vector<256x64xf32>
    %36 = tpu.matmul %33, %35, %cst_20 {dimension_numbers = #tpu.dot_dimension_numbers<[1], [0], [0], [1], [0, 0, 1, 1], [], []>} : vector<256x16xf32>, vector<16x64xf32>, vector<256x64xf32> -> vector<256x64xf32>
    %37 = arith.addf %31, %36 : vector<256x64xf32>
    %38 = vector.extract_strided_slice %6 {offsets = [1, 2, 0], sizes = [16, 16, 16], strides = [1, 1, 1]} : vector<18x18x16xf32> to vector<16x16x16xf32>
    %39 = vector.shape_cast %38 : vector<16x16x16xf32> to vector<256x16xf32>
    %40 = vector.extract_strided_slice %0 {offsets = [1, 2, 0, 0], sizes = [1, 1, 16, 64], strides = [1, 1, 1, 1]} : vector<3x3x16x64xf32> to vector<1x1x16x64xf32>
    %41 = vector.shape_cast %40 : vector<1x1x16x64xf32> to vector<16x64xf32>
    %cst_21 = arith.constant dense<0.000000e+00> : vector<256x64xf32>
    %42 = tpu.matmul %39, %41, %cst_21 {dimension_numbers = #tpu.dot_dimension_numbers<[1], [0], [0], [1], [0, 0, 1, 1], [], []>} : vector<256x16xf32>, vector<16x64xf32>, vector<256x64xf32> -> vector<256x64xf32>
    %43 = arith.addf %37, %42 : vector<256x64xf32>
    %44 = vector.extract_strided_slice %6 {offsets = [2, 0, 0], sizes = [16, 16, 16], strides = [1, 1, 1]} : vector<18x18x16xf32> to vector<16x16x16xf32>
    %45 = vector.shape_cast %44 : vector<16x16x16xf32> to vector<256x16xf32>
    %46 = vector.extract_strided_slice %0 {offsets = [2, 0, 0, 0], sizes = [1, 1, 16, 64], strides = [1, 1, 1, 1]} : vector<3x3x16x64xf32> to vector<1x1x16x64xf32>
    %47 = vector.shape_cast %46 : vector<1x1x16x64xf32> to vector<16x64xf32>
    %cst_22 = arith.constant dense<0.000000e+00> : vector<256x64xf32>
    %48 = tpu.matmul %45, %47, %cst_22 {dimension_numbers = #tpu.dot_dimension_numbers<[1], [0], [0], [1], [0, 0, 1, 1], [], []>} : vector<256x16xf32>, vector<16x64xf32>, vector<256x64xf32> -> vector<256x64xf32>
    %49 = arith.addf %43, %48 : vector<256x64xf32>
    %50 = vector.extract_strided_slice %6 {offsets = [2, 1, 0], sizes = [16, 16, 16], strides = [1, 1, 1]} : vector<18x18x16xf32> to vector<16x16x16xf32>
    %51 = vector.shape_cast %50 : vector<16x16x16xf32> to vector<256x16xf32>
    %52 = vector.extract_strided_slice %0 {offsets = [2, 1, 0, 0], sizes = [1, 1, 16, 64], strides = [1, 1, 1, 1]} : vector<3x3x16x64xf32> to vector<1x1x16x64xf32>
    %53 = vector.shape_cast %52 : vector<1x1x16x64xf32> to vector<16x64xf32>
    %cst_23 = arith.constant dense<0.000000e+00> : vector<256x64xf32>
    %54 = tpu.matmul %51, %53, %cst_23 {dimension_numbers = #tpu.dot_dimension_numbers<[1], [0], [0], [1], [0, 0, 1, 1], [], []>} : vector<256x16xf32>, vector<16x64xf32>, vector<256x64xf32> -> vector<256x64xf32>
    %55 = arith.addf %49, %54 : vector<256x64xf32>
    %56 = vector.extract_strided_slice %6 {offsets = [2, 2, 0], sizes = [16, 16, 16], strides = [1, 1, 1]} : vector<18x18x16xf32> to vector<16x16x16xf32>
    %57 = vector.shape_cast %56 : vector<16x16x16xf32> to vector<256x16xf32>
    %58 = vector.extract_strided_slice %0 {offsets = [2, 2, 0, 0], sizes = [1, 1, 16, 64], strides = [1, 1, 1, 1]} : vector<3x3x16x64xf32> to vector<1x1x16x64xf32>
    %59 = vector.shape_cast %58 : vector<1x1x16x64xf32> to vector<16x64xf32>
    %cst_24 = arith.constant dense<0.000000e+00> : vector<256x64xf32>
    %60 = tpu.matmul %57, %59, %cst_24 {dimension_numbers = #tpu.dot_dimension_numbers<[1], [0], [0], [1], [0, 0, 1, 1], [], []>} : vector<256x16xf32>, vector<16x64xf32>, vector<256x64xf32> -> vector<256x64xf32>
    %61 = arith.addf %55, %60 : vector<256x64xf32>
    %c0_25 = arith.constant 0 : index
    %c0_26 = arith.constant 0 : index
    %62 = vector.load %arg3[%c0_25, %c0_26] : memref<1x64xf32, #tpu.memory_space<vmem>>, vector<1x64xf32>
    %63 = vector.broadcast %62 : vector<1x64xf32> to vector<256x64xf32>
    %64 = arith.addf %61, %63 : vector<256x64xf32>
    %cst_27 = arith.constant 0.000000e+00 : f32
    %65 = vector.broadcast %cst_27 : f32 to vector<256x64xf32>
    %66 = arith.maximumf %64, %65 : vector<256x64xf32>
    %67 = vector.shape_cast %66 : vector<256x64xf32> to vector<16x16x64xf32>
    %c0_28 = arith.constant 0 : index
    %c0_29 = arith.constant 0 : index
    %c0_30 = arith.constant 0 : index
    %c0_31 = arith.constant 0 : index
    %68 = vector.load %arg4[%c0_28, %c0_29, %c0_30, %c0_31] : memref<1x16x16x64xf32, #tpu.memory_space<vmem>>, vector<1x16x16x64xf32>
    %69 = vector.shape_cast %68 : vector<1x16x16x64xf32> to vector<16x16x64xf32>
    %70 = vector.shape_cast %67 : vector<16x16x64xf32> to vector<1x16x16x64xf32>
    tpu.vector_store %arg4[%c0_28, %c0_29, %c0_30, %c0_31], %70 {strides = array<i32>} : memref<1x16x16x64xf32, #tpu.memory_space<vmem>>, vector<1x16x16x64xf32>,
    return
  }
  func.func @transform_0(%arg0: i32) -> (i32, i32, i32, i32) {
    %c0_i32 = arith.constant 0 : i32
    %c0_i32_0 = arith.constant 0 : i32
    %c0_i32_1 = arith.constant 0 : i32
    %c0_i32_2 = arith.constant 0 : i32
    return %arg0, %c0_i32, %c0_i32_0, %c0_i32_1 : i32, i32, i32, i32
  }
  func.func @transform_1(%arg0: i32) -> (i32, i32, i32, i32) {
    %c0_i32 = arith.constant 0 : i32
    %c0_i32_0 = arith.constant 0 : i32
    %c0_i32_1 = arith.constant 0 : i32
    %c0_i32_2 = arith.constant 0 : i32
    %c0_i32_3 = arith.constant 0 : i32
    return %c0_i32, %c0_i32_0, %c0_i32_1, %c0_i32_2 : i32, i32, i32, i32
  }
  func.func @transform_2(%arg0: i32) -> (i32, i32) {
    %c0_i32 = arith.constant 0 : i32
    %c0_i32_0 = arith.constant 0 : i32
    %c0_i32_1 = arith.constant 0 : i32
    return %c0_i32, %c0_i32_0 : i32, i32
  }
  func.func @transform_3(%arg0: i32) -> (i32, i32, i32, i32) {
    %c0_i32 = arith.constant 0 : i32
    %c0_i32_0 = arith.constant 0 : i32
    %c0_i32_1 = arith.constant 0 : i32
    %c0_i32_2 = arith.constant 0 : i32
    return %arg0, %c0_i32, %c0_i32_0, %c0_i32_1 : i32, i32, i32, i32
  }
}

</mosaic_0001>

<llo_original>
// kernel: tpu_custom_call.1
$region0: #{tpu_custom_call.1}
  #allocation0 [shape = 'u32[]', space=smem, size = 0x4, offset = 0x4, fixed_abs, tag = 'smem constant byte address 0x4 - core index']
  #allocation1 [shape = 'u32[144,128]{1,0:T(1,128)}', space=vmem, size = 0x12000, scoped, tag = 'internal scratch']
  #allocation2 [shape = 'f32[18,18,16]{2,1,0:T(8,128)}', space=vmem, size = 0x36000, scoped, tag = 'scratch operand']
  %s0 = inlined_call_operand.hbm [shape: f32[2,16,16,16], index: 0, kind: input, shape index: {}]
  %s1 = inlined_call_operand.hbm [shape: f32[3,3,16,64], index: 1, kind: input, shape index: {}]
  %s2 = inlined_call_operand.vmem [shape: f32[1,64], index: 2, kind: input, shape index: {}]
  %s3 = inlined_call_operand.hbm [shape: f32[2,16,16,64], index: 3, kind: output, shape index: {}]
  %s4 = sld [smem:[#allocation0]]
  $region53: #{tpu_custom_call.1} parent=0
    _
  %s6 = ssub.s32 1, %s4
  %s7 = scalar_select 0, %s6, %s4
  $region1: #{tpu_custom_call.1} parent=0
    #allocation3 [shape = 'u8[262144]{0}', space=vmem, size = 0x40000, scoped, tag = 'input window, operand 0']
    #allocation4 [shape = 's32[2]{0}', space=sflag, size = 0x8, scoped, tag = 'scoped memory for tpu_custom_call.1']
    #allocation5 [shape = 's32[2]{0}', space=sflag, size = 0x8, scoped, tag = 'scoped memory for tpu_custom_call.1']
    #allocation6 [shape = 'u8[73728]{0}', space=vmem, size = 0x12000, scoped, tag = 'input window, operand 1, single buffered']
    #allocation7 [shape = 's32[1]{0}', space=sflag, size = 0x4, scoped, tag = 'scoped memory for tpu_custom_call.1']
    #allocation8 [shape = 'u8[262144]{0}', space=vmem, size = 0x40000, scoped, tag = 'output window, operand 0']
    %8 = vsyncpa [#allocation4], 0
    %s9 = scalar_lea.sflag [#allocation4], 1
    %10 = vsyncpa %s9, 0
    %11 = vsyncpa [#allocation7], 0
    %12 = vsyncpa [#allocation5], 0
    %s13 = scalar_lea.sflag [#allocation5], 1
    %14 = vsyncpa %s13, 0
    loop: start=0, step=1, limit=4
    $region2: #{tpu_custom_call.1} parent=1 // loop_pre_header
      _
    $region3: #{tpu_custom_call.1} parent=1 // loop_header
      %s16 = sphi 0, %s20
      %p17 = scmp.ge.s32.totalorder %s16, 4
      %s26 = sphi 0, %s28
      %s29 = sphi 0, %s26
      %s30 = sphi 0, %s29
      %s46 = sphi 0, %s30
      %s50 = sphi 0, %s50
      %s52 = sphi 0, %s50
      %s53 = sphi 0, %s52
      %s67 = sphi 0, %s53
      %s71 = sphi 0, %s71
      %s73 = sphi 0, %s71
      %s74 = sphi 0, %s73
      %s88 = sphi 0, %s74
      %s94 = sphi 0, %s96
      %s97 = sphi 0, %s94
      %s98 = sphi 0, %s97
      %s114 = sphi 0, %s98
    $region4: #{tpu_custom_call.1} parent=1 // loop_header_branch
      %19 = sbr.rel (%p17) target = $region8
    $region5: #{tpu_custom_call.1} parent=1 // loop_body
      %s21 = ssub.s32 %s16, 1
      %s22 = ssub.s32 %s16, 2
      %s23 = sadd.s32 %s16, 1
      %s24 = ssub.s32 %s16, %s23
      %p25 = scmp.eq.s32.totalorder %s24, 0
      %s27 = sadd.s32 %s26, 1
      %s28 = scalar_select %p25, %s26, %s27
      %p31 = pneg %p25
      %p32 = scmp.eq.s32.totalorder %s16, 1
      %p33 = por %p31, %p32
      %p34 = scmp.ne.s32.totalorder %s26, %s29
      %p35 = scmp.eq.s32.totalorder %s16, 0
      %p36 = por %p34, %p35
      %p37 = scmp.ne.s32.totalorder %s26, %s29
      %p38 = scmp.eq.s32.totalorder %s21, 1
      %p39 = por %p37, %p38
      %p40 = scmp.ne.s32.totalorder %s29, %s30
      %p41 = scmp.eq.s32.totalorder %s21, 0
      %p42 = por %p40, %p41
      %p43 = scmp.ne.s32.totalorder %s29, %s30
      %p44 = scmp.eq.s32.totalorder %s22, 1
      %p45 = por %p43, %p44
      %p47 = scmp.ne.s32.totalorder %s30, %s46
      %p48 = scmp.eq.s32.totalorder %s22, 0
      %p49 = por %p47, %p48
      %s51 = sadd.s32 %s50, 1
      %p54 = scmp.eq.s32.totalorder %s16, 1
      %p55 = scmp.ne.s32.totalorder %s50, %s52
      %p56 = scmp.eq.s32.totalorder %s16, 0
      %p57 = por %p55, %p56
      %p58 = scmp.ne.s32.totalorder %s50, %s52
      %p59 = scmp.eq.s32.totalorder %s21, 1
      %p60 = por %p58, %p59
      %p61 = scmp.ne.s32.totalorder %s52, %s53
      %p62 = scmp.eq.s32.totalorder %s21, 0
      %p63 = por %p61, %p62
      %p64 = scmp.ne.s32.totalorder %s52, %s53
      %p65 = scmp.eq.s32.totalorder %s22, 1
      %p66 = por %p64, %p65
      %p68 = scmp.ne.s32.totalorder %s53, %s67
      %p69 = scmp.eq.s32.totalorder %s22, 0
      %p70 = por %p68, %p69
      %s72 = sadd.s32 %s71, 1
      %p75 = scmp.eq.s32.totalorder %s16, 1
      %p76 = scmp.ne.s32.totalorder %s71, %s73
      %p77 = scmp.eq.s32.totalorder %s16, 0
      %p78 = por %p76, %p77
      %p79 = scmp.ne.s32.totalorder %s71, %s73
      %p80 = scmp.eq.s32.totalorder %s21, 1
      %p81 = por %p79, %p80
      %p82 = scmp.ne.s32.totalorder %s73, %s74
      %p83 = scmp.eq.s32.totalorder %s21, 0
      %p84 = por %p82, %p83
      %p85 = scmp.ne.s32.totalorder %s73, %s74
      %p86 = scmp.eq.s32.totalorder %s22, 1
      %p87 = por %p85, %p86
      %p89 = scmp.ne.s32.totalorder %s74, %s88
      %p90 = scmp.eq.s32.totalorder %s22, 0
      %p91 = por %p89, %p90
      %s92 = ssub.s32 %s16, %s23
      %p93 = scmp.eq.s32.totalorder %s92, 0
      %s95 = sadd.s32 %s94, 1
      %s96 = scalar_select %p93, %s94, %s95
      %p99 = pneg %p93
      %p100 = scmp.eq.s32.totalorder %s16, 1
      %p101 = por %p99, %p100
      %p102 = scmp.ne.s32.totalorder %s94, %s97
      %p103 = scmp.eq.s32.totalorder %s16, 0
      %p104 = por %p102, %p103
      %p105 = scmp.ne.s32.totalorder %s94, %s97
      %p106 = scmp.eq.s32.totalorder %s21, 1
      %p107 = por %p105, %p106
      %p108 = scmp.ne.s32.totalorder %s97, %s98
      %p109 = scmp.eq.s32.totalorder %s21, 0
      %p110 = por %p108, %p109
      %p111 = scmp.ne.s32.totalorder %s97, %s98
      %p112 = scmp.eq.s32.totalorder %s22, 1
      %p113 = por %p111, %p112
      %p115 = scmp.ne.s32.totalorder %s98, %s114
      %p116 = scmp.eq.s32.totalorder %s22, 0
      %p117 = por %p115, %p116
      %p118 = scmp.le.s32.totalorder 1, %s16
      %p119 = scmp.lt.s32.totalorder %s16, 3
      %p120 = pnand %p118, %p119
      %p121 = pneg %p120
      // Predicated region
      $region9: #{tpu_custom_call.1} parent=5 // pred_check
        _
      $region10: #{tpu_custom_call.1} parent=5 // pred_check_branch
        %123 = sbr.rel (%p120) target = $region12
      $region11: #{tpu_custom_call.1} parent=5 // pred_region
        %s124 = ssub.s32 %s16, 1
        // Predicated region
        $region13: #{tpu_custom_call.1} parent=11 // pred_check
          %p125 = pneg %p63
        $region14: #{tpu_custom_call.1} parent=11 // pred_check_branch
          %127 = sbr.rel (%p125) target = $region16
        $region15: #{tpu_custom_call.1} parent=11 // pred_region
          %s129 = ssub.s32 2304, 2304
          %130 = vsyncadd [#allocation7], %s129
          %s131 = sshll.u32 [#allocation6], 4
          %s132 = int_to_ptr.vmem [resolvable:$true] %s131
          %137 = dma.hbm_to_vmem [thread:$0]  %s1, 2304, %s132, [#allocation7], 128, 128, 8
        $region16: #{tpu_custom_call.1} parent=11 // pred_fallthru
          _
        // Predicated region
        $region17: #{tpu_custom_call.1} parent=11 // pred_check
          %p138 = pneg %p84
        $region18: #{tpu_custom_call.1} parent=11 // pred_check_branch
          %140 = sbr.rel (%p138) target = $region20
        $region19: #{tpu_custom_call.1} parent=11 // pred_region
          _
        $region20: #{tpu_custom_call.1} parent=11 // pred_fallthru
          _
      $region12: #{tpu_custom_call.1} parent=5 // pred_fallthru
        _
      %p141 = scmp.lt.s32.totalorder %s16, 2
      // Predicated region
      $region21: #{tpu_custom_call.1} parent=5 // pred_check
        %p142 = pneg %p141
      $region22: #{tpu_custom_call.1} parent=5 // pred_check_branch
        %144 = sbr.rel (%p142) target = $region24
      $region23: #{tpu_custom_call.1} parent=5 // pred_region
        // Predicated region
        $region25: #{tpu_custom_call.1} parent=23 // pred_check
          %p145 = pneg %p36
        $region26: #{tpu_custom_call.1} parent=23 // pred_check_branch
          %147 = sbr.rel (%p145) target = $region28
        $region27: #{tpu_custom_call.1} parent=23 // pred_region
          %s148 = sand.u32 %s26, 1
          %s149 = scalar_lea.sflag [#allocation4], %s148
          %s150 = sand.u32 %s26, 1
          %s151 = smul.addr %s150, 256
          %s152 = scalar_lea.vmem [#allocation3], %s151
          %s154 = ssub.s32 4096, 4096
          %155 = vsyncadd %s149, %s154
          %s156 = smul.addr %s16, 32
          %s157 = smul.addr %s156, 128
          %s158 = scalar_lea.hbm %s0, %s157
          %s159 = sshll.u32 %s152, 4
          %s160 = int_to_ptr.vmem [resolvable:$true] %s159
          %165 = dma.hbm_to_vmem [thread:$0]  %s158, 4096, %s160, %s149, 128, 128, 8
        $region28: #{tpu_custom_call.1} parent=23 // pred_fallthru
          _
      $region24: #{tpu_custom_call.1} parent=5 // pred_fallthru
        _
      %p166 = scmp.le.s32.totalorder 1, %s16
      %p167 = scmp.lt.s32.totalorder %s16, 3
      %p168 = pnand %p166, %p167
      %p169 = pneg %p168
      // Predicated region
      $region29: #{tpu_custom_call.1} parent=5 // pred_check
        _
      $region30: #{tpu_custom_call.1} parent=5 // pred_check_branch
        %171 = sbr.rel (%p168) target = $region32
      $region31: #{tpu_custom_call.1} parent=5 // pred_region
        %s172 = ssub.s32 %s16, 1
        %s173 = sand.u32 %s29, 1
        %s174 = scalar_lea.sflag [#allocation4], %s173
        %s175 = sand.u32 %s29, 1
        %s176 = smul.addr %s175, 256
        %s177 = scalar_lea.vmem [#allocation3], %s176
        // Predicated region
        $region33: #{tpu_custom_call.1} parent=31 // pred_check
          %p178 = pneg %p42
        $region34: #{tpu_custom_call.1} parent=31 // pred_check_branch
          %180 = sbr.rel (%p178) target = $region36
        $region35: #{tpu_custom_call.1} parent=31 // pred_region
          %181 = dma.done %s174, 4096
        $region36: #{tpu_custom_call.1} parent=31 // pred_fallthru
          _
        // Predicated region
        $region37: #{tpu_custom_call.1} parent=31 // pred_check
          %p182 = pneg %p63
        $region38: #{tpu_custom_call.1} parent=31 // pred_check_branch
          %184 = sbr.rel (%p182) target = $region40
        $region39: #{tpu_custom_call.1} parent=31 // pred_region
          %185 = dma.done [#allocation7], 2304
        $region40: #{tpu_custom_call.1} parent=31 // pred_fallthru
          _
        %s186 = sand.u32 %s29, 1
        %s187 = scalar_lea.sflag [#allocation4], %s186
        %s188 = sand.u32 %s29, 1
        %s189 = smul.addr %s188, 256
        %s190 = scalar_lea.vmem [#allocation3], %s189
        %p191 = pneg %p42
        %p192 = pneg %p39
        %p193 = pneg %p63
        %p194 = pneg %p60
        %p195 = pneg %p84
        %p196 = pneg %p81
        %p197 = pneg %p110
        %p198 = pneg %p107
        %s199 = sand.u32 %s97, 1
        %s200 = scalar_lea.sflag [#allocation5], %s199
        %s201 = sand.u32 %s97, 1
        %s202 = smul.addr %s201, 256
        %s203 = scalar_lea.vmem [#allocation8], %s202
        %v204 = vld [vmem:[#allocation6] sm:$0xff]
        %v205 = vld [vmem:[#allocation6 + $0x8] sm:$0xff]
        %v206 = vld [vmem:[#allocation6 + $0x10] sm:$0xff]
        %v207 = vld [vmem:[#allocation6 + $0x18] sm:$0xff]
        %v208 = vld [vmem:[#allocation6 + $0x20] sm:$0xff]
        %v209 = vld [vmem:[#allocation6 + $0x28] sm:$0xff]
        %v210 = vld [vmem:[#allocation6 + $0x30] sm:$0xff]
        %v211 = vld [vmem:[#allocation6 + $0x38] sm:$0xff]
        %v212 = vld [vmem:[#allocation6 + $0x40] sm:$0xff]
        %v213 = vld [vmem:[#allocation6 + $0x48] sm:$0xff]
        %v214 = vld [vmem:[#allocation6 + $0x50] sm:$0xff]
        %v215 = vld [vmem:[#allocation6 + $0x58] sm:$0xff]
        %v216 = vld [vmem:[#allocation6 + $0x60] sm:$0xff]
        %v217 = vld [vmem:[#allocation6 + $0x68] sm:$0xff]
        %v218 = vld [vmem:[#allocation6 + $0x70] sm:$0xff]
        %v219 = vld [vmem:[#allocation6 + $0x78] sm:$0xff]
        %v220 = vld [vmem:[#allocation6 + $0x80] sm:$0xff]
        %v221 = vld [vmem:[#allocation6 + $0x88] sm:$0xff]
        %vm222 = vcmask 130048
        %223 = vst.msk [vmem:[#allocation2] sm:$0xff] %vm222, 0.0
        %224 = vst.msk [vmem:[#allocation2 + $0x8] sm:$0xff] %vm222, 0.0
        %vm225 = vcmask 123904
        %226 = vst.msk [vmem:[#allocation2 + $0x10] sm:$0x3] %vm225, 0.0
        %227 = vst.msk [vmem:[#allocation2 + $0x18] sm:$0xff] %vm222, 0.0
        %228 = vst.msk [vmem:[#allocation2 + $0x20] sm:$0xff] %vm222, 0.0
        %229 = vst.msk [vmem:[#allocation2 + $0x28] sm:$0x3] %vm225, 0.0
        %230 = vst.msk [vmem:[#allocation2 + $0x30] sm:$0xff] %vm222, 0.0
        %231 = vst.msk [vmem:[#allocation2 + $0x38] sm:$0xff] %vm222, 0.0
        %232 = vst.msk [vmem:[#allocation2 + $0x40] sm:$0x3] %vm225, 0.0
        %233 = vst.msk [vmem:[#allocation2 + $0x48] sm:$0xff] %vm222, 0.0
        %234 = vst.msk [vmem:[#allocation2 + $0x50] sm:$0xff] %vm222, 0.0
        %235 = vst.msk [vmem:[#allocation2 + $0x58] sm:$0x3] %vm225, 0.0
        %236 = vst.msk [vmem:[#allocation2 + $0x60] sm:$0xff] %vm222, 0.0
        %237 = vst.msk [vmem:[#allocation2 + $0x68] sm:$0xff] %vm222, 0.0
        %238 = vst.msk [vmem:[#allocation2 + $0x70] sm:$0x3] %vm225, 0.0
        %239 = vst.msk [vmem:[#allocation2 + $0x78] sm:$0xff] %vm222, 0.0
        %240 = vst.msk [vmem:[#allocation2 + $0x80] sm:$0xff] %vm222, 0.0
        %241 = vst.msk [vmem:[#allocation2 + $0x88] sm:$0x3] %vm225, 0.0
        %242 = vst.msk [vmem:[#allocation2 + $0x90] sm:$0xff] %vm222, 0.0
        %243 = vst.msk [vmem:[#allocation2 + $0x98] sm:$0xff] %vm222, 0.0
        %244 = vst.msk [vmem:[#allocation2 + $0xa0] sm:$0x3] %vm225, 0.0
        %245 = vst.msk [vmem:[#allocation2 + $0xa8] sm:$0xff] %vm222, 0.0
        %246 = vst.msk [vmem:[#allocation2 + $0xb0] sm:$0xff] %vm222, 0.0
        %247 = vst.msk [vmem:[#allocation2 + $0xb8] sm:$0x3] %vm225, 0.0
        %248 = vst.msk [vmem:[#allocation2 + $0xc0] sm:$0xff] %vm222, 0.0
        %249 = vst.msk [vmem:[#allocation2 + $0xc8] sm:$0xff] %vm222, 0.0
        %250 = vst.msk [vmem:[#allocation2 + $0xd0] sm:$0x3] %vm225, 0.0
        %251 = vst.msk [vmem:[#allocation2 + $0xd8] sm:$0xff] %vm222, 0.0
        %252 = vst.msk [vmem:[#allocation2 + $0xe0] sm:$0xff] %vm222, 0.0
        %253 = vst.msk [vmem:[#allocation2 + $0xe8] sm:$0x3] %vm225, 0.0
        %254 = vst.msk [vmem:[#allocation2 + $0xf0] sm:$0xff] %vm222, 0.0
        %255 = vst.msk [vmem:[#allocation2 + $0xf8] sm:$0xff] %vm222, 0.0
        %256 = vst.msk [vmem:[#allocation2 + $0x100] sm:$0x3] %vm225, 0.0
        %257 = vst.msk [vmem:[#allocation2 + $0x108] sm:$0xff] %vm222, 0.0
        %258 = vst.msk [vmem:[#allocation2 + $0x110] sm:$0xff] %vm222, 0.0
        %259 = vst.msk [vmem:[#allocation2 + $0x118] sm:$0x3] %vm225, 0.0
        %260 = vst.msk [vmem:[#allocation2 + $0x120] sm:$0xff] %vm222, 0.0
        %261 = vst.msk [vmem:[#allocation2 + $0x128] sm:$0xff] %vm222, 0.0
        %262 = vst.msk [vmem:[#allocation2 + $0x130] sm:$0x3] %vm225, 0.0
        %263 = vst.msk [vmem:[#allocation2 + $0x138] sm:$0xff] %vm222, 0.0
        %264 = vst.msk [vmem:[#allocation2 + $0x140] sm:$0xff] %vm222, 0.0
        %265 = vst.msk [vmem:[#allocation2 + $0x148] sm:$0x3] %vm225, 0.0
        %266 = vst.msk [vmem:[#allocation2 + $0x150] sm:$0xff] %vm222, 0.0
        %267 = vst.msk [vmem:[#allocation2 + $0x158] sm:$0xff] %vm222, 0.0
        %268 = vst.msk [vmem:[#allocation2 + $0x160] sm:$0x3] %vm225, 0.0
        %269 = vst.msk [vmem:[#allocation2 + $0x168] sm:$0xff] %vm222, 0.0
        %270 = vst.msk [vmem:[#allocation2 + $0x170] sm:$0xff] %vm222, 0.0
        %271 = vst.msk [vmem:[#allocation2 + $0x178] sm:$0x3] %vm225, 0.0
        %272 = vst.msk [vmem:[#allocation2 + $0x180] sm:$0xff] %vm222, 0.0
        %273 = vst.msk [vmem:[#allocation2 + $0x188] sm:$0xff] %vm222, 0.0
        %274 = vst.msk [vmem:[#allocation2 + $0x190] sm:$0x3] %vm225, 0.0
        %275 = vst.msk [vmem:[#allocation2 + $0x198] sm:$0xff] %vm222, 0.0
        %276 = vst.msk [vmem:[#allocation2 + $0x1a0] sm:$0xff] %vm222, 0.0
        %277 = vst.msk [vmem:[#allocation2 + $0x1a8] sm:$0x3] %vm225, 0.0
        %v278 = vld [vmem:[%s177] sm:$0xff]
        %v279 = vld [vmem:[%s177 + $0x8] sm:$0xff]
        %v280 = vld [vmem:[%s177 + $0x10] sm:$0xff]
        %v281 = vld [vmem:[%s177 + $0x18] sm:$0xff]
        %v282 = vld [vmem:[%s177 + $0x20] sm:$0xff]
        %v283 = vld [vmem:[%s177 + $0x28] sm:$0xff]
        %v284 = vld [vmem:[%s177 + $0x30] sm:$0xff]
        %v285 = vld [vmem:[%s177 + $0x38] sm:$0xff]
        %v286 = vld [vmem:[%s177 + $0x40] sm:$0xff]
        %v287 = vld [vmem:[%s177 + $0x48] sm:$0xff]
        %v288 = vld [vmem:[%s177 + $0x50] sm:$0xff]
        %v289 = vld [vmem:[%s177 + $0x58] sm:$0xff]
        %v290 = vld [vmem:[%s177 + $0x60] sm:$0xff]
        %v291 = vld [vmem:[%s177 + $0x68] sm:$0xff]
        %v292 = vld [vmem:[%s177 + $0x70] sm:$0xff]
        %v293 = vld [vmem:[%s177 + $0x78] sm:$0xff]
        %v294 = vld [vmem:[%s177 + $0x80] sm:$0xff]
        %v295 = vld [vmem:[%s177 + $0x88] sm:$0xff]
        %v296 = vld [vmem:[%s177 + $0x90] sm:$0xff]
        %v297 = vld [vmem:[%s177 + $0x98] sm:$0xff]
        %v298 = vld [vmem:[%s177 + $0xa0] sm:$0xff]
        %v299 = vld [vmem:[%s177 + $0xa8] sm:$0xff]
        %v300 = vld [vmem:[%s177 + $0xb0] sm:$0xff]
        %v301 = vld [vmem:[%s177 + $0xb8] sm:$0xff]
        %v302 = vld [vmem:[%s177 + $0xc0] sm:$0xff]
        %v303 = vld [vmem:[%s177 + $0xc8] sm:$0xff]
        %v304 = vld [vmem:[%s177 + $0xd0] sm:$0xff]
        %v305 = vld [vmem:[%s177 + $0xd8] sm:$0xff]
        %v306 = vld [vmem:[%s177 + $0xe0] sm:$0xff]
        %v307 = vld [vmem:[%s177 + $0xe8] sm:$0xff]
        %v308 = vld [vmem:[%s177 + $0xf0] sm:$0xff]
        %v309 = vld [vmem:[%s177 + $0xf8] sm:$0xff]
        %s310 = scalar_lea.vmem [#allocation2], 24
        %311 = vst.msk [vmem:[%s310 + $0x1] sm:$0xff] %vm222, %v278
        %312 = vst.msk [vmem:[%s310 + $0x9] sm:$0xff] %vm222, %v279
        %313 = vst.msk [vmem:[%s310 + $0x19] sm:$0xff] %vm222, %v280
        %314 = vst.msk [vmem:[%s310 + $0x21] sm:$0xff] %vm222, %v281
        %315 = vst.msk [vmem:[%s310 + $0x31] sm:$0xff] %vm222, %v282
        %316 = vst.msk [vmem:[%s310 + $0x39] sm:$0xff] %vm222, %v283
        %317 = vst.msk [vmem:[%s310 + $0x49] sm:$0xff] %vm222, %v284
        %318 = vst.msk [vmem:[%s310 + $0x51] sm:$0xff] %vm222, %v285
        %319 = vst.msk [vmem:[%s310 + $0x61] sm:$0xff] %vm222, %v286
        %320 = vst.msk [vmem:[%s310 + $0x69] sm:$0xff] %vm222, %v287
        %321 = vst.msk [vmem:[%s310 + $0x79] sm:$0xff] %vm222, %v288
        %322 = vst.msk [vmem:[%s310 + $0x81] sm:$0xff] %vm222, %v289
        %323 = vst.msk [vmem:[%s310 + $0x91] sm:$0xff] %vm222, %v290
        %324 = vst.msk [vmem:[%s310 + $0x99] sm:$0xff] %vm222, %v291
        %325 = vst.msk [vmem:[%s310 + $0xa9] sm:$0xff] %vm222, %v292
        %326 = vst.msk [vmem:[%s310 + $0xb1] sm:$0xff] %vm222, %v293
        %327 = vst.msk [vmem:[%s310 + $0xc1] sm:$0xff] %vm222, %v294
        %328 = vst.msk [vmem:[%s310 + $0xc9] sm:$0xff] %vm222, %v295
        %329 = vst.msk [vmem:[%s310 + $0xd9] sm:$0xff] %vm222, %v296
        %330 = vst.msk [vmem:[%s310 + $0xe1] sm:$0xff] %vm222, %v297
        %331 = vst.msk [vmem:[%s310 + $0xf1] sm:$0xff] %vm222, %v298
        %332 = vst.msk [vmem:[%s310 + $0xf9] sm:$0xff] %vm222, %v299
        %333 = vst.msk [vmem:[%s310 + $0x109] sm:$0xff] %vm222, %v300
        %334 = vst.msk [vmem:[%s310 + $0x111] sm:$0xff] %vm222, %v301
        %335 = vst.msk [vmem:[%s310 + $0x121] sm:$0xff] %vm222, %v302
        %336 = vst.msk [vmem:[%s310 + $0x129] sm:$0xff] %vm222, %v303
        %337 = vst.msk [vmem:[%s310 + $0x139] sm:$0xff] %vm222, %v304
        %338 = vst.msk [vmem:[%s310 + $0x141] sm:$0xff] %vm222, %v305
        %339 = vst.msk [vmem:[%s310 + $0x151] sm:$0xff] %vm222, %v306
        %340 = vst.msk [vmem:[%s310 + $0x159] sm:$0xff] %vm222, %v307
        %341 = vst.msk [vmem:[%s310 + $0x169] sm:$0xff] %vm222, %v308
        %342 = vst.msk [vmem:[%s310 + $0x171] sm:$0xff] %vm222, %v309
        %v343 = vld [vmem:[#allocation2] sm:$0xff]
        %v344 = vld [vmem:[#allocation2 + $0x8] sm:$0xff]
        %v345 = vld [vmem:[#allocation2 + $0x10] sm:$0x3]
        %v346 = vld [vmem:[#allocation2 + $0x18] sm:$0xff]
        %v347 = vld [vmem:[#allocation2 + $0x20] sm:$0xff]
        %v348 = vld [vmem:[#allocation2 + $0x28] sm:$0x3]
        %v349 = vld [vmem:[#allocation2 + $0x30] sm:$0xff]
        %v350 = vld [vmem:[#allocation2 + $0x38] sm:$0xff]
        %v351 = vld [vmem:[#allocation2 + $0x40] sm:$0x3]
        %v352 = vld [vmem:[#allocation2 + $0x48] sm:$0xff]
        %v353 = vld [vmem:[#allocation2 + $0x50] sm:$0xff]
        %v354 = vld [vmem:[#allocation2 + $0x58] sm:$0x3]
        %v355 = vld [vmem:[#allocation2 + $0x60] sm:$0xff]
        %v356 = vld [vmem:[#allocation2 + $0x68] sm:$0xff]
        %v357 = vld [vmem:[#allocation2 + $0x70] sm:$0x3]
        %v358 = vld [vmem:[#allocation2 + $0x78] sm:$0xff]
        %v359 = vld [vmem:[#allocation2 + $0x80] sm:$0xff]
        %v360 = vld [vmem:[#allocation2 + $0x88] sm:$0x3]
        %v361 = vld [vmem:[#allocation2 + $0x90] sm:$0xff]
        %v362 = vld [vmem:[#allocation2 + $0x98] sm:$0xff]
        %v363 = vld [vmem:[#allocation2 + $0xa0] sm:$0x3]
        %v364 = vld [vmem:[#allocation2 + $0xa8] sm:$0xff]
        %v365 = vld [vmem:[#allocation2 + $0xb0] sm:$0xff]
        %v366 = vld [vmem:[#allocation2 + $0xb8] sm:$0x3]
        %v367 = vld [vmem:[#allocation2 + $0xc0] sm:$0xff]
        %v368 = vld [vmem:[#allocation2 + $0xc8] sm:$0xff]
        %v369 = vld [vmem:[#allocation2 + $0xd0] sm:$0x3]
        %v370 = vld [vmem:[#allocation2 + $0xd8] sm:$0xff]
        %v371 = vld [vmem:[#allocation2 + $0xe0] sm:$0xff]
        %v372 = vld [vmem:[#allocation2 + $0xe8] sm:$0x3]
        %v373 = vld [vmem:[#allocation2 + $0xf0] sm:$0xff]
        %v374 = vld [vmem:[#allocation2 + $0xf8] sm:$0xff]
        %v375 = vld [vmem:[#allocation2 + $0x100] sm:$0x3]
        %v376 = vld [vmem:[#allocation2 + $0x108] sm:$0xff]
        %v377 = vld [vmem:[#allocation2 + $0x110] sm:$0xff]
        %v378 = vld [vmem:[#allocation2 + $0x118] sm:$0x3]
        %v379 = vld [vmem:[#allocation2 + $0x120] sm:$0xff]
        %v380 = vld [vmem:[#allocation2 + $0x128] sm:$0xff]
        %v381 = vld [vmem:[#allocation2 + $0x130] sm:$0x3]
        %v382 = vld [vmem:[#allocation2 + $0x138] sm:$0xff]
        %v383 = vld [vmem:[#allocation2 + $0x140] sm:$0xff]
        %v384 = vld [vmem:[#allocation2 + $0x148] sm:$0x3]
        %v385 = vld [vmem:[#allocation2 + $0x150] sm:$0xff]
        %v386 = vld [vmem:[#allocation2 + $0x158] sm:$0xff]
        %v387 = vld [vmem:[#allocation2 + $0x160] sm:$0x3]
        %v388 = vld [vmem:[#allocation2 + $0x168] sm:$0xff]
        %v389 = vld [vmem:[#allocation2 + $0x170] sm:$0xff]
        %v390 = vld [vmem:[#allocation2 + $0x178] sm:$0x3]
        %v391 = vld [vmem:[#allocation2 + $0x180] sm:$0xff]
        %v392 = vld [vmem:[#allocation2 + $0x188] sm:$0xff]
        %v393 = vld [vmem:[#allocation2 + $0x190] sm:$0x3]
        %v394 = vld [vmem:[#allocation2 + $0x198] sm:$0xff]
        %v395 = vld [vmem:[#allocation2 + $0x1a0] sm:$0xff]
        %v396 = vld [vmem:[#allocation2 + $0x1a8] sm:$0x3]
        %vm445 = vcmask 1046528
        %v446 = vrot.slane %v343, 1
        %v447 = vrot.slane %v344, 1
        %v448 = vsel %vm445, %v446, %v447
        %v449 = vrot.slane %v345, 1
        %v450 = vsel %vm445, %v447, %v449
        %v451 = vrot.slane %v346, 1
        %v452 = vrot.slane %v347, 1
        %v453 = vsel %vm445, %v451, %v452
        %v454 = vrot.slane %v348, 1
        %v455 = vsel %vm445, %v452, %v454
        %v456 = vrot.slane %v349, 1
        %v457 = vrot.slane %v350, 1
        %v458 = vsel %vm445, %v456, %v457
        %v459 = vrot.slane %v351, 1
        %v460 = vsel %vm445, %v457, %v459
        %v461 = vrot.slane %v352, 1
        %v462 = vrot.slane %v353, 1
        %v463 = vsel %vm445, %v461, %v462
        %v464 = vrot.slane %v354, 1
        %v465 = vsel %vm445, %v462, %v464
        %v466 = vrot.slane %v355, 1
        %v467 = vrot.slane %v356, 1
        %v468 = vsel %vm445, %v466, %v467
        %v469 = vrot.slane %v357, 1
        %v470 = vsel %vm445, %v467, %v469
        %v471 = vrot.slane %v358, 1
        %v472 = vrot.slane %v359, 1
        %v473 = vsel %vm445, %v471, %v472
        %v474 = vrot.slane %v360, 1
        %v475 = vsel %vm445, %v472, %v474
        %v476 = vrot.slane %v361, 1
        %v477 = vrot.slane %v362, 1
        %v478 = vsel %vm445, %v476, %v477
        %v479 = vrot.slane %v363, 1
        %v480 = vsel %vm445, %v477, %v479
        %v481 = vrot.slane %v364, 1
        %v482 = vrot.slane %v365, 1
        %v483 = vsel %vm445, %v481, %v482
        %v484 = vrot.slane %v366, 1
        %v485 = vsel %vm445, %v482, %v484
        %v486 = vrot.slane %v367, 1
        %v487 = vrot.slane %v368, 1
        %v488 = vsel %vm445, %v486, %v487
        %v489 = vrot.slane %v369, 1
        %v490 = vsel %vm445, %v487, %v489
        %v491 = vrot.slane %v370, 1
        %v492 = vrot.slane %v371, 1
        %v493 = vsel %vm445, %v491, %v492
        %v494 = vrot.slane %v372, 1
        %v495 = vsel %vm445, %v492, %v494
        %v496 = vrot.slane %v373, 1
        %v497 = vrot.slane %v374, 1
        %v498 = vsel %vm445, %v496, %v497
        %v499 = vrot.slane %v375, 1
        %v500 = vsel %vm445, %v497, %v499
        %v501 = vrot.slane %v376, 1
        %v502 = vrot.slane %v377, 1
        %v503 = vsel %vm445, %v501, %v502
        %v504 = vrot.slane %v378, 1
        %v505 = vsel %vm445, %v502, %v504
        %v506 = vrot.slane %v379, 1
        %v507 = vrot.slane %v380, 1
        %v508 = vsel %vm445, %v506, %v507
        %v509 = vrot.slane %v381, 1
        %v510 = vsel %vm445, %v507, %v509
        %v511 = vrot.slane %v382, 1
        %v512 = vrot.slane %v383, 1
        %v513 = vsel %vm445, %v511, %v512
        %v514 = vrot.slane %v384, 1
        %v515 = vsel %vm445, %v512, %v514
        %v516 = vrot.slane %v385, 1
        %v517 = vrot.slane %v386, 1
        %v518 = vsel %vm445, %v516, %v517
        %v519 = vrot.slane %v387, 1
        %v520 = vsel %vm445, %v517, %v519
        %v521 = vrot.slane %v388, 1
        %v522 = vrot.slane %v389, 1
        %v523 = vsel %vm445, %v521, %v522
        %v524 = vrot.slane %v390, 1
        %v525 = vsel %vm445, %v522, %v524
        %v526 = vsel %vm222, %v448, 0
        %v528 = vsel %vm222, %v450, 0
        %v530 = vsel %vm222, %v453, 0
        %v532 = vsel %vm222, %v455, 0
        %v534 = vsel %vm222, %v458, 0
        %v536 = vsel %vm222, %v460, 0
        %v538 = vsel %vm222, %v463, 0
        %v540 = vsel %vm222, %v465, 0
        %v542 = vsel %vm222, %v468, 0
        %v544 = vsel %vm222, %v470, 0
        %v546 = vsel %vm222, %v473, 0
        %v548 = vsel %vm222, %v475, 0
        %v550 = vsel %vm222, %v478, 0
        %v552 = vsel %vm222, %v480, 0
        %v554 = vsel %vm222, %v483, 0
        %v556 = vsel %vm222, %v485, 0
        %v558 = vsel %vm222, %v488, 0
        %v560 = vsel %vm222, %v490, 0
        %v562 = vsel %vm222, %v493, 0
        %v564 = vsel %vm222, %v495, 0
        %v566 = vsel %vm222, %v498, 0
        %v568 = vsel %vm222, %v500, 0
        %v570 = vsel %vm222, %v503, 0
        %v572 = vsel %vm222, %v505, 0
        %v574 = vsel %vm222, %v508, 0
        %v576 = vsel %vm222, %v510, 0
        %v578 = vsel %vm222, %v513, 0
        %v580 = vsel %vm222, %v515, 0
        %v582 = vsel %vm222, %v518, 0
        %v584 = vsel %vm222, %v520, 0
        %v586 = vsel %vm222, %v523, 0
        %v588 = vsel %vm222, %v525, 0
        %590 = vmatprep.subr.mxu0 0.0
        %591 = vmatpush1.msra.mxu0 %v206
        %592 = vmatprep.subr.mxu0 0.0
        %593 = vmatpush1.msra.mxu0 %v207
        %594 = vmatprep.subr.mxu0 0.0
        %595 = vmatpush1.msra.mxu0 0.0
        %596 = vmatprep.subr.mxu0 0.0
        %597 = vmatpush1.msra.mxu0 0.0
        %598 = vmatprep.subr.mxu0 0.0
        %599 = vmatpush1.msra.mxu0 0.0
        %600 = vmatprep.subr.mxu0 0.0
        %601 = vmatpush1.msra.mxu0 0.0
        %602 = vmatprep.subr.mxu0 0.0
        %603 = vmatpush1.msra.mxu0 0.0
        %604 = vmatprep.subr.mxu0 0.0
        %605 = vmatpush1.msra.mxu0 0.0
        %606 = vmatprep.subr.mxu0 0.0
        %607 = vmatpush1.msra.mxu0 0.0
        %608 = vmatprep.subr.mxu0 0.0
        %609 = vmatpush1.msra.mxu0 0.0
        %610 = vmatprep.subr.mxu0 0.0
        %611 = vmatpush1.msra.mxu0 0.0
        %612 = vmatprep.subr.mxu0 0.0
        %613 = vmatpush1.msra.mxu0 0.0
        %614 = vmatprep.subr.mxu0 0.0
        %615 = vmatpush1.msra.mxu0 0.0
        %616 = vmatprep.subr.mxu0 0.0
        %617 = vmatpush1.msra.mxu0 0.0
        %618 = vmatprep.subr.mxu0 0.0
        %619 = vmatpush1.msra.mxu0 0.0
        %620 = vmatprep.subr.mxu0 0.0
        %621 = vmatpush1.msra.mxu0 0.0
        %622 = vmatprep.subr.mxu0 0.0
        %623 = vmatpush1.msra.mxu0 0.0
        %624 = vmatprep.subr.mxu0 0.0
        %625 = vmatpush1.msra.mxu0 0.0
        %626 = vmatprep.subr.mxu0 0.0
        %627 = vmatpush1.msra.mxu0 0.0
        %628 = vmatprep.subr.mxu0 0.0
        %629 = vmatpush1.msra.mxu0 0.0
        %630 = vmatprep.subr.mxu0 0.0
        %631 = vmatpush1.msra.mxu0 0.0
        %632 = vmatprep.subr.mxu0 0.0
        %633 = vmatpush1.msra.mxu0 0.0
        %634 = vmatprep.subr.mxu0 0.0
        %635 = vmatpush1.msra.mxu0 0.0
        %636 = vmatprep.subr.mxu0 0.0
        %637 = vmatpush1.msra.mxu0 0.0
        %638 = vmatprep.subr.mxu0 0.0
        %639 = vmatpush1.msra.mxu0 0.0
        %640 = vmatprep.subr.mxu0 0.0
        %641 = vmatpush1.msra.mxu0 0.0
        %642 = vmatprep.subr.mxu0 0.0
        %643 = vmatpush1.msra.mxu0 0.0
        %644 = vmatprep.subr.mxu0 0.0
        %645 = vmatpush1.msra.mxu0 0.0
        %646 = vmatprep.subr.mxu0 0.0
        %647 = vmatpush1.msra.mxu0 0.0
        %648 = vmatprep.subr.mxu0 0.0
        %649 = vmatpush1.msra.mxu0 0.0
        %650 = vmatprep.subr.mxu0 0.0
        %651 = vmatpush1.msra.mxu0 0.0
        %652 = vmatprep.subr.mxu0 0.0
        %653 = vmatpush1.msra.mxu0 0.0
        %654 = vmatprep.mubr.f32.mxu0 0.0
        %655 = vmatmul.mubr.f32.gmra.mrb[0].mxu0 %v526
        %v656 = vpop.f32.mrb[0].mxu0
        %v657 = vadd.f32 0.0, %v656
        %v658 = vpop.f32.mrb[0].mxu0
        %659 = vmatprep.mubr.f32.mxu0 0.0
        %660 = vmatmul.mubr.f32.gmra.mrb[0].mxu0 %v528
        %v661 = vpop.f32.mrb[0].mxu0
        %v662 = vadd.f32 0.0, %v661
        %v663 = vpop.f32.mrb[0].mxu0
        %664 = vmatprep.mubr.f32.mxu0 0.0
        %665 = vmatmul.mubr.f32.gmra.mrb[0].mxu0 %v530
        %v666 = vpop.f32.mrb[0].mxu0
        %v667 = vadd.f32 0.0, %v666
        %v668 = vpop.f32.mrb[0].mxu0
        %669 = vmatprep.mubr.f32.mxu0 0.0
        %670 = vmatmul.mubr.f32.gmra.mrb[0].mxu0 %v532
        %v671 = vpop.f32.mrb[0].mxu0
        %v672 = vadd.f32 0.0, %v671
        %v673 = vpop.f32.mrb[0].mxu0
        %674 = vmatprep.mubr.f32.mxu0 0.0
        %675 = vmatmul.mubr.f32.gmra.mrb[0].mxu0 %v534
        %v676 = vpop.f32.mrb[0].mxu0
        %v677 = vadd.f32 0.0, %v676
        %v678 = vpop.f32.mrb[0].mxu0
        %679 = vmatprep.mubr.f32.mxu0 0.0
        %680 = vmatmul.mubr.f32.gmra.mrb[0].mxu0 %v536
        %v681 = vpop.f32.mrb[0].mxu0
        %v682 = vadd.f32 0.0, %v681
        %v683 = vpop.f32.mrb[0].mxu0
        %684 = vmatprep.mubr.f32.mxu0 0.0
        %685 = vmatmul.mubr.f32.gmra.mrb[0].mxu0 %v538
        %v686 = vpop.f32.mrb[0].mxu0
        %v687 = vadd.f32 0.0, %v686
        %v688 = vpop.f32.mrb[0].mxu0
        %689 = vmatprep.mubr.f32.mxu0 0.0
        %690 = vmatmul.mubr.f32.gmra.mrb[0].mxu0 %v540
        %v691 = vpop.f32.mrb[0].mxu0
        %v692 = vadd.f32 0.0, %v691
        %v693 = vpop.f32.mrb[0].mxu0
        %694 = vmatprep.mubr.f32.mxu0 0.0
        %695 = vmatmul.mubr.f32.gmra.mrb[0].mxu0 %v542
        %v696 = vpop.f32.mrb[0].mxu0
        %v697 = vadd.f32 0.0, %v696
        %v698 = vpop.f32.mrb[0].mxu0
        %699 = vmatprep.mubr.f32.mxu0 0.0
        %700 = vmatmul.mubr.f32.gmra.mrb[0].mxu0 %v544
        %v701 = vpop.f32.mrb[0].mxu0
        %v702 = vadd.f32 0.0, %v701
        %v703 = vpop.f32.mrb[0].mxu0
        %704 = vmatprep.mubr.f32.mxu0 0.0
        %705 = vmatmul.mubr.f32.gmra.mrb[0].mxu0 %v546
        %v706 = vpop.f32.mrb[0].mxu0
        %v707 = vadd.f32 0.0, %v706
        %v708 = vpop.f32.mrb[0].mxu0
        %709 = vmatprep.mubr.f32.mxu0 0.0
        %710 = vmatmul.mubr.f32.gmra.mrb[0].mxu0 %v548
        %v711 = vpop.f32.mrb[0].mxu0
        %v712 = vadd.f32 0.0, %v711
        %v713 = vpop.f32.mrb[0].mxu0
        %714 = vmatprep.mubr.f32.mxu0 0.0
        %715 = vmatmul.mubr.f32.gmra.mrb[0].mxu0 %v550
        %v716 = vpop.f32.mrb[0].mxu0
        %v717 = vadd.f32 0.0, %v716
        %v718 = vpop.f32.mrb[0].mxu0
        %719 = vmatprep.mubr.f32.mxu0 0.0
        %720 = vmatmul.mubr.f32.gmra.mrb[0].mxu0 %v552
        %v721 = vpop.f32.mrb[0].mxu0
        %v722 = vadd.f32 0.0, %v721
        %v723 = vpop.f32.mrb[0].mxu0
        %724 = vmatprep.mubr.f32.mxu0 0.0
        %725 = vmatmul.mubr.f32.gmra.mrb[0].mxu0 %v554
        %v726 = vpop.f32.mrb[0].mxu0
        %v727 = vadd.f32 0.0, %v726
        %v728 = vpop.f32.mrb[0].mxu0
        %729 = vmatprep.mubr.f32.mxu0 0.0
        %730 = vmatmul.mubr.f32.gmra.mrb[0].mxu0 %v556
        %v731 = vpop.f32.mrb[0].mxu0
        %v732 = vadd.f32 0.0, %v731
        %v733 = vpop.f32.mrb[0].mxu0
        %734 = vmatprep.mubr.f32.mxu0 0.0
        %735 = vmatmul.mubr.f32.gmra.mrb[0].mxu0 %v558
        %v736 = vpop.f32.mrb[0].mxu0
        %v737 = vadd.f32 0.0, %v736
        %v738 = vpop.f32.mrb[0].mxu0
        %739 = vmatprep.mubr.f32.mxu0 0.0
        %740 = vmatmul.mubr.f32.gmra.mrb[0].mxu0 %v560
        %v741 = vpop.f32.mrb[0].mxu0
        %v742 = vadd.f32 0.0, %v741
        %v743 = vpop.f32.mrb[0].mxu0
        %744 = vmatprep.mubr.f32.mxu0 0.0
        %745 = vmatmul.mubr.f32.gmra.mrb[0].mxu0 %v562
        %v746 = vpop.f32.mrb[0].mxu0
        %v747 = vadd.f32 0.0, %v746
        %v748 = vpop.f32.mrb[0].mxu0
        %749 = vmatprep.mubr.f32.mxu0 0.0
        %750 = vmatmul.mubr.f32.gmra.mrb[0].mxu0 %v564
        %v751 = vpop.f32.mrb[0].mxu0
        %v752 = vadd.f32 0.0, %v751
        %v753 = vpop.f32.mrb[0].mxu0
        %754 = vmatprep.mubr.f32.mxu0 0.0
        %755 = vmatmul.mubr.f32.gmra.mrb[0].mxu0 %v566
        %v756 = vpop.f32.mrb[0].mxu0
        %v757 = vadd.f32 0.0, %v756
        %v758 = vpop.f32.mrb[0].mxu0
        %759 = vmatprep.mubr.f32.mxu0 0.0
        %760 = vmatmul.mubr.f32.gmra.mrb[0].mxu0 %v568
        %v761 = vpop.f32.mrb[0].mxu0
        %v762 = vadd.f32 0.0, %v761
        %v763 = vpop.f32.mrb[0].mxu0
        %764 = vmatprep.mubr.f32.mxu0 0.0
        %765 = vmatmul.mubr.f32.gmra.mrb[0].mxu0 %v570
        %v766 = vpop.f32.mrb[0].mxu0
        %v767 = vadd.f32 0.0, %v766
        %v768 = vpop.f32.mrb[0].mxu0
        %769 = vmatprep.mubr.f32.mxu0 0.0
        %770 = vmatmul.mubr.f32.gmra.mrb[0].mxu0 %v572
        %v771 = vpop.f32.mrb[0].mxu0
        %v772 = vadd.f32 0.0, %v771
        %v773 = vpop.f32.mrb[0].mxu0
        %774 = vmatprep.mubr.f32.mxu0 0.0
        %775 = vmatmul.mubr.f32.gmra.mrb[0].mxu0 %v574
        %v776 = vpop.f32.mrb[0].mxu0
        %v777 = vadd.f32 0.0, %v776
        %v778 = vpop.f32.mrb[0].mxu0
        %779 = vmatprep.mubr.f32.mxu0 0.0
        %780 = vmatmul.mubr.f32.gmra.mrb[0].mxu0 %v576
        %v781 = vpop.f32.mrb[0].mxu0
        %v782 = vadd.f32 0.0, %v781
        %v783 = vpop.f32.mrb[0].mxu0
        %784 = vmatprep.mubr.f32.mxu0 0.0
        %785 = vmatmul.mubr.f32.gmra.mrb[0].mxu0 %v578
        %v786 = vpop.f32.mrb[0].mxu0
        %v787 = vadd.f32 0.0, %v786
        %v788 = vpop.f32.mrb[0].mxu0
        %789 = vmatprep.mubr.f32.mxu0 0.0
        %790 = vmatmul.mubr.f32.gmra.mrb[0].mxu0 %v580
        %v791 = vpop.f32.mrb[0].mxu0
        %v792 = vadd.f32 0.0, %v791
        %v793 = vpop.f32.mrb[0].mxu0
        %794 = vmatprep.mubr.f32.mxu0 0.0
        %795 = vmatmul.mubr.f32.gmra.mrb[0].mxu0 %v582
        %v796 = vpop.f32.mrb[0].mxu0
        %v797 = vadd.f32 0.0, %v796
        %v798 = vpop.f32.mrb[0].mxu0
        %799 = vmatprep.mubr.f32.mxu0 0.0
        %800 = vmatmul.mubr.f32.gmra.mrb[0].mxu0 %v584
        %v801 = vpop.f32.mrb[0].mxu0
        %v802 = vadd.f32 0.0, %v801
        %v803 = vpop.f32.mrb[0].mxu0
        %804 = vmatprep.mubr.f32.mxu0 0.0
        %805 = vmatmul.mubr.f32.gmra.mrb[0].mxu0 %v586
        %v806 = vpop.f32.mrb[0].mxu0
        %v807 = vadd.f32 0.0, %v806
        %v808 = vpop.f32.mrb[0].mxu0
        %809 = vmatprep.mubr.f32.mxu0 0.0
        %810 = vmatmul.mubr.f32.gmra.mrb[0].mxu0 %v588
        %v811 = vpop.f32.mrb[0].mxu0
        %v812 = vadd.f32 0.0, %v811
        %v813 = vpop.f32.mrb[0].mxu0
        %814 = vdwg.mxu0
        %v815 = vsel %vm222, %v343, 0
        %v817 = vsel %vm222, %v344, 0
        %v819 = vsel %vm222, %v346, 0
        %v821 = vsel %vm222, %v347, 0
        %v823 = vsel %vm222, %v349, 0
        %v825 = vsel %vm222, %v350, 0
        %v827 = vsel %vm222, %v352, 0
        %v829 = vsel %vm222, %v353, 0
        %v831 = vsel %vm222, %v355, 0
        %v833 = vsel %vm222, %v356, 0
        %v835 = vsel %vm222, %v358, 0
        %v837 = vsel %vm222, %v359, 0
        %v839 = vsel %vm222, %v361, 0
        %v841 = vsel %vm222, %v362, 0
        %v843 = vsel %vm222, %v364, 0
        %v845 = vsel %vm222, %v365, 0
        %v847 = vsel %vm222, %v367, 0
        %v849 = vsel %vm222, %v368, 0
        %v851 = vsel %vm222, %v370, 0
        %v853 = vsel %vm222, %v371, 0
        %v855 = vsel %vm222, %v373, 0
        %v857 = vsel %vm222, %v374, 0
        %v859 = vsel %vm222, %v376, 0
        %v861 = vsel %vm222, %v377, 0
        %v863 = vsel %vm222, %v379, 0
        %v865 = vsel %vm222, %v380, 0
        %v867 = vsel %vm222, %v382, 0
        %v869 = vsel %vm222, %v383, 0
        %v871 = vsel %vm222, %v385, 0
        %v873 = vsel %vm222, %v386, 0
        %v875 = vsel %vm222, %v388, 0
        %v877 = vsel %vm222, %v389, 0
        %879 = vmatprep.subr.mxu0 0.0
        %880 = vmatpush1.msra.mxu0 %v204
        %881 = vmatprep.subr.mxu0 0.0
        %882 = vmatpush1.msra.mxu0 %v205
        %883 = vmatprep.subr.mxu0 0.0
        %884 = vmatpush1.msra.mxu0 0.0
        %885 = vmatprep.subr.mxu0 0.0
        %886 = vmatpush1.msra.mxu0 0.0
        %887 = vmatprep.subr.mxu0 0.0
        %888 = vmatpush1.msra.mxu0 0.0
        %889 = vmatprep.subr.mxu0 0.0
        %890 = vmatpush1.msra.mxu0 0.0
        %891 = vmatprep.subr.mxu0 0.0
        %892 = vmatpush1.msra.mxu0 0.0
        %893 = vmatprep.subr.mxu0 0.0
        %894 = vmatpush1.msra.mxu0 0.0
        %895 = vmatprep.subr.mxu0 0.0
        %896 = vmatpush1.msra.mxu0 0.0
        %897 = vmatprep.subr.mxu0 0.0
        %898 = vmatpush1.msra.mxu0 0.0
        %899 = vmatprep.subr.mxu0 0.0
        %900 = vmatpush1.msra.mxu0 0.0
        %901 = vmatprep.subr.mxu0 0.0
        %902 = vmatpush1.msra.mxu0 0.0
        %903 = vmatprep.subr.mxu0 0.0
        %904 = vmatpush1.msra.mxu0 0.0
        %905 = vmatprep.subr.mxu0 0.0
        %906 = vmatpush1.msra.mxu0 0.0
        %907 = vmatprep.subr.mxu0 0.0
        %908 = vmatpush1.msra.mxu0 0.0
        %909 = vmatprep.subr.mxu0 0.0
        %910 = vmatpush1.msra.mxu0 0.0
        %911 = vmatprep.subr.mxu0 0.0
        %912 = vmatpush1.msra.mxu0 0.0
        %913 = vmatprep.subr.mxu0 0.0
        %914 = vmatpush1.msra.mxu0 0.0
        %915 = vmatprep.subr.mxu0 0.0
        %916 = vmatpush1.msra.mxu0 0.0
        %917 = vmatprep.subr.mxu0 0.0
        %918 = vmatpush1.msra.mxu0 0.0
        %919 = vmatprep.subr.mxu0 0.0
        %920 = vmatpush1.msra.mxu0 0.0
        %921 = vmatprep.subr.mxu0 0.0
        %922 = vmatpush1.msra.mxu0 0.0
        %923 = vmatprep.subr.mxu0 0.0
        %924 = vmatpush1.msra.mxu0 0.0
        %925 = vmatprep.subr.mxu0 0.0
        %926 = vmatpush1.msra.mxu0 0.0
        %927 = vmatprep.subr.mxu0 0.0
        %928 = vmatpush1.msra.mxu0 0.0
        %929 = vmatprep.subr.mxu0 0.0
        %930 = vmatpush1.msra.mxu0 0.0
        %931 = vmatprep.subr.mxu0 0.0
        %932 = vmatpush1.msra.mxu0 0.0
        %933 = vmatprep.subr.mxu0 0.0
        %934 = vmatpush1.msra.mxu0 0.0
        %935 = vmatprep.subr.mxu0 0.0
        %936 = vmatpush1.msra.mxu0 0.0
        %937 = vmatprep.subr.mxu0 0.0
        %938 = vmatpush1.msra.mxu0 0.0
        %939 = vmatprep.subr.mxu0 0.0
        %940 = vmatpush1.msra.mxu0 0.0
        %941 = vmatprep.subr.mxu0 0.0
        %942 = vmatpush1.msra.mxu0 0.0
        %943 = vmatprep.mubr.f32.mxu0 0.0
        %944 = vmatmul.mubr.f32.gmra.mrb[0].mxu0 %v815
        %v945 = vpop.f32.mrb[0].mxu0
        %v946 = vadd.f32 %v657, %v945
        %v947 = vpop.f32.mrb[0].mxu0
        %948 = vmatprep.mubr.f32.mxu0 0.0
        %949 = vmatmul.mubr.f32.gmra.mrb[0].mxu0 %v817
        %v950 = vpop.f32.mrb[0].mxu0
        %v951 = vadd.f32 %v662, %v950
        %v952 = vpop.f32.mrb[0].mxu0
        %953 = vmatprep.mubr.f32.mxu0 0.0
        %954 = vmatmul.mubr.f32.gmra.mrb[0].mxu0 %v819
        %v955 = vpop.f32.mrb[0].mxu0
        %v956 = vadd.f32 %v667, %v955
        %v957 = vpop.f32.mrb[0].mxu0
        %958 = vmatprep.mubr.f32.mxu0 0.0
        %959 = vmatmul.mubr.f32.gmra.mrb[0].mxu0 %v821
        %v960 = vpop.f32.mrb[0].mxu0
        %v961 = vadd.f32 %v672, %v960
        %v962 = vpop.f32.mrb[0].mxu0
        %963 = vmatprep.mubr.f32.mxu0 0.0
        %964 = vmatmul.mubr.f32.gmra.mrb[0].mxu0 %v823
        %v965 = vpop.f32.mrb[0].mxu0
        %v966 = vadd.f32 %v677, %v965
        %v967 = vpop.f32.mrb[0].mxu0
        %968 = vmatprep.mubr.f32.mxu0 0.0
        %969 = vmatmul.mubr.f32.gmra.mrb[0].mxu0 %v825
        %v970 = vpop.f32.mrb[0].mxu0
        %v971 = vadd.f32 %v682, %v970
        %v972 = vpop.f32.mrb[0].mxu0
        %973 = vmatprep.mubr.f32.mxu0 0.0
        %974 = vmatmul.mubr.f32.gmra.mrb[0].mxu0 %v827
        %v975 = vpop.f32.mrb[0].mxu0
        %v976 = vadd.f32 %v687, %v975
        %v977 = vpop.f32.mrb[0].mxu0
        %978 = vmatprep.mubr.f32.mxu0 0.0
        %979 = vmatmul.mubr.f32.gmra.mrb[0].mxu0 %v829
        %v980 = vpop.f32.mrb[0].mxu0
        %v981 = vadd.f32 %v692, %v980
        %v982 = vpop.f32.mrb[0].mxu0
        %983 = vmatprep.mubr.f32.mxu0 0.0
        %984 = vmatmul.mubr.f32.gmra.mrb[0].mxu0 %v831
        %v985 = vpop.f32.mrb[0].mxu0
        %v986 = vadd.f32 %v697, %v985
        %v987 = vpop.f32.mrb[0].mxu0
        %988 = vmatprep.mubr.f32.mxu0 0.0
        %989 = vmatmul.mubr.f32.gmra.mrb[0].mxu0 %v833
        %v990 = vpop.f32.mrb[0].mxu0
        %v991 = vadd.f32 %v702, %v990
        %v992 = vpop.f32.mrb[0].mxu0
        %993 = vmatprep.mubr.f32.mxu0 0.0
        %994 = vmatmul.mubr.f32.gmra.mrb[0].mxu0 %v835
        %v995 = vpop.f32.mrb[0].mxu0
        %v996 = vadd.f32 %v707, %v995
        %v997 = vpop.f32.mrb[0].mxu0
        %998 = vmatprep.mubr.f32.mxu0 0.0
        %999 = vmatmul.mubr.f32.gmra.mrb[0].mxu0 %v837
        %v1000 = vpop.f32.mrb[0].mxu0
        %v1001 = vadd.f32 %v712, %v1000
        %v1002 = vpop.f32.mrb[0].mxu0
        %1003 = vmatprep.mubr.f32.mxu0 0.0
        %1004 = vmatmul.mubr.f32.gmra.mrb[0].mxu0 %v839
        %v1005 = vpop.f32.mrb[0].mxu0
        %v1006 = vadd.f32 %v717, %v1005
        %v1007 = vpop.f32.mrb[0].mxu0
        %1008 = vmatprep.mubr.f32.mxu0 0.0
        %1009 = vmatmul.mubr.f32.gmra.mrb[0].mxu0 %v841
        %v1010 = vpop.f32.mrb[0].mxu0
        %v1011 = vadd.f32 %v722, %v1010
        %v1012 = vpop.f32.mrb[0].mxu0
        %1013 = vmatprep.mubr.f32.mxu0 0.0
        %1014 = vmatmul.mubr.f32.gmra.mrb[0].mxu0 %v843
        %v1015 = vpop.f32.mrb[0].mxu0
        %v1016 = vadd.f32 %v727, %v1015
        %v1017 = vpop.f32.mrb[0].mxu0
        %1018 = vmatprep.mubr.f32.mxu0 0.0
        %1019 = vmatmul.mubr.f32.gmra.mrb[0].mxu0 %v845
        %v1020 = vpop.f32.mrb[0].mxu0
        %v1021 = vadd.f32 %v732, %v1020
        %v1022 = vpop.f32.mrb[0].mxu0
        %1023 = vmatprep.mubr.f32.mxu0 0.0
        %1024 = vmatmul.mubr.f32.gmra.mrb[0].mxu0 %v847
        %v1025 = vpop.f32.mrb[0].mxu0
        %v1026 = vadd.f32 %v737, %v1025
        %v1027 = vpop.f32.mrb[0].mxu0
        %1028 = vmatprep.mubr.f32.mxu0 0.0
        %1029 = vmatmul.mubr.f32.gmra.mrb[0].mxu0 %v849
        %v1030 = vpop.f32.mrb[0].mxu0
        %v1031 = vadd.f32 %v742, %v1030
        %v1032 = vpop.f32.mrb[0].mxu0
        %1033 = vmatprep.mubr.f32.mxu0 0.0
        %1034 = vmatmul.mubr.f32.gmra.mrb[0].mxu0 %v851
        %v1035 = vpop.f32.mrb[0].mxu0
        %v1036 = vadd.f32 %v747, %v1035
        %v1037 = vpop.f32.mrb[0].mxu0
        %1038 = vmatprep.mubr.f32.mxu0 0.0
        %1039 = vmatmul.mubr.f32.gmra.mrb[0].mxu0 %v853
        %v1040 = vpop.f32.mrb[0].mxu0
        %v1041 = vadd.f32 %v752, %v1040
        %v1042 = vpop.f32.mrb[0].mxu0
        %1043 = vmatprep.mubr.f32.mxu0 0.0
        %1044 = vmatmul.mubr.f32.gmra.mrb[0].mxu0 %v855
        %v1045 = vpop.f32.mrb[0].mxu0
        %v1046 = vadd.f32 %v757, %v1045
        %v1047 = vpop.f32.mrb[0].mxu0
        %1048 = vmatprep.mubr.f32.mxu0 0.0
        %1049 = vmatmul.mubr.f32.gmra.mrb[0].mxu0 %v857
        %v1050 = vpop.f32.mrb[0].mxu0
        %v1051 = vadd.f32 %v762, %v1050
        %v1052 = vpop.f32.mrb[0].mxu0
        %1053 = vmatprep.mubr.f32.mxu0 0.0
        %1054 = vmatmul.mubr.f32.gmra.mrb[0].mxu0 %v859
        %v1055 = vpop.f32.mrb[0].mxu0
        %v1056 = vadd.f32 %v767, %v1055
        %v1057 = vpop.f32.mrb[0].mxu0
        %1058 = vmatprep.mubr.f32.mxu0 0.0
        %1059 = vmatmul.mubr.f32.gmra.mrb[0].mxu0 %v861
        %v1060 = vpop.f32.mrb[0].mxu0
        %v1061 = vadd.f32 %v772, %v1060
        %v1062 = vpop.f32.mrb[0].mxu0
        %1063 = vmatprep.mubr.f32.mxu0 0.0
        %1064 = vmatmul.mubr.f32.gmra.mrb[0].mxu0 %v863
        %v1065 = vpop.f32.mrb[0].mxu0
        %v1066 = vadd.f32 %v777, %v1065
        %v1067 = vpop.f32.mrb[0].mxu0
        %1068 = vmatprep.mubr.f32.mxu0 0.0
        %1069 = vmatmul.mubr.f32.gmra.mrb[0].mxu0 %v865
        %v1070 = vpop.f32.mrb[0].mxu0
        %v1071 = vadd.f32 %v782, %v1070
        %v1072 = vpop.f32.mrb[0].mxu0
        %1073 = vmatprep.mubr.f32.mxu0 0.0
        %1074 = vmatmul.mubr.f32.gmra.mrb[0].mxu0 %v867
        %v1075 = vpop.f32.mrb[0].mxu0
        %v1076 = vadd.f32 %v787, %v1075
        %v1077 = vpop.f32.mrb[0].mxu0
        %1078 = vmatprep.mubr.f32.mxu0 0.0
        %1079 = vmatmul.mubr.f32.gmra.mrb[0].mxu0 %v869
        %v1080 = vpop.f32.mrb[0].mxu0
        %v1081 = vadd.f32 %v792, %v1080
        %v1082 = vpop.f32.mrb[0].mxu0
        %1083 = vmatprep.mubr.f32.mxu0 0.0
        %1084 = vmatmul.mubr.f32.gmra.mrb[0].mxu0 %v871
        %v1085 = vpop.f32.mrb[0].mxu0
        %v1086 = vadd.f32 %v797, %v1085
        %v1087 = vpop.f32.mrb[0].mxu0
        %1088 = vmatprep.mubr.f32.mxu0 0.0
        %1089 = vmatmul.mubr.f32.gmra.mrb[0].mxu0 %v873
        %v1090 = vpop.f32.mrb[0].mxu0
        %v1091 = vadd.f32 %v802, %v1090
        %v1092 = vpop.f32.mrb[0].mxu0
        %1093 = vmatprep.mubr.f32.mxu0 0.0
        %1094 = vmatmul.mubr.f32.gmra.mrb[0].mxu0 %v875
        %v1095 = vpop.f32.mrb[0].mxu0
        %v1096 = vadd.f32 %v807, %v1095
        %v1097 = vpop.f32.mrb[0].mxu0
        %1098 = vmatprep.mubr.f32.mxu0 0.0
        %1099 = vmatmul.mubr.f32.gmra.mrb[0].mxu0 %v877
        %v1100 = vpop.f32.mrb[0].mxu0
        %v1101 = vadd.f32 %v812, %v1100
        %v1102 = vpop.f32.mrb[0].mxu0
        %1103 = vdwg.mxu0
        %vm1104 = vcmask 1045504
        %v1105 = vrot.slane %v343, 2
        %v1106 = vrot.slane %v344, 2
        %v1107 = vsel %vm1104, %v1105, %v1106
        %v1108 = vrot.slane %v345, 2
        %v1109 = vsel %vm1104, %v1106, %v1108
        %v1110 = vrot.slane %v346, 2
        %v1111 = vrot.slane %v347, 2
        %v1112 = vsel %vm1104, %v1110, %v1111
        %v1113 = vrot.slane %v348, 2
        %v1114 = vsel %vm1104, %v1111, %v1113
        %v1115 = vrot.slane %v349, 2
        %v1116 = vrot.slane %v350, 2
        %v1117 = vsel %vm1104, %v1115, %v1116
        %v1118 = vrot.slane %v351, 2
        %v1119 = vsel %vm1104, %v1116, %v1118
        %v1120 = vrot.slane %v352, 2
        %v1121 = vrot.slane %v353, 2
        %v1122 = vsel %vm1104, %v1120, %v1121
        %v1123 = vrot.slane %v354, 2
        %v1124 = vsel %vm1104, %v1121, %v1123
        %v1125 = vrot.slane %v355, 2
        %v1126 = vrot.slane %v356, 2
        %v1127 = vsel %vm1104, %v1125, %v1126
        %v1128 = vrot.slane %v357, 2
        %v1129 = vsel %vm1104, %v1126, %v1128
        %v1130 = vrot.slane %v358, 2
        %v1131 = vrot.slane %v359, 2
        %v1132 = vsel %vm1104, %v1130, %v1131
        %v1133 = vrot.slane %v360, 2
        %v1134 = vsel %vm1104, %v1131, %v1133
        %v1135 = vrot.slane %v361, 2
        %v1136 = vrot.slane %v362, 2
        %v1137 = vsel %vm1104, %v1135, %v1136
        %v1138 = vrot.slane %v363, 2
        %v1139 = vsel %vm1104, %v1136, %v1138
        %v1140 = vrot.slane %v364, 2
        %v1141 = vrot.slane %v365, 2
        %v1142 = vsel %vm1104, %v1140, %v1141
        %v1143 = vrot.slane %v366, 2
        %v1144 = vsel %vm1104, %v1141, %v1143
        %v1145 = vrot.slane %v367, 2
        %v1146 = vrot.slane %v368, 2
        %v1147 = vsel %vm1104, %v1145, %v1146
        %v1148 = vrot.slane %v369, 2
        %v1149 = vsel %vm1104, %v1146, %v1148
        %v1150 = vrot.slane %v370, 2
        %v1151 = vrot.slane %v371, 2
        %v1152 = vsel %vm1104, %v1150, %v1151
        %v1153 = vrot.slane %v372, 2
        %v1154 = vsel %vm1104, %v1151, %v1153
        %v1155 = vrot.slane %v373, 2
        %v1156 = vrot.slane %v374, 2
        %v1157 = vsel %vm1104, %v1155, %v1156
        %v1158 = vrot.slane %v375, 2
        %v1159 = vsel %vm1104, %v1156, %v1158
        %v1160 = vrot.slane %v376, 2
        %v1161 = vrot.slane %v377, 2
        %v1162 = vsel %vm1104, %v1160, %v1161
        %v1163 = vrot.slane %v378, 2
        %v1164 = vsel %vm1104, %v1161, %v1163
        %v1165 = vrot.slane %v379, 2
        %v1166 = vrot.slane %v380, 2
        %v1167 = vsel %vm1104, %v1165, %v1166
        %v1168 = vrot.slane %v381, 2
        %v1169 = vsel %vm1104, %v1166, %v1168
        %v1170 = vrot.slane %v382, 2
        %v1171 = vrot.slane %v383, 2
        %v1172 = vsel %vm1104, %v1170, %v1171
        %v1173 = vrot.slane %v384, 2
        %v1174 = vsel %vm1104, %v1171, %v1173
        %v1175 = vrot.slane %v385, 2
        %v1176 = vrot.slane %v386, 2
        %v1177 = vsel %vm1104, %v1175, %v1176
        %v1178 = vrot.slane %v387, 2
        %v1179 = vsel %vm1104, %v1176, %v1178
        %v1180 = vrot.slane %v388, 2
        %v1181 = vrot.slane %v389, 2
        %v1182 = vsel %vm1104, %v1180, %v1181
        %v1183 = vrot.slane %v390, 2
        %v1184 = vsel %vm1104, %v1181, %v1183
        %v1185 = vsel %vm222, %v1107, 0
        %v1187 = vsel %vm222, %v1109, 0
        %v1189 = vsel %vm222, %v1112, 0
        %v1191 = vsel %vm222, %v1114, 0
        %v1193 = vsel %vm222, %v1117, 0
        %v1195 = vsel %vm222, %v1119, 0
        %v1197 = vsel %vm222, %v1122, 0
        %v1199 = vsel %vm222, %v1124, 0
        %v1201 = vsel %vm222, %v1127, 0
        %v1203 = vsel %vm222, %v1129, 0
        %v1205 = vsel %vm222, %v1132, 0
        %v1207 = vsel %vm222, %v1134, 0
        %v1209 = vsel %vm222, %v1137, 0
        %v1211 = vsel %vm222, %v1139, 0
        %v1213 = vsel %vm222, %v1142, 0
        %v1215 = vsel %vm222, %v1144, 0
        %v1217 = vsel %vm222, %v1147, 0
        %v1219 = vsel %vm222, %v1149, 0
        %v1221 = vsel %vm222, %v1152, 0
        %v1223 = vsel %vm222, %v1154, 0
        %v1225 = vsel %vm222, %v1157, 0
        %v1227 = vsel %vm222, %v1159, 0
        %v1229 = vsel %vm222, %v1162, 0
        %v1231 = vsel %vm222, %v1164, 0
        %v1233 = vsel %vm222, %v1167, 0
        %v1235 = vsel %vm222, %v1169, 0
        %v1237 = vsel %vm222, %v1172, 0
        %v1239 = vsel %vm222, %v1174, 0
        %v1241 = vsel %vm222, %v1177, 0
        %v1243 = vsel %vm222, %v1179, 0
        %v1245 = vsel %vm222, %v1182, 0
        %v1247 = vsel %vm222, %v1184, 0
        %1249 = vmatprep.subr.mxu0 0.0
        %1250 = vmatpush1.msra.mxu0 %v208
        %1251 = vmatprep.subr.mxu0 0.0
        %1252 = vmatpush1.msra.mxu0 %v209
        %1253 = vmatprep.subr.mxu0 0.0
        %1254 = vmatpush1.msra.mxu0 0.0
        %1255 = vmatprep.subr.mxu0 0.0
        %1256 = vmatpush1.msra.mxu0 0.0
        %1257 = vmatprep.subr.mxu0 0.0
        %1258 = vmatpush1.msra.mxu0 0.0
        %1259 = vmatprep.subr.mxu0 0.0
        %1260 = vmatpush1.msra.mxu0 0.0
        %1261 = vmatprep.subr.mxu0 0.0
        %1262 = vmatpush1.msra.mxu0 0.0
        %1263 = vmatprep.subr.mxu0 0.0
        %1264 = vmatpush1.msra.mxu0 0.0
        %1265 = vmatprep.subr.mxu0 0.0
        %1266 = vmatpush1.msra.mxu0 0.0
        %1267 = vmatprep.subr.mxu0 0.0
        %1268 = vmatpush1.msra.mxu0 0.0
        %1269 = vmatprep.subr.mxu0 0.0
        %1270 = vmatpush1.msra.mxu0 0.0
        %1271 = vmatprep.subr.mxu0 0.0
        %1272 = vmatpush1.msra.mxu0 0.0
        %1273 = vmatprep.subr.mxu0 0.0
        %1274 = vmatpush1.msra.mxu0 0.0
        %1275 = vmatprep.subr.mxu0 0.0
        %1276 = vmatpush1.msra.mxu0 0.0
        %1277 = vmatprep.subr.mxu0 0.0
        %1278 = vmatpush1.msra.mxu0 0.0
        %1279 = vmatprep.subr.mxu0 0.0
        %1280 = vmatpush1.msra.mxu0 0.0
        %1281 = vmatprep.subr.mxu0 0.0
        %1282 = vmatpush1.msra.mxu0 0.0
        %1283 = vmatprep.subr.mxu0 0.0
        %1284 = vmatpush1.msra.mxu0 0.0
        %1285 = vmatprep.subr.mxu0 0.0
        %1286 = vmatpush1.msra.mxu0 0.0
        %1287 = vmatprep.subr.mxu0 0.0
        %1288 = vmatpush1.msra.mxu0 0.0
        %1289 = vmatprep.subr.mxu0 0.0
        %1290 = vmatpush1.msra.mxu0 0.0
        %1291 = vmatprep.subr.mxu0 0.0
        %1292 = vmatpush1.msra.mxu0 0.0
        %1293 = vmatprep.subr.mxu0 0.0
        %1294 = vmatpush1.msra.mxu0 0.0
        %1295 = vmatprep.subr.mxu0 0.0
        %1296 = vmatpush1.msra.mxu0 0.0
        %1297 = vmatprep.subr.mxu0 0.0
        %1298 = vmatpush1.msra.mxu0 0.0
        %1299 = vmatprep.subr.mxu0 0.0
        %1300 = vmatpush1.msra.mxu0 0.0
        %1301 = vmatprep.subr.mxu0 0.0
        %1302 = vmatpush1.msra.mxu0 0.0
        %1303 = vmatprep.subr.mxu0 0.0
        %1304 = vmatpush1.msra.mxu0 0.0
        %1305 = vmatprep.subr.mxu0 0.0
        %1306 = vmatpush1.msra.mxu0 0.0
        %1307 = vmatprep.subr.mxu0 0.0
        %1308 = vmatpush1.msra.mxu0 0.0
        %1309 = vmatprep.subr.mxu0 0.0
        %1310 = vmatpush1.msra.mxu0 0.0
        %1311 = vmatprep.subr.mxu0 0.0
        %1312 = vmatpush1.msra.mxu0 0.0
        %1313 = vmatprep.mubr.f32.mxu0 0.0
        %1314 = vmatmul.mubr.f32.gmra.mrb[0].mxu0 %v1185
        %v1315 = vpop.f32.mrb[0].mxu0
        %v1316 = vadd.f32 0.0, %v1315
        %v1317 = vpop.f32.mrb[0].mxu0
        %1318 = vmatprep.mubr.f32.mxu0 0.0
        %1319 = vmatmul.mubr.f32.gmra.mrb[0].mxu0 %v1187
        %v1320 = vpop.f32.mrb[0].mxu0
        %v1321 = vadd.f32 0.0, %v1320
        %v1322 = vpop.f32.mrb[0].mxu0
        %1323 = vmatprep.mubr.f32.mxu0 0.0
        %1324 = vmatmul.mubr.f32.gmra.mrb[0].mxu0 %v1189
        %v1325 = vpop.f32.mrb[0].mxu0
        %v1326 = vadd.f32 0.0, %v1325
        %v1327 = vpop.f32.mrb[0].mxu0
        %1328 = vmatprep.mubr.f32.mxu0 0.0
        %1329 = vmatmul.mubr.f32.gmra.mrb[0].mxu0 %v1191
        %v1330 = vpop.f32.mrb[0].mxu0
        %v1331 = vadd.f32 0.0, %v1330
        %v1332 = vpop.f32.mrb[0].mxu0
        %1333 = vmatprep.mubr.f32.mxu0 0.0
        %1334 = vmatmul.mubr.f32.gmra.mrb[0].mxu0 %v1193
        %v1335 = vpop.f32.mrb[0].mxu0
        %v1336 = vadd.f32 0.0, %v1335
        %v1337 = vpop.f32.mrb[0].mxu0
        %1338 = vmatprep.mubr.f32.mxu0 0.0
        %1339 = vmatmul.mubr.f32.gmra.mrb[0].mxu0 %v1195
        %v1340 = vpop.f32.mrb[0].mxu0
        %v1341 = vadd.f32 0.0, %v1340
        %v1342 = vpop.f32.mrb[0].mxu0
        %1343 = vmatprep.mubr.f32.mxu0 0.0
        %1344 = vmatmul.mubr.f32.gmra.mrb[0].mxu0 %v1197
        %v1345 = vpop.f32.mrb[0].mxu0
        %v1346 = vadd.f32 0.0, %v1345
        %v1347 = vpop.f32.mrb[0].mxu0
        %1348 = vmatprep.mubr.f32.mxu0 0.0
        %1349 = vmatmul.mubr.f32.gmra.mrb[0].mxu0 %v1199
        %v1350 = vpop.f32.mrb[0].mxu0
        %v1351 = vadd.f32 0.0, %v1350
        %v1352 = vpop.f32.mrb[0].mxu0
        %1353 = vmatprep.mubr.f32.mxu0 0.0
        %1354 = vmatmul.mubr.f32.gmra.mrb[0].mxu0 %v1201
        %v1355 = vpop.f32.mrb[0].mxu0
        %v1356 = vadd.f32 0.0, %v1355
        %v1357 = vpop.f32.mrb[0].mxu0
        %1358 = vmatprep.mubr.f32.mxu0 0.0
        %1359 = vmatmul.mubr.f32.gmra.mrb[0].mxu0 %v1203
        %v1360 = vpop.f32.mrb[0].mxu0
        %v1361 = vadd.f32 0.0, %v1360
        %v1362 = vpop.f32.mrb[0].mxu0
        %1363 = vmatprep.mubr.f32.mxu0 0.0
        %1364 = vmatmul.mubr.f32.gmra.mrb[0].mxu0 %v1205
        %v1365 = vpop.f32.mrb[0].mxu0
        %v1366 = vadd.f32 0.0, %v1365
        %v1367 = vpop.f32.mrb[0].mxu0
        %1368 = vmatprep.mubr.f32.mxu0 0.0
        %1369 = vmatmul.mubr.f32.gmra.mrb[0].mxu0 %v1207
        %v1370 = vpop.f32.mrb[0].mxu0
        %v1371 = vadd.f32 0.0, %v1370
        %v1372 = vpop.f32.mrb[0].mxu0
        %1373 = vmatprep.mubr.f32.mxu0 0.0
        %1374 = vmatmul.mubr.f32.gmra.mrb[0].mxu0 %v1209
        %v1375 = vpop.f32.mrb[0].mxu0
        %v1376 = vadd.f32 0.0, %v1375
        %v1377 = vpop.f32.mrb[0].mxu0
        %1378 = vmatprep.mubr.f32.mxu0 0.0
        %1379 = vmatmul.mubr.f32.gmra.mrb[0].mxu0 %v1211
        %v1380 = vpop.f32.mrb[0].mxu0
        %v1381 = vadd.f32 0.0, %v1380
        %v1382 = vpop.f32.mrb[0].mxu0
        %1383 = vmatprep.mubr.f32.mxu0 0.0
        %1384 = vmatmul.mubr.f32.gmra.mrb[0].mxu0 %v1213
        %v1385 = vpop.f32.mrb[0].mxu0
        %v1386 = vadd.f32 0.0, %v1385
        %v1387 = vpop.f32.mrb[0].mxu0
        %1388 = vmatprep.mubr.f32.mxu0 0.0
        %1389 = vmatmul.mubr.f32.gmra.mrb[0].mxu0 %v1215
        %v1390 = vpop.f32.mrb[0].mxu0
        %v1391 = vadd.f32 0.0, %v1390
        %v1392 = vpop.f32.mrb[0].mxu0
        %1393 = vmatprep.mubr.f32.mxu0 0.0
        %1394 = vmatmul.mubr.f32.gmra.mrb[0].mxu0 %v1217
        %v1395 = vpop.f32.mrb[0].mxu0
        %v1396 = vadd.f32 0.0, %v1395
        %v1397 = vpop.f32.mrb[0].mxu0
        %1398 = vmatprep.mubr.f32.mxu0 0.0
        %1399 = vmatmul.mubr.f32.gmra.mrb[0].mxu0 %v1219
        %v1400 = vpop.f32.mrb[0].mxu0
        %v1401 = vadd.f32 0.0, %v1400
        %v1402 = vpop.f32.mrb[0].mxu0
        %1403 = vmatprep.mubr.f32.mxu0 0.0
        %1404 = vmatmul.mubr.f32.gmra.mrb[0].mxu0 %v1221
        %v1405 = vpop.f32.mrb[0].mxu0
        %v1406 = vadd.f32 0.0, %v1405
        %v1407 = vpop.f32.mrb[0].mxu0
        %1408 = vmatprep.mubr.f32.mxu0 0.0
        %1409 = vmatmul.mubr.f32.gmra.mrb[0].mxu0 %v1223
        %v1410 = vpop.f32.mrb[0].mxu0
        %v1411 = vadd.f32 0.0, %v1410
        %v1412 = vpop.f32.mrb[0].mxu0
        %1413 = vmatprep.mubr.f32.mxu0 0.0
        %1414 = vmatmul.mubr.f32.gmra.mrb[0].mxu0 %v1225
        %v1415 = vpop.f32.mrb[0].mxu0
        %v1416 = vadd.f32 0.0, %v1415
        %v1417 = vpop.f32.mrb[0].mxu0
        %1418 = vmatprep.mubr.f32.mxu0 0.0
        %1419 = vmatmul.mubr.f32.gmra.mrb[0].mxu0 %v1227
        %v1420 = vpop.f32.mrb[0].mxu0
        %v1421 = vadd.f32 0.0, %v1420
        %v1422 = vpop.f32.mrb[0].mxu0
        %1423 = vmatprep.mubr.f32.mxu0 0.0
        %1424 = vmatmul.mubr.f32.gmra.mrb[0].mxu0 %v1229
        %v1425 = vpop.f32.mrb[0].mxu0
        %v1426 = vadd.f32 0.0, %v1425
        %v1427 = vpop.f32.mrb[0].mxu0
        %1428 = vmatprep.mubr.f32.mxu0 0.0
        %1429 = vmatmul.mubr.f32.gmra.mrb[0].mxu0 %v1231
        %v1430 = vpop.f32.mrb[0].mxu0
        %v1431 = vadd.f32 0.0, %v1430
        %v1432 = vpop.f32.mrb[0].mxu0
        %1433 = vmatprep.mubr.f32.mxu0 0.0
        %1434 = vmatmul.mubr.f32.gmra.mrb[0].mxu0 %v1233
        %v1435 = vpop.f32.mrb[0].mxu0
        %v1436 = vadd.f32 0.0, %v1435
        %v1437 = vpop.f32.mrb[0].mxu0
        %1438 = vmatprep.mubr.f32.mxu0 0.0
        %1439 = vmatmul.mubr.f32.gmra.mrb[0].mxu0 %v1235
        %v1440 = vpop.f32.mrb[0].mxu0
        %v1441 = vadd.f32 0.0, %v1440
        %v1442 = vpop.f32.mrb[0].mxu0
        %1443 = vmatprep.mubr.f32.mxu0 0.0
        %1444 = vmatmul.mubr.f32.gmra.mrb[0].mxu0 %v1237
        %v1445 = vpop.f32.mrb[0].mxu0
        %v1446 = vadd.f32 0.0, %v1445
        %v1447 = vpop.f32.mrb[0].mxu0
        %1448 = vmatprep.mubr.f32.mxu0 0.0
        %1449 = vmatmul.mubr.f32.gmra.mrb[0].mxu0 %v1239
        %v1450 = vpop.f32.mrb[0].mxu0
        %v1451 = vadd.f32 0.0, %v1450
        %v1452 = vpop.f32.mrb[0].mxu0
        %1453 = vmatprep.mubr.f32.mxu0 0.0
        %1454 = vmatmul.mubr.f32.gmra.mrb[0].mxu0 %v1241
        %v1455 = vpop.f32.mrb[0].mxu0
        %v1456 = vadd.f32 0.0, %v1455
        %v1457 = vpop.f32.mrb[0].mxu0
        %1458 = vmatprep.mubr.f32.mxu0 0.0
        %1459 = vmatmul.mubr.f32.gmra.mrb[0].mxu0 %v1243
        %v1460 = vpop.f32.mrb[0].mxu0
        %v1461 = vadd.f32 0.0, %v1460
        %v1462 = vpop.f32.mrb[0].mxu0
        %1463 = vmatprep.mubr.f32.mxu0 0.0
        %1464 = vmatmul.mubr.f32.gmra.mrb[0].mxu0 %v1245
        %v1465 = vpop.f32.mrb[0].mxu0
        %v1466 = vadd.f32 0.0, %v1465
        %v1467 = vpop.f32.mrb[0].mxu0
        %1468 = vmatprep.mubr.f32.mxu0 0.0
        %1469 = vmatmul.mubr.f32.gmra.mrb[0].mxu0 %v1247
        %v1470 = vpop.f32.mrb[0].mxu0
        %v1471 = vadd.f32 0.0, %v1470
        %v1472 = vpop.f32.mrb[0].mxu0
        %1473 = vdwg.mxu0
        %v1474 = vadd.f32 %v946, %v1316
        %v1475 = vadd.f32 %v951, %v1321
        %v1476 = vadd.f32 %v956, %v1326
        %v1477 = vadd.f32 %v961, %v1331
        %v1478 = vadd.f32 %v966, %v1336
        %v1479 = vadd.f32 %v971, %v1341
        %v1480 = vadd.f32 %v976, %v1346
        %v1481 = vadd.f32 %v981, %v1351
        %v1482 = vadd.f32 %v986, %v1356
        %v1483 = vadd.f32 %v991, %v1361
        %v1484 = vadd.f32 %v996, %v1366
        %v1485 = vadd.f32 %v1001, %v1371
        %v1486 = vadd.f32 %v1006, %v1376
        %v1487 = vadd.f32 %v1011, %v1381
        %v1488 = vadd.f32 %v1016, %v1386
        %v1489 = vadd.f32 %v1021, %v1391
        %v1490 = vadd.f32 %v1026, %v1396
        %v1491 = vadd.f32 %v1031, %v1401
        %v1492 = vadd.f32 %v1036, %v1406
        %v1493 = vadd.f32 %v1041, %v1411
        %v1494 = vadd.f32 %v1046, %v1416
        %v1495 = vadd.f32 %v1051, %v1421
        %v1496 = vadd.f32 %v1056, %v1426
        %v1497 = vadd.f32 %v1061, %v1431
        %v1498 = vadd.f32 %v1066, %v1436
        %v1499 = vadd.f32 %v1071, %v1441
        %v1500 = vadd.f32 %v1076, %v1446
        %v1501 = vadd.f32 %v1081, %v1451
        %v1502 = vadd.f32 %v1086, %v1456
        %v1503 = vadd.f32 %v1091, %v1461
        %v1504 = vadd.f32 %v1096, %v1466
        %v1505 = vadd.f32 %v1101, %v1471
        %v1507 = vsel %vm222, %v391, 0
        %v1510 = vsel %vm222, %v392, 0
        %1512 = vmatprep.subr.mxu0 0.0
        %1513 = vmatpush1.msra.mxu0 %v210
        %1514 = vmatprep.subr.mxu0 0.0
        %1515 = vmatpush1.msra.mxu0 %v211
        %1516 = vmatprep.subr.mxu0 0.0
        %1517 = vmatpush1.msra.mxu0 0.0
        %1518 = vmatprep.subr.mxu0 0.0
        %1519 = vmatpush1.msra.mxu0 0.0
        %1520 = vmatprep.subr.mxu0 0.0
        %1521 = vmatpush1.msra.mxu0 0.0
        %1522 = vmatprep.subr.mxu0 0.0
        %1523 = vmatpush1.msra.mxu0 0.0
        %1524 = vmatprep.subr.mxu0 0.0
        %1525 = vmatpush1.msra.mxu0 0.0
        %1526 = vmatprep.subr.mxu0 0.0
        %1527 = vmatpush1.msra.mxu0 0.0
        %1528 = vmatprep.subr.mxu0 0.0
        %1529 = vmatpush1.msra.mxu0 0.0
        %1530 = vmatprep.subr.mxu0 0.0
        %1531 = vmatpush1.msra.mxu0 0.0
        %1532 = vmatprep.subr.mxu0 0.0
        %1533 = vmatpush1.msra.mxu0 0.0
        %1534 = vmatprep.subr.mxu0 0.0
        %1535 = vmatpush1.msra.mxu0 0.0
        %1536 = vmatprep.subr.mxu0 0.0
        %1537 = vmatpush1.msra.mxu0 0.0
        %1538 = vmatprep.subr.mxu0 0.0
        %1539 = vmatpush1.msra.mxu0 0.0
        %1540 = vmatprep.subr.mxu0 0.0
        %1541 = vmatpush1.msra.mxu0 0.0
        %1542 = vmatprep.subr.mxu0 0.0
        %1543 = vmatpush1.msra.mxu0 0.0
        %1544 = vmatprep.subr.mxu0 0.0
        %1545 = vmatpush1.msra.mxu0 0.0
        %1546 = vmatprep.subr.mxu0 0.0
        %1547 = vmatpush1.msra.mxu0 0.0
        %1548 = vmatprep.subr.mxu0 0.0
        %1549 = vmatpush1.msra.mxu0 0.0
        %1550 = vmatprep.subr.mxu0 0.0
        %1551 = vmatpush1.msra.mxu0 0.0
        %1552 = vmatprep.subr.mxu0 0.0
        %1553 = vmatpush1.msra.mxu0 0.0
        %1554 = vmatprep.subr.mxu0 0.0
        %1555 = vmatpush1.msra.mxu0 0.0
        %1556 = vmatprep.subr.mxu0 0.0
        %1557 = vmatpush1.msra.mxu0 0.0
        %1558 = vmatprep.subr.mxu0 0.0
        %1559 = vmatpush1.msra.mxu0 0.0
        %1560 = vmatprep.subr.mxu0 0.0
        %1561 = vmatpush1.msra.mxu0 0.0
        %1562 = vmatprep.subr.mxu0 0.0
        %1563 = vmatpush1.msra.mxu0 0.0
        %1564 = vmatprep.subr.mxu0 0.0
        %1565 = vmatpush1.msra.mxu0 0.0
        %1566 = vmatprep.subr.mxu0 0.0
        %1567 = vmatpush1.msra.mxu0 0.0
        %1568 = vmatprep.subr.mxu0 0.0
        %1569 = vmatpush1.msra.mxu0 0.0
        %1570 = vmatprep.subr.mxu0 0.0
        %1571 = vmatpush1.msra.mxu0 0.0
        %1572 = vmatprep.subr.mxu0 0.0
        %1573 = vmatpush1.msra.mxu0 0.0
        %1574 = vmatprep.subr.mxu0 0.0
        %1575 = vmatpush1.msra.mxu0 0.0
        %1576 = vmatprep.mubr.f32.mxu0 0.0
        %1577 = vmatmul.mubr.f32.gmra.mrb[0].mxu0 %v819
        %v1578 = vpop.f32.mrb[0].mxu0
        %v1579 = vadd.f32 0.0, %v1578
        %v1580 = vpop.f32.mrb[0].mxu0
        %1581 = vmatprep.mubr.f32.mxu0 0.0
        %1582 = vmatmul.mubr.f32.gmra.mrb[0].mxu0 %v821
        %v1583 = vpop.f32.mrb[0].mxu0
        %v1584 = vadd.f32 0.0, %v1583
        %v1585 = vpop.f32.mrb[0].mxu0
        %1586 = vmatprep.mubr.f32.mxu0 0.0
        %1587 = vmatmul.mubr.f32.gmra.mrb[0].mxu0 %v823
        %v1588 = vpop.f32.mrb[0].mxu0
        %v1589 = vadd.f32 0.0, %v1588
        %v1590 = vpop.f32.mrb[0].mxu0
        %1591 = vmatprep.mubr.f32.mxu0 0.0
        %1592 = vmatmul.mubr.f32.gmra.mrb[0].mxu0 %v825
        %v1593 = vpop.f32.mrb[0].mxu0
        %v1594 = vadd.f32 0.0, %v1593
        %v1595 = vpop.f32.mrb[0].mxu0
        %1596 = vmatprep.mubr.f32.mxu0 0.0
        %1597 = vmatmul.mubr.f32.gmra.mrb[0].mxu0 %v827
        %v1598 = vpop.f32.mrb[0].mxu0
        %v1599 = vadd.f32 0.0, %v1598
        %v1600 = vpop.f32.mrb[0].mxu0
        %1601 = vmatprep.mubr.f32.mxu0 0.0
        %1602 = vmatmul.mubr.f32.gmra.mrb[0].mxu0 %v829
        %v1603 = vpop.f32.mrb[0].mxu0
        %v1604 = vadd.f32 0.0, %v1603
        %v1605 = vpop.f32.mrb[0].mxu0
        %1606 = vmatprep.mubr.f32.mxu0 0.0
        %1607 = vmatmul.mubr.f32.gmra.mrb[0].mxu0 %v831
        %v1608 = vpop.f32.mrb[0].mxu0
        %v1609 = vadd.f32 0.0, %v1608
        %v1610 = vpop.f32.mrb[0].mxu0
        %1611 = vmatprep.mubr.f32.mxu0 0.0
        %1612 = vmatmul.mubr.f32.gmra.mrb[0].mxu0 %v833
        %v1613 = vpop.f32.mrb[0].mxu0
        %v1614 = vadd.f32 0.0, %v1613
        %v1615 = vpop.f32.mrb[0].mxu0
        %1616 = vmatprep.mubr.f32.mxu0 0.0
        %1617 = vmatmul.mubr.f32.gmra.mrb[0].mxu0 %v835
        %v1618 = vpop.f32.mrb[0].mxu0
        %v1619 = vadd.f32 0.0, %v1618
        %v1620 = vpop.f32.mrb[0].mxu0
        %1621 = vmatprep.mubr.f32.mxu0 0.0
        %1622 = vmatmul.mubr.f32.gmra.mrb[0].mxu0 %v837
        %v1623 = vpop.f32.mrb[0].mxu0
        %v1624 = vadd.f32 0.0, %v1623
        %v1625 = vpop.f32.mrb[0].mxu0
        %1626 = vmatprep.mubr.f32.mxu0 0.0
        %1627 = vmatmul.mubr.f32.gmra.mrb[0].mxu0 %v839
        %v1628 = vpop.f32.mrb[0].mxu0
        %v1629 = vadd.f32 0.0, %v1628
        %v1630 = vpop.f32.mrb[0].mxu0
        %1631 = vmatprep.mubr.f32.mxu0 0.0
        %1632 = vmatmul.mubr.f32.gmra.mrb[0].mxu0 %v841
        %v1633 = vpop.f32.mrb[0].mxu0
        %v1634 = vadd.f32 0.0, %v1633
        %v1635 = vpop.f32.mrb[0].mxu0
        %1636 = vmatprep.mubr.f32.mxu0 0.0
        %1637 = vmatmul.mubr.f32.gmra.mrb[0].mxu0 %v843
        %v1638 = vpop.f32.mrb[0].mxu0
        %v1639 = vadd.f32 0.0, %v1638
        %v1640 = vpop.f32.mrb[0].mxu0
        %1641 = vmatprep.mubr.f32.mxu0 0.0
        %1642 = vmatmul.mubr.f32.gmra.mrb[0].mxu0 %v845
        %v1643 = vpop.f32.mrb[0].mxu0
        %v1644 = vadd.f32 0.0, %v1643
        %v1645 = vpop.f32.mrb[0].mxu0
        %1646 = vmatprep.mubr.f32.mxu0 0.0
        %1647 = vmatmul.mubr.f32.gmra.mrb[0].mxu0 %v847
        %v1648 = vpop.f32.mrb[0].mxu0
        %v1649 = vadd.f32 0.0, %v1648
        %v1650 = vpop.f32.mrb[0].mxu0
        %1651 = vmatprep.mubr.f32.mxu0 0.0
        %1652 = vmatmul.mubr.f32.gmra.mrb[0].mxu0 %v849
        %v1653 = vpop.f32.mrb[0].mxu0
        %v1654 = vadd.f32 0.0, %v1653
        %v1655 = vpop.f32.mrb[0].mxu0
        %1656 = vmatprep.mubr.f32.mxu0 0.0
        %1657 = vmatmul.mubr.f32.gmra.mrb[0].mxu0 %v851
        %v1658 = vpop.f32.mrb[0].mxu0
        %v1659 = vadd.f32 0.0, %v1658
        %v1660 = vpop.f32.mrb[0].mxu0
        %1661 = vmatprep.mubr.f32.mxu0 0.0
        %1662 = vmatmul.mubr.f32.gmra.mrb[0].mxu0 %v853
        %v1663 = vpop.f32.mrb[0].mxu0
        %v1664 = vadd.f32 0.0, %v1663
        %v1665 = vpop.f32.mrb[0].mxu0
        %1666 = vmatprep.mubr.f32.mxu0 0.0
        %1667 = vmatmul.mubr.f32.gmra.mrb[0].mxu0 %v855
        %v1668 = vpop.f32.mrb[0].mxu0
        %v1669 = vadd.f32 0.0, %v1668
        %v1670 = vpop.f32.mrb[0].mxu0
        %1671 = vmatprep.mubr.f32.mxu0 0.0
        %1672 = vmatmul.mubr.f32.gmra.mrb[0].mxu0 %v857
        %v1673 = vpop.f32.mrb[0].mxu0
        %v1674 = vadd.f32 0.0, %v1673
        %v1675 = vpop.f32.mrb[0].mxu0
        %1676 = vmatprep.mubr.f32.mxu0 0.0
        %1677 = vmatmul.mubr.f32.gmra.mrb[0].mxu0 %v859
        %v1678 = vpop.f32.mrb[0].mxu0
        %v1679 = vadd.f32 0.0, %v1678
        %v1680 = vpop.f32.mrb[0].mxu0
        %1681 = vmatprep.mubr.f32.mxu0 0.0
        %1682 = vmatmul.mubr.f32.gmra.mrb[0].mxu0 %v861
        %v1683 = vpop.f32.mrb[0].mxu0
        %v1684 = vadd.f32 0.0, %v1683
        %v1685 = vpop.f32.mrb[0].mxu0
        %1686 = vmatprep.mubr.f32.mxu0 0.0
        %1687 = vmatmul.mubr.f32.gmra.mrb[0].mxu0 %v863
        %v1688 = vpop.f32.mrb[0].mxu0
        %v1689 = vadd.f32 0.0, %v1688
        %v1690 = vpop.f32.mrb[0].mxu0
        %1691 = vmatprep.mubr.f32.mxu0 0.0
        %1692 = vmatmul.mubr.f32.gmra.mrb[0].mxu0 %v865
        %v1693 = vpop.f32.mrb[0].mxu0
        %v1694 = vadd.f32 0.0, %v1693
        %v1695 = vpop.f32.mrb[0].mxu0
        %1696 = vmatprep.mubr.f32.mxu0 0.0
        %1697 = vmatmul.mubr.f32.gmra.mrb[0].mxu0 %v867
        %v1698 = vpop.f32.mrb[0].mxu0
        %v1699 = vadd.f32 0.0, %v1698
        %v1700 = vpop.f32.mrb[0].mxu0
        %1701 = vmatprep.mubr.f32.mxu0 0.0
        %1702 = vmatmul.mubr.f32.gmra.mrb[0].mxu0 %v869
        %v1703 = vpop.f32.mrb[0].mxu0
        %v1704 = vadd.f32 0.0, %v1703
        %v1705 = vpop.f32.mrb[0].mxu0
        %1706 = vmatprep.mubr.f32.mxu0 0.0
        %1707 = vmatmul.mubr.f32.gmra.mrb[0].mxu0 %v871
        %v1708 = vpop.f32.mrb[0].mxu0
        %v1709 = vadd.f32 0.0, %v1708
        %v1710 = vpop.f32.mrb[0].mxu0
        %1711 = vmatprep.mubr.f32.mxu0 0.0
        %1712 = vmatmul.mubr.f32.gmra.mrb[0].mxu0 %v873
        %v1713 = vpop.f32.mrb[0].mxu0
        %v1714 = vadd.f32 0.0, %v1713
        %v1715 = vpop.f32.mrb[0].mxu0
        %1716 = vmatprep.mubr.f32.mxu0 0.0
        %1717 = vmatmul.mubr.f32.gmra.mrb[0].mxu0 %v875
        %v1718 = vpop.f32.mrb[0].mxu0
        %v1719 = vadd.f32 0.0, %v1718
        %v1720 = vpop.f32.mrb[0].mxu0
        %1721 = vmatprep.mubr.f32.mxu0 0.0
        %1722 = vmatmul.mubr.f32.gmra.mrb[0].mxu0 %v877
        %v1723 = vpop.f32.mrb[0].mxu0
        %v1724 = vadd.f32 0.0, %v1723
        %v1725 = vpop.f32.mrb[0].mxu0
        %1726 = vmatprep.mubr.f32.mxu0 0.0
        %1727 = vmatmul.mubr.f32.gmra.mrb[0].mxu0 %v1507
        %v1728 = vpop.f32.mrb[0].mxu0
        %v1729 = vadd.f32 0.0, %v1728
        %v1730 = vpop.f32.mrb[0].mxu0
        %1731 = vmatprep.mubr.f32.mxu0 0.0
        %1732 = vmatmul.mubr.f32.gmra.mrb[0].mxu0 %v1510
        %v1733 = vpop.f32.mrb[0].mxu0
        %v1734 = vadd.f32 0.0, %v1733
        %v1735 = vpop.f32.mrb[0].mxu0
        %1736 = vdwg.mxu0
        %v1737 = vadd.f32 %v1474, %v1579
        %v1738 = vadd.f32 %v1475, %v1584
        %v1739 = vadd.f32 %v1476, %v1589
        %v1740 = vadd.f32 %v1477, %v1594
        %v1741 = vadd.f32 %v1478, %v1599
        %v1742 = vadd.f32 %v1479, %v1604
        %v1743 = vadd.f32 %v1480, %v1609
        %v1744 = vadd.f32 %v1481, %v1614
        %v1745 = vadd.f32 %v1482, %v1619
        %v1746 = vadd.f32 %v1483, %v1624
        %v1747 = vadd.f32 %v1484, %v1629
        %v1748 = vadd.f32 %v1485, %v1634
        %v1749 = vadd.f32 %v1486, %v1639
        %v1750 = vadd.f32 %v1487, %v1644
        %v1751 = vadd.f32 %v1488, %v1649
        %v1752 = vadd.f32 %v1489, %v1654
        %v1753 = vadd.f32 %v1490, %v1659
        %v1754 = vadd.f32 %v1491, %v1664
        %v1755 = vadd.f32 %v1492, %v1669
        %v1756 = vadd.f32 %v1493, %v1674
        %v1757 = vadd.f32 %v1494, %v1679
        %v1758 = vadd.f32 %v1495, %v1684
        %v1759 = vadd.f32 %v1496, %v1689
        %v1760 = vadd.f32 %v1497, %v1694
        %v1761 = vadd.f32 %v1498, %v1699
        %v1762 = vadd.f32 %v1499, %v1704
        %v1763 = vadd.f32 %v1500, %v1709
        %v1764 = vadd.f32 %v1501, %v1714
        %v1765 = vadd.f32 %v1502, %v1719
        %v1766 = vadd.f32 %v1503, %v1724
        %v1767 = vadd.f32 %v1504, %v1729
        %v1768 = vadd.f32 %v1505, %v1734
        %v1770 = vrot.slane %v391, 1
        %v1771 = vrot.slane %v392, 1
        %v1772 = vsel %vm445, %v1770, %v1771
        %v1773 = vrot.slane %v393, 1
        %v1774 = vsel %vm445, %v1771, %v1773
        %v1775 = vsel %vm222, %v1772, 0
        %v1777 = vsel %vm222, %v1774, 0
        %1779 = vmatprep.subr.mxu0 0.0
        %1780 = vmatpush1.msra.mxu0 %v212
        %1781 = vmatprep.subr.mxu0 0.0
        %1782 = vmatpush1.msra.mxu0 %v213
        %1783 = vmatprep.subr.mxu0 0.0
        %1784 = vmatpush1.msra.mxu0 0.0
        %1785 = vmatprep.subr.mxu0 0.0
        %1786 = vmatpush1.msra.mxu0 0.0
        %1787 = vmatprep.subr.mxu0 0.0
        %1788 = vmatpush1.msra.mxu0 0.0
        %1789 = vmatprep.subr.mxu0 0.0
        %1790 = vmatpush1.msra.mxu0 0.0
        %1791 = vmatprep.subr.mxu0 0.0
        %1792 = vmatpush1.msra.mxu0 0.0
        %1793 = vmatprep.subr.mxu0 0.0
        %1794 = vmatpush1.msra.mxu0 0.0
        %1795 = vmatprep.subr.mxu0 0.0
        %1796 = vmatpush1.msra.mxu0 0.0
        %1797 = vmatprep.subr.mxu0 0.0
        %1798 = vmatpush1.msra.mxu0 0.0
        %1799 = vmatprep.subr.mxu0 0.0
        %1800 = vmatpush1.msra.mxu0 0.0
        %1801 = vmatprep.subr.mxu0 0.0
        %1802 = vmatpush1.msra.mxu0 0.0
        %1803 = vmatprep.subr.mxu0 0.0
        %1804 = vmatpush1.msra.mxu0 0.0
        %1805 = vmatprep.subr.mxu0 0.0
        %1806 = vmatpush1.msra.mxu0 0.0
        %1807 = vmatprep.subr.mxu0 0.0
        %1808 = vmatpush1.msra.mxu0 0.0
        %1809 = vmatprep.subr.mxu0 0.0
        %1810 = vmatpush1.msra.mxu0 0.0
        %1811 = vmatprep.subr.mxu0 0.0
        %1812 = vmatpush1.msra.mxu0 0.0
        %1813 = vmatprep.subr.mxu0 0.0
        %1814 = vmatpush1.msra.mxu0 0.0
        %1815 = vmatprep.subr.mxu0 0.0
        %1816 = vmatpush1.msra.mxu0 0.0
        %1817 = vmatprep.subr.mxu0 0.0
        %1818 = vmatpush1.msra.mxu0 0.0
        %1819 = vmatprep.subr.mxu0 0.0
        %1820 = vmatpush1.msra.mxu0 0.0
        %1821 = vmatprep.subr.mxu0 0.0
        %1822 = vmatpush1.msra.mxu0 0.0
        %1823 = vmatprep.subr.mxu0 0.0
        %1824 = vmatpush1.msra.mxu0 0.0
        %1825 = vmatprep.subr.mxu0 0.0
        %1826 = vmatpush1.msra.mxu0 0.0
        %1827 = vmatprep.subr.mxu0 0.0
        %1828 = vmatpush1.msra.mxu0 0.0
        %1829 = vmatprep.subr.mxu0 0.0
        %1830 = vmatpush1.msra.mxu0 0.0
        %1831 = vmatprep.subr.mxu0 0.0
        %1832 = vmatpush1.msra.mxu0 0.0
        %1833 = vmatprep.subr.mxu0 0.0
        %1834 = vmatpush1.msra.mxu0 0.0
        %1835 = vmatprep.subr.mxu0 0.0
        %1836 = vmatpush1.msra.mxu0 0.0
        %1837 = vmatprep.subr.mxu0 0.0
        %1838 = vmatpush1.msra.mxu0 0.0
        %1839 = vmatprep.subr.mxu0 0.0
        %1840 = vmatpush1.msra.mxu0 0.0
        %1841 = vmatprep.subr.mxu0 0.0
        %1842 = vmatpush1.msra.mxu0 0.0
        %1843 = vmatprep.mubr.f32.mxu0 0.0
        %1844 = vmatmul.mubr.f32.gmra.mrb[0].mxu0 %v530
        %v1845 = vpop.f32.mrb[0].mxu0
        %v1846 = vadd.f32 0.0, %v1845
        %v1847 = vpop.f32.mrb[0].mxu0
        %1848 = vmatprep.mubr.f32.mxu0 0.0
        %1849 = vmatmul.mubr.f32.gmra.mrb[0].mxu0 %v532
        %v1850 = vpop.f32.mrb[0].mxu0
        %v1851 = vadd.f32 0.0, %v1850
        %v1852 = vpop.f32.mrb[0].mxu0
        %1853 = vmatprep.mubr.f32.mxu0 0.0
        %1854 = vmatmul.mubr.f32.gmra.mrb[0].mxu0 %v534
        %v1855 = vpop.f32.mrb[0].mxu0
        %v1856 = vadd.f32 0.0, %v1855
        %v1857 = vpop.f32.mrb[0].mxu0
        %1858 = vmatprep.mubr.f32.mxu0 0.0
        %1859 = vmatmul.mubr.f32.gmra.mrb[0].mxu0 %v536
        %v1860 = vpop.f32.mrb[0].mxu0
        %v1861 = vadd.f32 0.0, %v1860
        %v1862 = vpop.f32.mrb[0].mxu0
        %1863 = vmatprep.mubr.f32.mxu0 0.0
        %1864 = vmatmul.mubr.f32.gmra.mrb[0].mxu0 %v538
        %v1865 = vpop.f32.mrb[0].mxu0
        %v1866 = vadd.f32 0.0, %v1865
        %v1867 = vpop.f32.mrb[0].mxu0
        %1868 = vmatprep.mubr.f32.mxu0 0.0
        %1869 = vmatmul.mubr.f32.gmra.mrb[0].mxu0 %v540
        %v1870 = vpop.f32.mrb[0].mxu0
        %v1871 = vadd.f32 0.0, %v1870
        %v1872 = vpop.f32.mrb[0].mxu0
        %1873 = vmatprep.mubr.f32.mxu0 0.0
        %1874 = vmatmul.mubr.f32.gmra.mrb[0].mxu0 %v542
        %v1875 = vpop.f32.mrb[0].mxu0
        %v1876 = vadd.f32 0.0, %v1875
        %v1877 = vpop.f32.mrb[0].mxu0
        %1878 = vmatprep.mubr.f32.mxu0 0.0
        %1879 = vmatmul.mubr.f32.gmra.mrb[0].mxu0 %v544
        %v1880 = vpop.f32.mrb[0].mxu0
        %v1881 = vadd.f32 0.0, %v1880
        %v1882 = vpop.f32.mrb[0].mxu0
        %1883 = vmatprep.mubr.f32.mxu0 0.0
        %1884 = vmatmul.mubr.f32.gmra.mrb[0].mxu0 %v546
        %v1885 = vpop.f32.mrb[0].mxu0
        %v1886 = vadd.f32 0.0, %v1885
        %v1887 = vpop.f32.mrb[0].mxu0
        %1888 = vmatprep.mubr.f32.mxu0 0.0
        %1889 = vmatmul.mubr.f32.gmra.mrb[0].mxu0 %v548
        %v1890 = vpop.f32.mrb[0].mxu0
        %v1891 = vadd.f32 0.0, %v1890
        %v1892 = vpop.f32.mrb[0].mxu0
        %1893 = vmatprep.mubr.f32.mxu0 0.0
        %1894 = vmatmul.mubr.f32.gmra.mrb[0].mxu0 %v550
        %v1895 = vpop.f32.mrb[0].mxu0
        %v1896 = vadd.f32 0.0, %v1895
        %v1897 = vpop.f32.mrb[0].mxu0
        %1898 = vmatprep.mubr.f32.mxu0 0.0
        %1899 = vmatmul.mubr.f32.gmra.mrb[0].mxu0 %v552
        %v1900 = vpop.f32.mrb[0].mxu0
        %v1901 = vadd.f32 0.0, %v1900
        %v1902 = vpop.f32.mrb[0].mxu0
        %1903 = vmatprep.mubr.f32.mxu0 0.0
        %1904 = vmatmul.mubr.f32.gmra.mrb[0].mxu0 %v554
        %v1905 = vpop.f32.mrb[0].mxu0
        %v1906 = vadd.f32 0.0, %v1905
        %v1907 = vpop.f32.mrb[0].mxu0
        %1908 = vmatprep.mubr.f32.mxu0 0.0
        %1909 = vmatmul.mubr.f32.gmra.mrb[0].mxu0 %v556
        %v1910 = vpop.f32.mrb[0].mxu0
        %v1911 = vadd.f32 0.0, %v1910
        %v1912 = vpop.f32.mrb[0].mxu0
        %1913 = vmatprep.mubr.f32.mxu0 0.0
        %1914 = vmatmul.mubr.f32.gmra.mrb[0].mxu0 %v558
        %v1915 = vpop.f32.mrb[0].mxu0
        %v1916 = vadd.f32 0.0, %v1915
        %v1917 = vpop.f32.mrb[0].mxu0
        %1918 = vmatprep.mubr.f32.mxu0 0.0
        %1919 = vmatmul.mubr.f32.gmra.mrb[0].mxu0 %v560
        %v1920 = vpop.f32.mrb[0].mxu0
        %v1921 = vadd.f32 0.0, %v1920
        %v1922 = vpop.f32.mrb[0].mxu0
        %1923 = vmatprep.mubr.f32.mxu0 0.0
        %1924 = vmatmul.mubr.f32.gmra.mrb[0].mxu0 %v562
        %v1925 = vpop.f32.mrb[0].mxu0
        %v1926 = vadd.f32 0.0, %v1925
        %v1927 = vpop.f32.mrb[0].mxu0
        %1928 = vmatprep.mubr.f32.mxu0 0.0
        %1929 = vmatmul.mubr.f32.gmra.mrb[0].mxu0 %v564
        %v1930 = vpop.f32.mrb[0].mxu0
        %v1931 = vadd.f32 0.0, %v1930
        %v1932 = vpop.f32.mrb[0].mxu0
        %1933 = vmatprep.mubr.f32.mxu0 0.0
        %1934 = vmatmul.mubr.f32.gmra.mrb[0].mxu0 %v566
        %v1935 = vpop.f32.mrb[0].mxu0
        %v1936 = vadd.f32 0.0, %v1935
        %v1937 = vpop.f32.mrb[0].mxu0
        %1938 = vmatprep.mubr.f32.mxu0 0.0
        %1939 = vmatmul.mubr.f32.gmra.mrb[0].mxu0 %v568
        %v1940 = vpop.f32.mrb[0].mxu0
        %v1941 = vadd.f32 0.0, %v1940
        %v1942 = vpop.f32.mrb[0].mxu0
        %1943 = vmatprep.mubr.f32.mxu0 0.0
        %1944 = vmatmul.mubr.f32.gmra.mrb[0].mxu0 %v570
        %v1945 = vpop.f32.mrb[0].mxu0
        %v1946 = vadd.f32 0.0, %v1945
        %v1947 = vpop.f32.mrb[0].mxu0
        %1948 = vmatprep.mubr.f32.mxu0 0.0
        %1949 = vmatmul.mubr.f32.gmra.mrb[0].mxu0 %v572
        %v1950 = vpop.f32.mrb[0].mxu0
        %v1951 = vadd.f32 0.0, %v1950
        %v1952 = vpop.f32.mrb[0].mxu0
        %1953 = vmatprep.mubr.f32.mxu0 0.0
        %1954 = vmatmul.mubr.f32.gmra.mrb[0].mxu0 %v574
        %v1955 = vpop.f32.mrb[0].mxu0
        %v1956 = vadd.f32 0.0, %v1955
        %v1957 = vpop.f32.mrb[0].mxu0
        %1958 = vmatprep.mubr.f32.mxu0 0.0
        %1959 = vmatmul.mubr.f32.gmra.mrb[0].mxu0 %v576
        %v1960 = vpop.f32.mrb[0].mxu0
        %v1961 = vadd.f32 0.0, %v1960
        %v1962 = vpop.f32.mrb[0].mxu0
        %1963 = vmatprep.mubr.f32.mxu0 0.0
        %1964 = vmatmul.mubr.f32.gmra.mrb[0].mxu0 %v578
        %v1965 = vpop.f32.mrb[0].mxu0
        %v1966 = vadd.f32 0.0, %v1965
        %v1967 = vpop.f32.mrb[0].mxu0
        %1968 = vmatprep.mubr.f32.mxu0 0.0
        %1969 = vmatmul.mubr.f32.gmra.mrb[0].mxu0 %v580
        %v1970 = vpop.f32.mrb[0].mxu0
        %v1971 = vadd.f32 0.0, %v1970
        %v1972 = vpop.f32.mrb[0].mxu0
        %1973 = vmatprep.mubr.f32.mxu0 0.0
        %1974 = vmatmul.mubr.f32.gmra.mrb[0].mxu0 %v582
        %v1975 = vpop.f32.mrb[0].mxu0
        %v1976 = vadd.f32 0.0, %v1975
        %v1977 = vpop.f32.mrb[0].mxu0
        %1978 = vmatprep.mubr.f32.mxu0 0.0
        %1979 = vmatmul.mubr.f32.gmra.mrb[0].mxu0 %v584
        %v1980 = vpop.f32.mrb[0].mxu0
        %v1981 = vadd.f32 0.0, %v1980
        %v1982 = vpop.f32.mrb[0].mxu0
        %1983 = vmatprep.mubr.f32.mxu0 0.0
        %1984 = vmatmul.mubr.f32.gmra.mrb[0].mxu0 %v586
        %v1985 = vpop.f32.mrb[0].mxu0
        %v1986 = vadd.f32 0.0, %v1985
        %v1987 = vpop.f32.mrb[0].mxu0
        %1988 = vmatprep.mubr.f32.mxu0 0.0
        %1989 = vmatmul.mubr.f32.gmra.mrb[0].mxu0 %v588
        %v1990 = vpop.f32.mrb[0].mxu0
        %v1991 = vadd.f32 0.0, %v1990
        %v1992 = vpop.f32.mrb[0].mxu0
        %1993 = vmatprep.mubr.f32.mxu0 0.0
        %1994 = vmatmul.mubr.f32.gmra.mrb[0].mxu0 %v1775
        %v1995 = vpop.f32.mrb[0].mxu0
        %v1996 = vadd.f32 0.0, %v1995
        %v1997 = vpop.f32.mrb[0].mxu0
        %1998 = vmatprep.mubr.f32.mxu0 0.0
        %1999 = vmatmul.mubr.f32.gmra.mrb[0].mxu0 %v1777
        %v2000 = vpop.f32.mrb[0].mxu0
        %v2001 = vadd.f32 0.0, %v2000
        %v2002 = vpop.f32.mrb[0].mxu0
        %2003 = vdwg.mxu0
        %v2004 = vadd.f32 %v1737, %v1846
        %v2005 = vadd.f32 %v1738, %v1851
        %v2006 = vadd.f32 %v1739, %v1856
        %v2007 = vadd.f32 %v1740, %v1861
        %v2008 = vadd.f32 %v1741, %v1866
        %v2009 = vadd.f32 %v1742, %v1871
        %v2010 = vadd.f32 %v1743, %v1876
        %v2011 = vadd.f32 %v1744, %v1881
        %v2012 = vadd.f32 %v1745, %v1886
        %v2013 = vadd.f32 %v1746, %v1891
        %v2014 = vadd.f32 %v1747, %v1896
        %v2015 = vadd.f32 %v1748, %v1901
        %v2016 = vadd.f32 %v1749, %v1906
        %v2017 = vadd.f32 %v1750, %v1911
        %v2018 = vadd.f32 %v1751, %v1916
        %v2019 = vadd.f32 %v1752, %v1921
        %v2020 = vadd.f32 %v1753, %v1926
        %v2021 = vadd.f32 %v1754, %v1931
        %v2022 = vadd.f32 %v1755, %v1936
        %v2023 = vadd.f32 %v1756, %v1941
        %v2024 = vadd.f32 %v1757, %v1946
        %v2025 = vadd.f32 %v1758, %v1951
        %v2026 = vadd.f32 %v1759, %v1956
        %v2027 = vadd.f32 %v1760, %v1961
        %v2028 = vadd.f32 %v1761, %v1966
        %v2029 = vadd.f32 %v1762, %v1971
        %v2030 = vadd.f32 %v1763, %v1976
        %v2031 = vadd.f32 %v1764, %v1981
        %v2032 = vadd.f32 %v1765, %v1986
        %v2033 = vadd.f32 %v1766, %v1991
        %v2034 = vadd.f32 %v1767, %v1996
        %v2035 = vadd.f32 %v1768, %v2001
        %v2036 = vrot.slane %v391, 2
        %v2037 = vrot.slane %v392, 2
        %v2038 = vsel %vm1104, %v2036, %v2037
        %v2039 = vrot.slane %v393, 2
        %v2040 = vsel %vm1104, %v2037, %v2039
        %v2041 = vsel %vm222, %v2038, 0
        %v2043 = vsel %vm222, %v2040, 0
        %2045 = vmatprep.subr.mxu0 0.0
        %2046 = vmatpush1.msra.mxu0 %v214
        %2047 = vmatprep.subr.mxu0 0.0
        %2048 = vmatpush1.msra.mxu0 %v215
        %2049 = vmatprep.subr.mxu0 0.0
        %2050 = vmatpush1.msra.mxu0 0.0
        %2051 = vmatprep.subr.mxu0 0.0
        %2052 = vmatpush1.msra.mxu0 0.0
        %2053 = vmatprep.subr.mxu0 0.0
        %2054 = vmatpush1.msra.mxu0 0.0
        %2055 = vmatprep.subr.mxu0 0.0
        %2056 = vmatpush1.msra.mxu0 0.0
        %2057 = vmatprep.subr.mxu0 0.0
        %2058 = vmatpush1.msra.mxu0 0.0
        %2059 = vmatprep.subr.mxu0 0.0
        %2060 = vmatpush1.msra.mxu0 0.0
        %2061 = vmatprep.subr.mxu0 0.0
        %2062 = vmatpush1.msra.mxu0 0.0
        %2063 = vmatprep.subr.mxu0 0.0
        %2064 = vmatpush1.msra.mxu0 0.0
        %2065 = vmatprep.subr.mxu0 0.0
        %2066 = vmatpush1.msra.mxu0 0.0
        %2067 = vmatprep.subr.mxu0 0.0
        %2068 = vmatpush1.msra.mxu0 0.0
        %2069 = vmatprep.subr.mxu0 0.0
        %2070 = vmatpush1.msra.mxu0 0.0
        %2071 = vmatprep.subr.mxu0 0.0
        %2072 = vmatpush1.msra.mxu0 0.0
        %2073 = vmatprep.subr.mxu0 0.0
        %2074 = vmatpush1.msra.mxu0 0.0
        %2075 = vmatprep.subr.mxu0 0.0
        %2076 = vmatpush1.msra.mxu0 0.0
        %2077 = vmatprep.subr.mxu0 0.0
        %2078 = vmatpush1.msra.mxu0 0.0
        %2079 = vmatprep.subr.mxu0 0.0
        %2080 = vmatpush1.msra.mxu0 0.0
        %2081 = vmatprep.subr.mxu0 0.0
        %2082 = vmatpush1.msra.mxu0 0.0
        %2083 = vmatprep.subr.mxu0 0.0
        %2084 = vmatpush1.msra.mxu0 0.0
        %2085 = vmatprep.subr.mxu0 0.0
        %2086 = vmatpush1.msra.mxu0 0.0
        %2087 = vmatprep.subr.mxu0 0.0
        %2088 = vmatpush1.msra.mxu0 0.0
        %2089 = vmatprep.subr.mxu0 0.0
        %2090 = vmatpush1.msra.mxu0 0.0
        %2091 = vmatprep.subr.mxu0 0.0
        %2092 = vmatpush1.msra.mxu0 0.0
        %2093 = vmatprep.subr.mxu0 0.0
        %2094 = vmatpush1.msra.mxu0 0.0
        %2095 = vmatprep.subr.mxu0 0.0
        %2096 = vmatpush1.msra.mxu0 0.0
        %2097 = vmatprep.subr.mxu0 0.0
        %2098 = vmatpush1.msra.mxu0 0.0
        %2099 = vmatprep.subr.mxu0 0.0
        %2100 = vmatpush1.msra.mxu0 0.0
        %2101 = vmatprep.subr.mxu0 0.0
        %2102 = vmatpush1.msra.mxu0 0.0
        %2103 = vmatprep.subr.mxu0 0.0
        %2104 = vmatpush1.msra.mxu0 0.0
        %2105 = vmatprep.subr.mxu0 0.0
        %2106 = vmatpush1.msra.mxu0 0.0
        %2107 = vmatprep.subr.mxu0 0.0
        %2108 = vmatpush1.msra.mxu0 0.0
        %2109 = vmatprep.mubr.f32.mxu0 0.0
        %2110 = vmatmul.mubr.f32.gmra.mrb[0].mxu0 %v1189
        %v2111 = vpop.f32.mrb[0].mxu0
        %v2112 = vadd.f32 0.0, %v2111
        %v2113 = vpop.f32.mrb[0].mxu0
        %2114 = vmatprep.mubr.f32.mxu0 0.0
        %2115 = vmatmul.mubr.f32.gmra.mrb[0].mxu0 %v1191
        %v2116 = vpop.f32.mrb[0].mxu0
        %v2117 = vadd.f32 0.0, %v2116
        %v2118 = vpop.f32.mrb[0].mxu0
        %2119 = vmatprep.mubr.f32.mxu0 0.0
        %2120 = vmatmul.mubr.f32.gmra.mrb[0].mxu0 %v1193
        %v2121 = vpop.f32.mrb[0].mxu0
        %v2122 = vadd.f32 0.0, %v2121
        %v2123 = vpop.f32.mrb[0].mxu0
        %2124 = vmatprep.mubr.f32.mxu0 0.0
        %2125 = vmatmul.mubr.f32.gmra.mrb[0].mxu0 %v1195
        %v2126 = vpop.f32.mrb[0].mxu0
        %v2127 = vadd.f32 0.0, %v2126
        %v2128 = vpop.f32.mrb[0].mxu0
        %2129 = vmatprep.mubr.f32.mxu0 0.0
        %2130 = vmatmul.mubr.f32.gmra.mrb[0].mxu0 %v1197
        %v2131 = vpop.f32.mrb[0].mxu0
        %v2132 = vadd.f32 0.0, %v2131
        %v2133 = vpop.f32.mrb[0].mxu0
        %2134 = vmatprep.mubr.f32.mxu0 0.0
        %2135 = vmatmul.mubr.f32.gmra.mrb[0].mxu0 %v1199
        %v2136 = vpop.f32.mrb[0].mxu0
        %v2137 = vadd.f32 0.0, %v2136
        %v2138 = vpop.f32.mrb[0].mxu0
        %2139 = vmatprep.mubr.f32.mxu0 0.0
        %2140 = vmatmul.mubr.f32.gmra.mrb[0].mxu0 %v1201
        %v2141 = vpop.f32.mrb[0].mxu0
        %v2142 = vadd.f32 0.0, %v2141
        %v2143 = vpop.f32.mrb[0].mxu0
        %2144 = vmatprep.mubr.f32.mxu0 0.0
        %2145 = vmatmul.mubr.f32.gmra.mrb[0].mxu0 %v1203
        %v2146 = vpop.f32.mrb[0].mxu0
        %v2147 = vadd.f32 0.0, %v2146
        %v2148 = vpop.f32.mrb[0].mxu0
        %2149 = vmatprep.mubr.f32.mxu0 0.0
        %2150 = vmatmul.mubr.f32.gmra.mrb[0].mxu0 %v1205
        %v2151 = vpop.f32.mrb[0].mxu0
        %v2152 = vadd.f32 0.0, %v2151
        %v2153 = vpop.f32.mrb[0].mxu0
        %2154 = vmatprep.mubr.f32.mxu0 0.0
        %2155 = vmatmul.mubr.f32.gmra.mrb[0].mxu0 %v1207
        %v2156 = vpop.f32.mrb[0].mxu0
        %v2157 = vadd.f32 0.0, %v2156
        %v2158 = vpop.f32.mrb[0].mxu0
        %2159 = vmatprep.mubr.f32.mxu0 0.0
        %2160 = vmatmul.mubr.f32.gmra.mrb[0].mxu0 %v1209
        %v2161 = vpop.f32.mrb[0].mxu0
        %v2162 = vadd.f32 0.0, %v2161
        %v2163 = vpop.f32.mrb[0].mxu0
        %2164 = vmatprep.mubr.f32.mxu0 0.0
        %2165 = vmatmul.mubr.f32.gmra.mrb[0].mxu0 %v1211
        %v2166 = vpop.f32.mrb[0].mxu0
        %v2167 = vadd.f32 0.0, %v2166
        %v2168 = vpop.f32.mrb[0].mxu0
        %2169 = vmatprep.mubr.f32.mxu0 0.0
        %2170 = vmatmul.mubr.f32.gmra.mrb[0].mxu0 %v1213
        %v2171 = vpop.f32.mrb[0].mxu0
        %v2172 = vadd.f32 0.0, %v2171
        %v2173 = vpop.f32.mrb[0].mxu0
        %2174 = vmatprep.mubr.f32.mxu0 0.0
        %2175 = vmatmul.mubr.f32.gmra.mrb[0].mxu0 %v1215
        %v2176 = vpop.f32.mrb[0].mxu0
        %v2177 = vadd.f32 0.0, %v2176
        %v2178 = vpop.f32.mrb[0].mxu0
        %2179 = vmatprep.mubr.f32.mxu0 0.0
        %2180 = vmatmul.mubr.f32.gmra.mrb[0].mxu0 %v1217
        %v2181 = vpop.f32.mrb[0].mxu0
        %v2182 = vadd.f32 0.0, %v2181
        %v2183 = vpop.f32.mrb[0].mxu0
        %2184 = vmatprep.mubr.f32.mxu0 0.0
        %2185 = vmatmul.mubr.f32.gmra.mrb[0].mxu0 %v1219
        %v2186 = vpop.f32.mrb[0].mxu0
        %v2187 = vadd.f32 0.0, %v2186
        %v2188 = vpop.f32.mrb[0].mxu0
        %2189 = vmatprep.mubr.f32.mxu0 0.0
        %2190 = vmatmul.mubr.f32.gmra.mrb[0].mxu0 %v1221
        %v2191 = vpop.f32.mrb[0].mxu0
        %v2192 = vadd.f32 0.0, %v2191
        %v2193 = vpop.f32.mrb[0].mxu0
        %2194 = vmatprep.mubr.f32.mxu0 0.0
        %2195 = vmatmul.mubr.f32.gmra.mrb[0].mxu0 %v1223
        %v2196 = vpop.f32.mrb[0].mxu0
        %v2197 = vadd.f32 0.0, %v2196
        %v2198 = vpop.f32.mrb[0].mxu0
        %2199 = vmatprep.mubr.f32.mxu0 0.0
        %2200 = vmatmul.mubr.f32.gmra.mrb[0].mxu0 %v1225
        %v2201 = vpop.f32.mrb[0].mxu0
        %v2202 = vadd.f32 0.0, %v2201
        %v2203 = vpop.f32.mrb[0].mxu0
        %2204 = vmatprep.mubr.f32.mxu0 0.0
        %2205 = vmatmul.mubr.f32.gmra.mrb[0].mxu0 %v1227
        %v2206 = vpop.f32.mrb[0].mxu0
        %v2207 = vadd.f32 0.0, %v2206
        %v2208 = vpop.f32.mrb[0].mxu0
        %2209 = vmatprep.mubr.f32.mxu0 0.0
        %2210 = vmatmul.mubr.f32.gmra.mrb[0].mxu0 %v1229
        %v2211 = vpop.f32.mrb[0].mxu0
        %v2212 = vadd.f32 0.0, %v2211
        %v2213 = vpop.f32.mrb[0].mxu0
        %2214 = vmatprep.mubr.f32.mxu0 0.0
        %2215 = vmatmul.mubr.f32.gmra.mrb[0].mxu0 %v1231
        %v2216 = vpop.f32.mrb[0].mxu0
        %v2217 = vadd.f32 0.0, %v2216
        %v2218 = vpop.f32.mrb[0].mxu0
        %2219 = vmatprep.mubr.f32.mxu0 0.0
        %2220 = vmatmul.mubr.f32.gmra.mrb[0].mxu0 %v1233
        %v2221 = vpop.f32.mrb[0].mxu0
        %v2222 = vadd.f32 0.0, %v2221
        %v2223 = vpop.f32.mrb[0].mxu0
        %2224 = vmatprep.mubr.f32.mxu0 0.0
        %2225 = vmatmul.mubr.f32.gmra.mrb[0].mxu0 %v1235
        %v2226 = vpop.f32.mrb[0].mxu0
        %v2227 = vadd.f32 0.0, %v2226
        %v2228 = vpop.f32.mrb[0].mxu0
        %2229 = vmatprep.mubr.f32.mxu0 0.0
        %2230 = vmatmul.mubr.f32.gmra.mrb[0].mxu0 %v1237
        %v2231 = vpop.f32.mrb[0].mxu0
        %v2232 = vadd.f32 0.0, %v2231
        %v2233 = vpop.f32.mrb[0].mxu0
        %2234 = vmatprep.mubr.f32.mxu0 0.0
        %2235 = vmatmul.mubr.f32.gmra.mrb[0].mxu0 %v1239
        %v2236 = vpop.f32.mrb[0].mxu0
        %v2237 = vadd.f32 0.0, %v2236
        %v2238 = vpop.f32.mrb[0].mxu0
        %2239 = vmatprep.mubr.f32.mxu0 0.0
        %2240 = vmatmul.mubr.f32.gmra.mrb[0].mxu0 %v1241
        %v2241 = vpop.f32.mrb[0].mxu0
        %v2242 = vadd.f32 0.0, %v2241
        %v2243 = vpop.f32.mrb[0].mxu0
        %2244 = vmatprep.mubr.f32.mxu0 0.0
        %2245 = vmatmul.mubr.f32.gmra.mrb[0].mxu0 %v1243
        %v2246 = vpop.f32.mrb[0].mxu0
        %v2247 = vadd.f32 0.0, %v2246
        %v2248 = vpop.f32.mrb[0].mxu0
        %2249 = vmatprep.mubr.f32.mxu0 0.0
        %2250 = vmatmul.mubr.f32.gmra.mrb[0].mxu0 %v1245
        %v2251 = vpop.f32.mrb[0].mxu0
        %v2252 = vadd.f32 0.0, %v2251
        %v2253 = vpop.f32.mrb[0].mxu0
        %2254 = vmatprep.mubr.f32.mxu0 0.0
        %2255 = vmatmul.mubr.f32.gmra.mrb[0].mxu0 %v1247
        %v2256 = vpop.f32.mrb[0].mxu0
        %v2257 = vadd.f32 0.0, %v2256
        %v2258 = vpop.f32.mrb[0].mxu0
        %2259 = vmatprep.mubr.f32.mxu0 0.0
        %2260 = vmatmul.mubr.f32.gmra.mrb[0].mxu0 %v2041
        %v2261 = vpop.f32.mrb[0].mxu0
        %v2262 = vadd.f32 0.0, %v2261
        %v2263 = vpop.f32.mrb[0].mxu0
        %2264 = vmatprep.mubr.f32.mxu0 0.0
        %2265 = vmatmul.mubr.f32.gmra.mrb[0].mxu0 %v2043
        %v2266 = vpop.f32.mrb[0].mxu0
        %v2267 = vadd.f32 0.0, %v2266
        %v2268 = vpop.f32.mrb[0].mxu0
        %2269 = vdwg.mxu0
        %v2270 = vadd.f32 %v2004, %v2112
        %v2271 = vadd.f32 %v2005, %v2117
        %v2272 = vadd.f32 %v2006, %v2122
        %v2273 = vadd.f32 %v2007, %v2127
        %v2274 = vadd.f32 %v2008, %v2132
        %v2275 = vadd.f32 %v2009, %v2137
        %v2276 = vadd.f32 %v2010, %v2142
        %v2277 = vadd.f32 %v2011, %v2147
        %v2278 = vadd.f32 %v2012, %v2152
        %v2279 = vadd.f32 %v2013, %v2157
        %v2280 = vadd.f32 %v2014, %v2162
        %v2281 = vadd.f32 %v2015, %v2167
        %v2282 = vadd.f32 %v2016, %v2172
        %v2283 = vadd.f32 %v2017, %v2177
        %v2284 = vadd.f32 %v2018, %v2182
        %v2285 = vadd.f32 %v2019, %v2187
        %v2286 = vadd.f32 %v2020, %v2192
        %v2287 = vadd.f32 %v2021, %v2197
        %v2288 = vadd.f32 %v2022, %v2202
        %v2289 = vadd.f32 %v2023, %v2207
        %v2290 = vadd.f32 %v2024, %v2212
        %v2291 = vadd.f32 %v2025, %v2217
        %v2292 = vadd.f32 %v2026, %v2222
        %v2293 = vadd.f32 %v2027, %v2227
        %v2294 = vadd.f32 %v2028, %v2232
        %v2295 = vadd.f32 %v2029, %v2237
        %v2296 = vadd.f32 %v2030, %v2242
        %v2297 = vadd.f32 %v2031, %v2247
        %v2298 = vadd.f32 %v2032, %v2252
        %v2299 = vadd.f32 %v2033, %v2257
        %v2300 = vadd.f32 %v2034, %v2262
        %v2301 = vadd.f32 %v2035, %v2267
        %v2303 = vsel %vm222, %v394, 0
        %v2306 = vsel %vm222, %v395, 0
        %2308 = vmatprep.subr.mxu0 0.0
        %2309 = vmatpush1.msra.mxu0 %v216
        %2310 = vmatprep.subr.mxu0 0.0
        %2311 = vmatpush1.msra.mxu0 %v217
        %2312 = vmatprep.subr.mxu0 0.0
        %2313 = vmatpush1.msra.mxu0 0.0
        %2314 = vmatprep.subr.mxu0 0.0
        %2315 = vmatpush1.msra.mxu0 0.0
        %2316 = vmatprep.subr.mxu0 0.0
        %2317 = vmatpush1.msra.mxu0 0.0
        %2318 = vmatprep.subr.mxu0 0.0
        %2319 = vmatpush1.msra.mxu0 0.0
        %2320 = vmatprep.subr.mxu0 0.0
        %2321 = vmatpush1.msra.mxu0 0.0
        %2322 = vmatprep.subr.mxu0 0.0
        %2323 = vmatpush1.msra.mxu0 0.0
        %2324 = vmatprep.subr.mxu0 0.0
        %2325 = vmatpush1.msra.mxu0 0.0
        %2326 = vmatprep.subr.mxu0 0.0
        %2327 = vmatpush1.msra.mxu0 0.0
        %2328 = vmatprep.subr.mxu0 0.0
        %2329 = vmatpush1.msra.mxu0 0.0
        %2330 = vmatprep.subr.mxu0 0.0
        %2331 = vmatpush1.msra.mxu0 0.0
        %2332 = vmatprep.subr.mxu0 0.0
        %2333 = vmatpush1.msra.mxu0 0.0
        %2334 = vmatprep.subr.mxu0 0.0
        %2335 = vmatpush1.msra.mxu0 0.0
        %2336 = vmatprep.subr.mxu0 0.0
        %2337 = vmatpush1.msra.mxu0 0.0
        %2338 = vmatprep.subr.mxu0 0.0
        %2339 = vmatpush1.msra.mxu0 0.0
        %2340 = vmatprep.subr.mxu0 0.0
        %2341 = vmatpush1.msra.mxu0 0.0
        %2342 = vmatprep.subr.mxu0 0.0
        %2343 = vmatpush1.msra.mxu0 0.0
        %2344 = vmatprep.subr.mxu0 0.0
        %2345 = vmatpush1.msra.mxu0 0.0
        %2346 = vmatprep.subr.mxu0 0.0
        %2347 = vmatpush1.msra.mxu0 0.0
        %2348 = vmatprep.subr.mxu0 0.0
        %2349 = vmatpush1.msra.mxu0 0.0
        %2350 = vmatprep.subr.mxu0 0.0
        %2351 = vmatpush1.msra.mxu0 0.0
        %2352 = vmatprep.subr.mxu0 0.0
        %2353 = vmatpush1.msra.mxu0 0.0
        %2354 = vmatprep.subr.mxu0 0.0
        %2355 = vmatpush1.msra.mxu0 0.0
        %2356 = vmatprep.subr.mxu0 0.0
        %2357 = vmatpush1.msra.mxu0 0.0
        %2358 = vmatprep.subr.mxu0 0.0
        %2359 = vmatpush1.msra.mxu0 0.0
        %2360 = vmatprep.subr.mxu0 0.0
        %2361 = vmatpush1.msra.mxu0 0.0
        %2362 = vmatprep.subr.mxu0 0.0
        %2363 = vmatpush1.msra.mxu0 0.0
        %2364 = vmatprep.subr.mxu0 0.0
        %2365 = vmatpush1.msra.mxu0 0.0
        %2366 = vmatprep.subr.mxu0 0.0
        %2367 = vmatpush1.msra.mxu0 0.0
        %2368 = vmatprep.subr.mxu0 0.0
        %2369 = vmatpush1.msra.mxu0 0.0
        %2370 = vmatprep.subr.mxu0 0.0
        %2371 = vmatpush1.msra.mxu0 0.0
        %2372 = vmatprep.mubr.f32.mxu0 0.0
        %2373 = vmatmul.mubr.f32.gmra.mrb[0].mxu0 %v823
        %v2374 = vpop.f32.mrb[0].mxu0
        %v2375 = vadd.f32 0.0, %v2374
        %v2376 = vpop.f32.mrb[0].mxu0
        %2377 = vmatprep.mubr.f32.mxu0 0.0
        %2378 = vmatmul.mubr.f32.gmra.mrb[0].mxu0 %v825
        %v2379 = vpop.f32.mrb[0].mxu0
        %v2380 = vadd.f32 0.0, %v2379
        %v2381 = vpop.f32.mrb[0].mxu0
        %2382 = vmatprep.mubr.f32.mxu0 0.0
        %2383 = vmatmul.mubr.f32.gmra.mrb[0].mxu0 %v827
        %v2384 = vpop.f32.mrb[0].mxu0
        %v2385 = vadd.f32 0.0, %v2384
        %v2386 = vpop.f32.mrb[0].mxu0
        %2387 = vmatprep.mubr.f32.mxu0 0.0
        %2388 = vmatmul.mubr.f32.gmra.mrb[0].mxu0 %v829
        %v2389 = vpop.f32.mrb[0].mxu0
        %v2390 = vadd.f32 0.0, %v2389
        %v2391 = vpop.f32.mrb[0].mxu0
        %2392 = vmatprep.mubr.f32.mxu0 0.0
        %2393 = vmatmul.mubr.f32.gmra.mrb[0].mxu0 %v831
        %v2394 = vpop.f32.mrb[0].mxu0
        %v2395 = vadd.f32 0.0, %v2394
        %v2396 = vpop.f32.mrb[0].mxu0
        %2397 = vmatprep.mubr.f32.mxu0 0.0
        %2398 = vmatmul.mubr.f32.gmra.mrb[0].mxu0 %v833
        %v2399 = vpop.f32.mrb[0].mxu0
        %v2400 = vadd.f32 0.0, %v2399
        %v2401 = vpop.f32.mrb[0].mxu0
        %2402 = vmatprep.mubr.f32.mxu0 0.0
        %2403 = vmatmul.mubr.f32.gmra.mrb[0].mxu0 %v835
        %v2404 = vpop.f32.mrb[0].mxu0
        %v2405 = vadd.f32 0.0, %v2404
        %v2406 = vpop.f32.mrb[0].mxu0
        %2407 = vmatprep.mubr.f32.mxu0 0.0
        %2408 = vmatmul.mubr.f32.gmra.mrb[0].mxu0 %v837
        %v2409 = vpop.f32.mrb[0].mxu0
        %v2410 = vadd.f32 0.0, %v2409
        %v2411 = vpop.f32.mrb[0].mxu0
        %2412 = vmatprep.mubr.f32.mxu0 0.0
        %2413 = vmatmul.mubr.f32.gmra.mrb[0].mxu0 %v839
        %v2414 = vpop.f32.mrb[0].mxu0
        %v2415 = vadd.f32 0.0, %v2414
        %v2416 = vpop.f32.mrb[0].mxu0
        %2417 = vmatprep.mubr.f32.mxu0 0.0
        %2418 = vmatmul.mubr.f32.gmra.mrb[0].mxu0 %v841
        %v2419 = vpop.f32.mrb[0].mxu0
        %v2420 = vadd.f32 0.0, %v2419
        %v2421 = vpop.f32.mrb[0].mxu0
        %2422 = vmatprep.mubr.f32.mxu0 0.0
        %2423 = vmatmul.mubr.f32.gmra.mrb[0].mxu0 %v843
        %v2424 = vpop.f32.mrb[0].mxu0
        %v2425 = vadd.f32 0.0, %v2424
        %v2426 = vpop.f32.mrb[0].mxu0
        %2427 = vmatprep.mubr.f32.mxu0 0.0
        %2428 = vmatmul.mubr.f32.gmra.mrb[0].mxu0 %v845
        %v2429 = vpop.f32.mrb[0].mxu0
        %v2430 = vadd.f32 0.0, %v2429
        %v2431 = vpop.f32.mrb[0].mxu0
        %2432 = vmatprep.mubr.f32.mxu0 0.0
        %2433 = vmatmul.mubr.f32.gmra.mrb[0].mxu0 %v847
        %v2434 = vpop.f32.mrb[0].mxu0
        %v2435 = vadd.f32 0.0, %v2434
        %v2436 = vpop.f32.mrb[0].mxu0
        %2437 = vmatprep.mubr.f32.mxu0 0.0
        %2438 = vmatmul.mubr.f32.gmra.mrb[0].mxu0 %v849
        %v2439 = vpop.f32.mrb[0].mxu0
        %v2440 = vadd.f32 0.0, %v2439
        %v2441 = vpop.f32.mrb[0].mxu0
        %2442 = vmatprep.mubr.f32.mxu0 0.0
        %2443 = vmatmul.mubr.f32.gmra.mrb[0].mxu0 %v851
        %v2444 = vpop.f32.mrb[0].mxu0
        %v2445 = vadd.f32 0.0, %v2444
        %v2446 = vpop.f32.mrb[0].mxu0
        %2447 = vmatprep.mubr.f32.mxu0 0.0
        %2448 = vmatmul.mubr.f32.gmra.mrb[0].mxu0 %v853
        %v2449 = vpop.f32.mrb[0].mxu0
        %v2450 = vadd.f32 0.0, %v2449
        %v2451 = vpop.f32.mrb[0].mxu0
        %2452 = vmatprep.mubr.f32.mxu0 0.0
        %2453 = vmatmul.mubr.f32.gmra.mrb[0].mxu0 %v855
        %v2454 = vpop.f32.mrb[0].mxu0
        %v2455 = vadd.f32 0.0, %v2454
        %v2456 = vpop.f32.mrb[0].mxu0
        %2457 = vmatprep.mubr.f32.mxu0 0.0
        %2458 = vmatmul.mubr.f32.gmra.mrb[0].mxu0 %v857
        %v2459 = vpop.f32.mrb[0].mxu0
        %v2460 = vadd.f32 0.0, %v2459
        %v2461 = vpop.f32.mrb[0].mxu0
        %2462 = vmatprep.mubr.f32.mxu0 0.0
        %2463 = vmatmul.mubr.f32.gmra.mrb[0].mxu0 %v859
        %v2464 = vpop.f32.mrb[0].mxu0
        %v2465 = vadd.f32 0.0, %v2464
        %v2466 = vpop.f32.mrb[0].mxu0
        %2467 = vmatprep.mubr.f32.mxu0 0.0
        %2468 = vmatmul.mubr.f32.gmra.mrb[0].mxu0 %v861
        %v2469 = vpop.f32.mrb[0].mxu0
        %v2470 = vadd.f32 0.0, %v2469
        %v2471 = vpop.f32.mrb[0].mxu0
        %2472 = vmatprep.mubr.f32.mxu0 0.0
        %2473 = vmatmul.mubr.f32.gmra.mrb[0].mxu0 %v863
        %v2474 = vpop.f32.mrb[0].mxu0
        %v2475 = vadd.f32 0.0, %v2474
        %v2476 = vpop.f32.mrb[0].mxu0
        %2477 = vmatprep.mubr.f32.mxu0 0.0
        %2478 = vmatmul.mubr.f32.gmra.mrb[0].mxu0 %v865
        %v2479 = vpop.f32.mrb[0].mxu0
        %v2480 = vadd.f32 0.0, %v2479
        %v2481 = vpop.f32.mrb[0].mxu0
        %2482 = vmatprep.mubr.f32.mxu0 0.0
        %2483 = vmatmul.mubr.f32.gmra.mrb[0].mxu0 %v867
        %v2484 = vpop.f32.mrb[0].mxu0
        %v2485 = vadd.f32 0.0, %v2484
        %v2486 = vpop.f32.mrb[0].mxu0
        %2487 = vmatprep.mubr.f32.mxu0 0.0
        %2488 = vmatmul.mubr.f32.gmra.mrb[0].mxu0 %v869
        %v2489 = vpop.f32.mrb[0].mxu0
        %v2490 = vadd.f32 0.0, %v2489
        %v2491 = vpop.f32.mrb[0].mxu0
        %2492 = vmatprep.mubr.f32.mxu0 0.0
        %2493 = vmatmul.mubr.f32.gmra.mrb[0].mxu0 %v871
        %v2494 = vpop.f32.mrb[0].mxu0
        %v2495 = vadd.f32 0.0, %v2494
        %v2496 = vpop.f32.mrb[0].mxu0
        %2497 = vmatprep.mubr.f32.mxu0 0.0
        %2498 = vmatmul.mubr.f32.gmra.mrb[0].mxu0 %v873
        %v2499 = vpop.f32.mrb[0].mxu0
        %v2500 = vadd.f32 0.0, %v2499
        %v2501 = vpop.f32.mrb[0].mxu0
        %2502 = vmatprep.mubr.f32.mxu0 0.0
        %2503 = vmatmul.mubr.f32.gmra.mrb[0].mxu0 %v875
        %v2504 = vpop.f32.mrb[0].mxu0
        %v2505 = vadd.f32 0.0, %v2504
        %v2506 = vpop.f32.mrb[0].mxu0
        %2507 = vmatprep.mubr.f32.mxu0 0.0
        %2508 = vmatmul.mubr.f32.gmra.mrb[0].mxu0 %v877
        %v2509 = vpop.f32.mrb[0].mxu0
        %v2510 = vadd.f32 0.0, %v2509
        %v2511 = vpop.f32.mrb[0].mxu0
        %2512 = vmatprep.mubr.f32.mxu0 0.0
        %2513 = vmatmul.mubr.f32.gmra.mrb[0].mxu0 %v1507
        %v2514 = vpop.f32.mrb[0].mxu0
        %v2515 = vadd.f32 0.0, %v2514
        %v2516 = vpop.f32.mrb[0].mxu0
        %2517 = vmatprep.mubr.f32.mxu0 0.0
        %2518 = vmatmul.mubr.f32.gmra.mrb[0].mxu0 %v1510
        %v2519 = vpop.f32.mrb[0].mxu0
        %v2520 = vadd.f32 0.0, %v2519
        %v2521 = vpop.f32.mrb[0].mxu0
        %2522 = vmatprep.mubr.f32.mxu0 0.0
        %2523 = vmatmul.mubr.f32.gmra.mrb[0].mxu0 %v2303
        %v2524 = vpop.f32.mrb[0].mxu0
        %v2525 = vadd.f32 0.0, %v2524
        %v2526 = vpop.f32.mrb[0].mxu0
        %2527 = vmatprep.mubr.f32.mxu0 0.0
        %2528 = vmatmul.mubr.f32.gmra.mrb[0].mxu0 %v2306
        %v2529 = vpop.f32.mrb[0].mxu0
        %v2530 = vadd.f32 0.0, %v2529
        %v2531 = vpop.f32.mrb[0].mxu0
        %2532 = vdwg.mxu0
        %v2533 = vadd.f32 %v2270, %v2375
        %v2534 = vadd.f32 %v2271, %v2380
        %v2535 = vadd.f32 %v2272, %v2385
        %v2536 = vadd.f32 %v2273, %v2390
        %v2537 = vadd.f32 %v2274, %v2395
        %v2538 = vadd.f32 %v2275, %v2400
        %v2539 = vadd.f32 %v2276, %v2405
        %v2540 = vadd.f32 %v2277, %v2410
        %v2541 = vadd.f32 %v2278, %v2415
        %v2542 = vadd.f32 %v2279, %v2420
        %v2543 = vadd.f32 %v2280, %v2425
        %v2544 = vadd.f32 %v2281, %v2430
        %v2545 = vadd.f32 %v2282, %v2435
        %v2546 = vadd.f32 %v2283, %v2440
        %v2547 = vadd.f32 %v2284, %v2445
        %v2548 = vadd.f32 %v2285, %v2450
        %v2549 = vadd.f32 %v2286, %v2455
        %v2550 = vadd.f32 %v2287, %v2460
        %v2551 = vadd.f32 %v2288, %v2465
        %v2552 = vadd.f32 %v2289, %v2470
        %v2553 = vadd.f32 %v2290, %v2475
        %v2554 = vadd.f32 %v2291, %v2480
        %v2555 = vadd.f32 %v2292, %v2485
        %v2556 = vadd.f32 %v2293, %v2490
        %v2557 = vadd.f32 %v2294, %v2495
        %v2558 = vadd.f32 %v2295, %v2500
        %v2559 = vadd.f32 %v2296, %v2505
        %v2560 = vadd.f32 %v2297, %v2510
        %v2561 = vadd.f32 %v2298, %v2515
        %v2562 = vadd.f32 %v2299, %v2520
        %v2563 = vadd.f32 %v2300, %v2525
        %v2564 = vadd.f32 %v2301, %v2530
        %v2566 = vrot.slane %v394, 1
        %v2567 = vrot.slane %v395, 1
        %v2568 = vsel %vm445, %v2566, %v2567
        %v2569 = vrot.slane %v396, 1
        %v2570 = vsel %vm445, %v2567, %v2569
        %v2571 = vsel %vm222, %v2568, 0
        %v2573 = vsel %vm222, %v2570, 0
        %2575 = vmatprep.subr.mxu0 0.0
        %2576 = vmatpush1.msra.mxu0 %v218
        %2577 = vmatprep.subr.mxu0 0.0
        %2578 = vmatpush1.msra.mxu0 %v219
        %2579 = vmatprep.subr.mxu0 0.0
        %2580 = vmatpush1.msra.mxu0 0.0
        %2581 = vmatprep.subr.mxu0 0.0
        %2582 = vmatpush1.msra.mxu0 0.0
        %2583 = vmatprep.subr.mxu0 0.0
        %2584 = vmatpush1.msra.mxu0 0.0
        %2585 = vmatprep.subr.mxu0 0.0
        %2586 = vmatpush1.msra.mxu0 0.0
        %2587 = vmatprep.subr.mxu0 0.0
        %2588 = vmatpush1.msra.mxu0 0.0
        %2589 = vmatprep.subr.mxu0 0.0
        %2590 = vmatpush1.msra.mxu0 0.0
        %2591 = vmatprep.subr.mxu0 0.0
        %2592 = vmatpush1.msra.mxu0 0.0
        %2593 = vmatprep.subr.mxu0 0.0
        %2594 = vmatpush1.msra.mxu0 0.0
        %2595 = vmatprep.subr.mxu0 0.0
        %2596 = vmatpush1.msra.mxu0 0.0
        %2597 = vmatprep.subr.mxu0 0.0
        %2598 = vmatpush1.msra.mxu0 0.0
        %2599 = vmatprep.subr.mxu0 0.0
        %2600 = vmatpush1.msra.mxu0 0.0
        %2601 = vmatprep.subr.mxu0 0.0
        %2602 = vmatpush1.msra.mxu0 0.0
        %2603 = vmatprep.subr.mxu0 0.0
        %2604 = vmatpush1.msra.mxu0 0.0
        %2605 = vmatprep.subr.mxu0 0.0
        %2606 = vmatpush1.msra.mxu0 0.0
        %2607 = vmatprep.subr.mxu0 0.0
        %2608 = vmatpush1.msra.mxu0 0.0
        %2609 = vmatprep.subr.mxu0 0.0
        %2610 = vmatpush1.msra.mxu0 0.0
        %2611 = vmatprep.subr.mxu0 0.0
        %2612 = vmatpush1.msra.mxu0 0.0
        %2613 = vmatprep.subr.mxu0 0.0
        %2614 = vmatpush1.msra.mxu0 0.0
        %2615 = vmatprep.subr.mxu0 0.0
        %2616 = vmatpush1.msra.mxu0 0.0
        %2617 = vmatprep.subr.mxu0 0.0
        %2618 = vmatpush1.msra.mxu0 0.0
        %2619 = vmatprep.subr.mxu0 0.0
        %2620 = vmatpush1.msra.mxu0 0.0
        %2621 = vmatprep.subr.mxu0 0.0
        %2622 = vmatpush1.msra.mxu0 0.0
        %2623 = vmatprep.subr.mxu0 0.0
        %2624 = vmatpush1.msra.mxu0 0.0
        %2625 = vmatprep.subr.mxu0 0.0
        %2626 = vmatpush1.msra.mxu0 0.0
        %2627 = vmatprep.subr.mxu0 0.0
        %2628 = vmatpush1.msra.mxu0 0.0
        %2629 = vmatprep.subr.mxu0 0.0
        %2630 = vmatpush1.msra.mxu0 0.0
        %2631 = vmatprep.subr.mxu0 0.0
        %2632 = vmatpush1.msra.mxu0 0.0
        %2633 = vmatprep.subr.mxu0 0.0
        %2634 = vmatpush1.msra.mxu0 0.0
        %2635 = vmatprep.subr.mxu0 0.0
        %2636 = vmatpush1.msra.mxu0 0.0
        %2637 = vmatprep.subr.mxu0 0.0
        %2638 = vmatpush1.msra.mxu0 0.0
        %2639 = vmatprep.mubr.f32.mxu0 0.0
        %2640 = vmatmul.mubr.f32.gmra.mrb[0].mxu0 %v534
        %v2641 = vpop.f32.mrb[0].mxu0
        %v2642 = vadd.f32 0.0, %v2641
        %v2643 = vpop.f32.mrb[0].mxu0
        %2644 = vmatprep.mubr.f32.mxu0 0.0
        %2645 = vmatmul.mubr.f32.gmra.mrb[0].mxu0 %v536
        %v2646 = vpop.f32.mrb[0].mxu0
        %v2647 = vadd.f32 0.0, %v2646
        %v2648 = vpop.f32.mrb[0].mxu0
        %2649 = vmatprep.mubr.f32.mxu0 0.0
        %2650 = vmatmul.mubr.f32.gmra.mrb[0].mxu0 %v538
        %v2651 = vpop.f32.mrb[0].mxu0
        %v2652 = vadd.f32 0.0, %v2651
        %v2653 = vpop.f32.mrb[0].mxu0
        %2654 = vmatprep.mubr.f32.mxu0 0.0
        %2655 = vmatmul.mubr.f32.gmra.mrb[0].mxu0 %v540
        %v2656 = vpop.f32.mrb[0].mxu0
        %v2657 = vadd.f32 0.0, %v2656
        %v2658 = vpop.f32.mrb[0].mxu0
        %2659 = vmatprep.mubr.f32.mxu0 0.0
        %2660 = vmatmul.mubr.f32.gmra.mrb[0].mxu0 %v542
        %v2661 = vpop.f32.mrb[0].mxu0
        %v2662 = vadd.f32 0.0, %v2661
        %v2663 = vpop.f32.mrb[0].mxu0
        %2664 = vmatprep.mubr.f32.mxu0 0.0
        %2665 = vmatmul.mubr.f32.gmra.mrb[0].mxu0 %v544
        %v2666 = vpop.f32.mrb[0].mxu0
        %v2667 = vadd.f32 0.0, %v2666
        %v2668 = vpop.f32.mrb[0].mxu0
        %2669 = vmatprep.mubr.f32.mxu0 0.0
        %2670 = vmatmul.mubr.f32.gmra.mrb[0].mxu0 %v546
        %v2671 = vpop.f32.mrb[0].mxu0
        %v2672 = vadd.f32 0.0, %v2671
        %v2673 = vpop.f32.mrb[0].mxu0
        %2674 = vmatprep.mubr.f32.mxu0 0.0
        %2675 = vmatmul.mubr.f32.gmra.mrb[0].mxu0 %v548
        %v2676 = vpop.f32.mrb[0].mxu0
        %v2677 = vadd.f32 0.0, %v2676
        %v2678 = vpop.f32.mrb[0].mxu0
        %2679 = vmatprep.mubr.f32.mxu0 0.0
        %2680 = vmatmul.mubr.f32.gmra.mrb[0].mxu0 %v550
        %v2681 = vpop.f32.mrb[0].mxu0
        %v2682 = vadd.f32 0.0, %v2681
        %v2683 = vpop.f32.mrb[0].mxu0
        %2684 = vmatprep.mubr.f32.mxu0 0.0
        %2685 = vmatmul.mubr.f32.gmra.mrb[0].mxu0 %v552
        %v2686 = vpop.f32.mrb[0].mxu0
        %v2687 = vadd.f32 0.0, %v2686
        %v2688 = vpop.f32.mrb[0].mxu0
        %2689 = vmatprep.mubr.f32.mxu0 0.0
        %2690 = vmatmul.mubr.f32.gmra.mrb[0].mxu0 %v554
        %v2691 = vpop.f32.mrb[0].mxu0
        %v2692 = vadd.f32 0.0, %v2691
        %v2693 = vpop.f32.mrb[0].mxu0
        %2694 = vmatprep.mubr.f32.mxu0 0.0
        %2695 = vmatmul.mubr.f32.gmra.mrb[0].mxu0 %v556
        %v2696 = vpop.f32.mrb[0].mxu0
        %v2697 = vadd.f32 0.0, %v2696
        %v2698 = vpop.f32.mrb[0].mxu0
        %2699 = vmatprep.mubr.f32.mxu0 0.0
        %2700 = vmatmul.mubr.f32.gmra.mrb[0].mxu0 %v558
        %v2701 = vpop.f32.mrb[0].mxu0
        %v2702 = vadd.f32 0.0, %v2701
        %v2703 = vpop.f32.mrb[0].mxu0
        %2704 = vmatprep.mubr.f32.mxu0 0.0
        %2705 = vmatmul.mubr.f32.gmra.mrb[0].mxu0 %v560
        %v2706 = vpop.f32.mrb[0].mxu0
        %v2707 = vadd.f32 0.0, %v2706
        %v2708 = vpop.f32.mrb[0].mxu0
        %2709 = vmatprep.mubr.f32.mxu0 0.0
        %2710 = vmatmul.mubr.f32.gmra.mrb[0].mxu0 %v562
        %v2711 = vpop.f32.mrb[0].mxu0
        %v2712 = vadd.f32 0.0, %v2711
        %v2713 = vpop.f32.mrb[0].mxu0
        %2714 = vmatprep.mubr.f32.mxu0 0.0
        %2715 = vmatmul.mubr.f32.gmra.mrb[0].mxu0 %v564
        %v2716 = vpop.f32.mrb[0].mxu0
        %v2717 = vadd.f32 0.0, %v2716
        %v2718 = vpop.f32.mrb[0].mxu0
        %2719 = vmatprep.mubr.f32.mxu0 0.0
        %2720 = vmatmul.mubr.f32.gmra.mrb[0].mxu0 %v566
        %v2721 = vpop.f32.mrb[0].mxu0
        %v2722 = vadd.f32 0.0, %v2721
        %v2723 = vpop.f32.mrb[0].mxu0
        %2724 = vmatprep.mubr.f32.mxu0 0.0
        %2725 = vmatmul.mubr.f32.gmra.mrb[0].mxu0 %v568
        %v2726 = vpop.f32.mrb[0].mxu0
        %v2727 = vadd.f32 0.0, %v2726
        %v2728 = vpop.f32.mrb[0].mxu0
        %2729 = vmatprep.mubr.f32.mxu0 0.0
        %2730 = vmatmul.mubr.f32.gmra.mrb[0].mxu0 %v570
        %v2731 = vpop.f32.mrb[0].mxu0
        %v2732 = vadd.f32 0.0, %v2731
        %v2733 = vpop.f32.mrb[0].mxu0
        %2734 = vmatprep.mubr.f32.mxu0 0.0
        %2735 = vmatmul.mubr.f32.gmra.mrb[0].mxu0 %v572
        %v2736 = vpop.f32.mrb[0].mxu0
        %v2737 = vadd.f32 0.0, %v2736
        %v2738 = vpop.f32.mrb[0].mxu0
        %2739 = vmatprep.mubr.f32.mxu0 0.0
        %2740 = vmatmul.mubr.f32.gmra.mrb[0].mxu0 %v574
        %v2741 = vpop.f32.mrb[0].mxu0
        %v2742 = vadd.f32 0.0, %v2741
        %v2743 = vpop.f32.mrb[0].mxu0
        %2744 = vmatprep.mubr.f32.mxu0 0.0
        %2745 = vmatmul.mubr.f32.gmra.mrb[0].mxu0 %v576
        %v2746 = vpop.f32.mrb[0].mxu0
        %v2747 = vadd.f32 0.0, %v2746
        %v2748 = vpop.f32.mrb[0].mxu0
        %2749 = vmatprep.mubr.f32.mxu0 0.0
        %2750 = vmatmul.mubr.f32.gmra.mrb[0].mxu0 %v578
        %v2751 = vpop.f32.mrb[0].mxu0
        %v2752 = vadd.f32 0.0, %v2751
        %v2753 = vpop.f32.mrb[0].mxu0
        %2754 = vmatprep.mubr.f32.mxu0 0.0
        %2755 = vmatmul.mubr.f32.gmra.mrb[0].mxu0 %v580
        %v2756 = vpop.f32.mrb[0].mxu0
        %v2757 = vadd.f32 0.0, %v2756
        %v2758 = vpop.f32.mrb[0].mxu0
        %2759 = vmatprep.mubr.f32.mxu0 0.0
        %2760 = vmatmul.mubr.f32.gmra.mrb[0].mxu0 %v582
        %v2761 = vpop.f32.mrb[0].mxu0
        %v2762 = vadd.f32 0.0, %v2761
        %v2763 = vpop.f32.mrb[0].mxu0
        %2764 = vmatprep.mubr.f32.mxu0 0.0
        %2765 = vmatmul.mubr.f32.gmra.mrb[0].mxu0 %v584
        %v2766 = vpop.f32.mrb[0].mxu0
        %v2767 = vadd.f32 0.0, %v2766
        %v2768 = vpop.f32.mrb[0].mxu0
        %2769 = vmatprep.mubr.f32.mxu0 0.0
        %2770 = vmatmul.mubr.f32.gmra.mrb[0].mxu0 %v586
        %v2771 = vpop.f32.mrb[0].mxu0
        %v2772 = vadd.f32 0.0, %v2771
        %v2773 = vpop.f32.mrb[0].mxu0
        %2774 = vmatprep.mubr.f32.mxu0 0.0
        %2775 = vmatmul.mubr.f32.gmra.mrb[0].mxu0 %v588
        %v2776 = vpop.f32.mrb[0].mxu0
        %v2777 = vadd.f32 0.0, %v2776
        %v2778 = vpop.f32.mrb[0].mxu0
        %2779 = vmatprep.mubr.f32.mxu0 0.0
        %2780 = vmatmul.mubr.f32.gmra.mrb[0].mxu0 %v1775
        %v2781 = vpop.f32.mrb[0].mxu0
        %v2782 = vadd.f32 0.0, %v2781
        %v2783 = vpop.f32.mrb[0].mxu0
        %2784 = vmatprep.mubr.f32.mxu0 0.0
        %2785 = vmatmul.mubr.f32.gmra.mrb[0].mxu0 %v1777
        %v2786 = vpop.f32.mrb[0].mxu0
        %v2787 = vadd.f32 0.0, %v2786
        %v2788 = vpop.f32.mrb[0].mxu0
        %2789 = vmatprep.mubr.f32.mxu0 0.0
        %2790 = vmatmul.mubr.f32.gmra.mrb[0].mxu0 %v2571
        %v2791 = vpop.f32.mrb[0].mxu0
        %v2792 = vadd.f32 0.0, %v2791
        %v2793 = vpop.f32.mrb[0].mxu0
        %2794 = vmatprep.mubr.f32.mxu0 0.0
        %2795 = vmatmul.mubr.f32.gmra.mrb[0].mxu0 %v2573
        %v2796 = vpop.f32.mrb[0].mxu0
        %v2797 = vadd.f32 0.0, %v2796
        %v2798 = vpop.f32.mrb[0].mxu0
        %2799 = vdwg.mxu0
        %v2800 = vadd.f32 %v2533, %v2642
        %v2801 = vadd.f32 %v2534, %v2647
        %v2802 = vadd.f32 %v2535, %v2652
        %v2803 = vadd.f32 %v2536, %v2657
        %v2804 = vadd.f32 %v2537, %v2662
        %v2805 = vadd.f32 %v2538, %v2667
        %v2806 = vadd.f32 %v2539, %v2672
        %v2807 = vadd.f32 %v2540, %v2677
        %v2808 = vadd.f32 %v2541, %v2682
        %v2809 = vadd.f32 %v2542, %v2687
        %v2810 = vadd.f32 %v2543, %v2692
        %v2811 = vadd.f32 %v2544, %v2697
        %v2812 = vadd.f32 %v2545, %v2702
        %v2813 = vadd.f32 %v2546, %v2707
        %v2814 = vadd.f32 %v2547, %v2712
        %v2815 = vadd.f32 %v2548, %v2717
        %v2816 = vadd.f32 %v2549, %v2722
        %v2817 = vadd.f32 %v2550, %v2727
        %v2818 = vadd.f32 %v2551, %v2732
        %v2819 = vadd.f32 %v2552, %v2737
        %v2820 = vadd.f32 %v2553, %v2742
        %v2821 = vadd.f32 %v2554, %v2747
        %v2822 = vadd.f32 %v2555, %v2752
        %v2823 = vadd.f32 %v2556, %v2757
        %v2824 = vadd.f32 %v2557, %v2762
        %v2825 = vadd.f32 %v2558, %v2767
        %v2826 = vadd.f32 %v2559, %v2772
        %v2827 = vadd.f32 %v2560, %v2777
        %v2828 = vadd.f32 %v2561, %v2782
        %v2829 = vadd.f32 %v2562, %v2787
        %v2830 = vadd.f32 %v2563, %v2792
        %v2831 = vadd.f32 %v2564, %v2797
        %v2832 = vrot.slane %v394, 2
        %v2833 = vrot.slane %v395, 2
        %v2834 = vsel %vm1104, %v2832, %v2833
        %v2835 = vrot.slane %v396, 2
        %v2836 = vsel %vm1104, %v2833, %v2835
        %v2837 = vsel %vm222, %v2834, 0
        %v2839 = vsel %vm222, %v2836, 0
        %2841 = vmatprep.subr.mxu0 0.0
        %2842 = vmatpush1.msra.mxu0 %v220
        %2843 = vmatprep.subr.mxu0 0.0
        %2844 = vmatpush1.msra.mxu0 %v221
        %2845 = vmatprep.subr.mxu0 0.0
        %2846 = vmatpush1.msra.mxu0 0.0
        %2847 = vmatprep.subr.mxu0 0.0
        %2848 = vmatpush1.msra.mxu0 0.0
        %2849 = vmatprep.subr.mxu0 0.0
        %2850 = vmatpush1.msra.mxu0 0.0
        %2851 = vmatprep.subr.mxu0 0.0
        %2852 = vmatpush1.msra.mxu0 0.0
        %2853 = vmatprep.subr.mxu0 0.0
        %2854 = vmatpush1.msra.mxu0 0.0
        %2855 = vmatprep.subr.mxu0 0.0
        %2856 = vmatpush1.msra.mxu0 0.0
        %2857 = vmatprep.subr.mxu0 0.0
        %2858 = vmatpush1.msra.mxu0 0.0
        %2859 = vmatprep.subr.mxu0 0.0
        %2860 = vmatpush1.msra.mxu0 0.0
        %2861 = vmatprep.subr.mxu0 0.0
        %2862 = vmatpush1.msra.mxu0 0.0
        %2863 = vmatprep.subr.mxu0 0.0
        %2864 = vmatpush1.msra.mxu0 0.0
        %2865 = vmatprep.subr.mxu0 0.0
        %2866 = vmatpush1.msra.mxu0 0.0
        %2867 = vmatprep.subr.mxu0 0.0
        %2868 = vmatpush1.msra.mxu0 0.0
        %2869 = vmatprep.subr.mxu0 0.0
        %2870 = vmatpush1.msra.mxu0 0.0
        %2871 = vmatprep.subr.mxu0 0.0
        %2872 = vmatpush1.msra.mxu0 0.0
        %2873 = vmatprep.subr.mxu0 0.0
        %2874 = vmatpush1.msra.mxu0 0.0
        %2875 = vmatprep.subr.mxu0 0.0
        %2876 = vmatpush1.msra.mxu0 0.0
        %2877 = vmatprep.subr.mxu0 0.0
        %2878 = vmatpush1.msra.mxu0 0.0
        %2879 = vmatprep.subr.mxu0 0.0
        %2880 = vmatpush1.msra.mxu0 0.0
        %2881 = vmatprep.subr.mxu0 0.0
        %2882 = vmatpush1.msra.mxu0 0.0
        %2883 = vmatprep.subr.mxu0 0.0
        %2884 = vmatpush1.msra.mxu0 0.0
        %2885 = vmatprep.subr.mxu0 0.0
        %2886 = vmatpush1.msra.mxu0 0.0
        %2887 = vmatprep.subr.mxu0 0.0
        %2888 = vmatpush1.msra.mxu0 0.0
        %2889 = vmatprep.subr.mxu0 0.0
        %2890 = vmatpush1.msra.mxu0 0.0
        %2891 = vmatprep.subr.mxu0 0.0
        %2892 = vmatpush1.msra.mxu0 0.0
        %2893 = vmatprep.subr.mxu0 0.0
        %2894 = vmatpush1.msra.mxu0 0.0
        %2895 = vmatprep.subr.mxu0 0.0
        %2896 = vmatpush1.msra.mxu0 0.0
        %2897 = vmatprep.subr.mxu0 0.0
        %2898 = vmatpush1.msra.mxu0 0.0
        %2899 = vmatprep.subr.mxu0 0.0
        %2900 = vmatpush1.msra.mxu0 0.0
        %2901 = vmatprep.subr.mxu0 0.0
        %2902 = vmatpush1.msra.mxu0 0.0
        %2903 = vmatprep.subr.mxu0 0.0
        %2904 = vmatpush1.msra.mxu0 0.0
        %2905 = vmatprep.mubr.f32.mxu0 0.0
        %2906 = vmatmul.mubr.f32.gmra.mrb[0].mxu0 %v1193
        %v2907 = vpop.f32.mrb[0].mxu0
        %v2908 = vadd.f32 0.0, %v2907
        %v2909 = vpop.f32.mrb[0].mxu0
        %2910 = vmatprep.mubr.f32.mxu0 0.0
        %2911 = vmatmul.mubr.f32.gmra.mrb[0].mxu0 %v1195
        %v2912 = vpop.f32.mrb[0].mxu0
        %v2913 = vadd.f32 0.0, %v2912
        %v2914 = vpop.f32.mrb[0].mxu0
        %2915 = vmatprep.mubr.f32.mxu0 0.0
        %2916 = vmatmul.mubr.f32.gmra.mrb[0].mxu0 %v1197
        %v2917 = vpop.f32.mrb[0].mxu0
        %v2918 = vadd.f32 0.0, %v2917
        %v2919 = vpop.f32.mrb[0].mxu0
        %2920 = vmatprep.mubr.f32.mxu0 0.0
        %2921 = vmatmul.mubr.f32.gmra.mrb[0].mxu0 %v1199
        %v2922 = vpop.f32.mrb[0].mxu0
        %v2923 = vadd.f32 0.0, %v2922
        %v2924 = vpop.f32.mrb[0].mxu0
        %2925 = vmatprep.mubr.f32.mxu0 0.0
        %2926 = vmatmul.mubr.f32.gmra.mrb[0].mxu0 %v1201
        %v2927 = vpop.f32.mrb[0].mxu0
        %v2928 = vadd.f32 0.0, %v2927
        %v2929 = vpop.f32.mrb[0].mxu0
        %2930 = vmatprep.mubr.f32.mxu0 0.0
        %2931 = vmatmul.mubr.f32.gmra.mrb[0].mxu0 %v1203
        %v2932 = vpop.f32.mrb[0].mxu0
        %v2933 = vadd.f32 0.0, %v2932
        %v2934 = vpop.f32.mrb[0].mxu0
        %2935 = vmatprep.mubr.f32.mxu0 0.0
        %2936 = vmatmul.mubr.f32.gmra.mrb[0].mxu0 %v1205
        %v2937 = vpop.f32.mrb[0].mxu0
        %v2938 = vadd.f32 0.0, %v2937
        %v2939 = vpop.f32.mrb[0].mxu0
        %2940 = vmatprep.mubr.f32.mxu0 0.0
        %2941 = vmatmul.mubr.f32.gmra.mrb[0].mxu0 %v1207
        %v2942 = vpop.f32.mrb[0].mxu0
        %v2943 = vadd.f32 0.0, %v2942
        %v2944 = vpop.f32.mrb[0].mxu0
        %2945 = vmatprep.mubr.f32.mxu0 0.0
        %2946 = vmatmul.mubr.f32.gmra.mrb[0].mxu0 %v1209
        %v2947 = vpop.f32.mrb[0].mxu0
        %v2948 = vadd.f32 0.0, %v2947
        %v2949 = vpop.f32.mrb[0].mxu0
        %2950 = vmatprep.mubr.f32.mxu0 0.0
        %2951 = vmatmul.mubr.f32.gmra.mrb[0].mxu0 %v1211
        %v2952 = vpop.f32.mrb[0].mxu0
        %v2953 = vadd.f32 0.0, %v2952
        %v2954 = vpop.f32.mrb[0].mxu0
        %2955 = vmatprep.mubr.f32.mxu0 0.0
        %2956 = vmatmul.mubr.f32.gmra.mrb[0].mxu0 %v1213
        %v2957 = vpop.f32.mrb[0].mxu0
        %v2958 = vadd.f32 0.0, %v2957
        %v2959 = vpop.f32.mrb[0].mxu0
        %2960 = vmatprep.mubr.f32.mxu0 0.0
        %2961 = vmatmul.mubr.f32.gmra.mrb[0].mxu0 %v1215
        %v2962 = vpop.f32.mrb[0].mxu0
        %v2963 = vadd.f32 0.0, %v2962
        %v2964 = vpop.f32.mrb[0].mxu0
        %2965 = vmatprep.mubr.f32.mxu0 0.0
        %2966 = vmatmul.mubr.f32.gmra.mrb[0].mxu0 %v1217
        %v2967 = vpop.f32.mrb[0].mxu0
        %v2968 = vadd.f32 0.0, %v2967
        %v2969 = vpop.f32.mrb[0].mxu0
        %2970 = vmatprep.mubr.f32.mxu0 0.0
        %2971 = vmatmul.mubr.f32.gmra.mrb[0].mxu0 %v1219
        %v2972 = vpop.f32.mrb[0].mxu0
        %v2973 = vadd.f32 0.0, %v2972
        %v2974 = vpop.f32.mrb[0].mxu0
        %2975 = vmatprep.mubr.f32.mxu0 0.0
        %2976 = vmatmul.mubr.f32.gmra.mrb[0].mxu0 %v1221
        %v2977 = vpop.f32.mrb[0].mxu0
        %v2978 = vadd.f32 0.0, %v2977
        %v2979 = vpop.f32.mrb[0].mxu0
        %2980 = vmatprep.mubr.f32.mxu0 0.0
        %2981 = vmatmul.mubr.f32.gmra.mrb[0].mxu0 %v1223
        %v2982 = vpop.f32.mrb[0].mxu0
        %v2983 = vadd.f32 0.0, %v2982
        %v2984 = vpop.f32.mrb[0].mxu0
        %2985 = vmatprep.mubr.f32.mxu0 0.0
        %2986 = vmatmul.mubr.f32.gmra.mrb[0].mxu0 %v1225
        %v2987 = vpop.f32.mrb[0].mxu0
        %v2988 = vadd.f32 0.0, %v2987
        %v2989 = vpop.f32.mrb[0].mxu0
        %2990 = vmatprep.mubr.f32.mxu0 0.0
        %2991 = vmatmul.mubr.f32.gmra.mrb[0].mxu0 %v1227
        %v2992 = vpop.f32.mrb[0].mxu0
        %v2993 = vadd.f32 0.0, %v2992
        %v2994 = vpop.f32.mrb[0].mxu0
        %2995 = vmatprep.mubr.f32.mxu0 0.0
        %2996 = vmatmul.mubr.f32.gmra.mrb[0].mxu0 %v1229
        %v2997 = vpop.f32.mrb[0].mxu0
        %v2998 = vadd.f32 0.0, %v2997
        %v2999 = vpop.f32.mrb[0].mxu0
        %3000 = vmatprep.mubr.f32.mxu0 0.0
        %3001 = vmatmul.mubr.f32.gmra.mrb[0].mxu0 %v1231
        %v3002 = vpop.f32.mrb[0].mxu0
        %v3003 = vadd.f32 0.0, %v3002
        %v3004 = vpop.f32.mrb[0].mxu0
        %3005 = vmatprep.mubr.f32.mxu0 0.0
        %3006 = vmatmul.mubr.f32.gmra.mrb[0].mxu0 %v1233
        %v3007 = vpop.f32.mrb[0].mxu0
        %v3008 = vadd.f32 0.0, %v3007
        %v3009 = vpop.f32.mrb[0].mxu0
        %3010 = vmatprep.mubr.f32.mxu0 0.0
        %3011 = vmatmul.mubr.f32.gmra.mrb[0].mxu0 %v1235
        %v3012 = vpop.f32.mrb[0].mxu0
        %v3013 = vadd.f32 0.0, %v3012
        %v3014 = vpop.f32.mrb[0].mxu0
        %3015 = vmatprep.mubr.f32.mxu0 0.0
        %3016 = vmatmul.mubr.f32.gmra.mrb[0].mxu0 %v1237
        %v3017 = vpop.f32.mrb[0].mxu0
        %v3018 = vadd.f32 0.0, %v3017
        %v3019 = vpop.f32.mrb[0].mxu0
        %3020 = vmatprep.mubr.f32.mxu0 0.0
        %3021 = vmatmul.mubr.f32.gmra.mrb[0].mxu0 %v1239
        %v3022 = vpop.f32.mrb[0].mxu0
        %v3023 = vadd.f32 0.0, %v3022
        %v3024 = vpop.f32.mrb[0].mxu0
        %3025 = vmatprep.mubr.f32.mxu0 0.0
        %3026 = vmatmul.mubr.f32.gmra.mrb[0].mxu0 %v1241
        %v3027 = vpop.f32.mrb[0].mxu0
        %v3028 = vadd.f32 0.0, %v3027
        %v3029 = vpop.f32.mrb[0].mxu0
        %3030 = vmatprep.mubr.f32.mxu0 0.0
        %3031 = vmatmul.mubr.f32.gmra.mrb[0].mxu0 %v1243
        %v3032 = vpop.f32.mrb[0].mxu0
        %v3033 = vadd.f32 0.0, %v3032
        %v3034 = vpop.f32.mrb[0].mxu0
        %3035 = vmatprep.mubr.f32.mxu0 0.0
        %3036 = vmatmul.mubr.f32.gmra.mrb[0].mxu0 %v1245
        %v3037 = vpop.f32.mrb[0].mxu0
        %v3038 = vadd.f32 0.0, %v3037
        %v3039 = vpop.f32.mrb[0].mxu0
        %3040 = vmatprep.mubr.f32.mxu0 0.0
        %3041 = vmatmul.mubr.f32.gmra.mrb[0].mxu0 %v1247
        %v3042 = vpop.f32.mrb[0].mxu0
        %v3043 = vadd.f32 0.0, %v3042
        %v3044 = vpop.f32.mrb[0].mxu0
        %3045 = vmatprep.mubr.f32.mxu0 0.0
        %3046 = vmatmul.mubr.f32.gmra.mrb[0].mxu0 %v2041
        %v3047 = vpop.f32.mrb[0].mxu0
        %v3048 = vadd.f32 0.0, %v3047
        %v3049 = vpop.f32.mrb[0].mxu0
        %3050 = vmatprep.mubr.f32.mxu0 0.0
        %3051 = vmatmul.mubr.f32.gmra.mrb[0].mxu0 %v2043
        %v3052 = vpop.f32.mrb[0].mxu0
        %v3053 = vadd.f32 0.0, %v3052
        %v3054 = vpop.f32.mrb[0].mxu0
        %3055 = vmatprep.mubr.f32.mxu0 0.0
        %3056 = vmatmul.mubr.f32.gmra.mrb[0].mxu0 %v2837
        %v3057 = vpop.f32.mrb[0].mxu0
        %v3058 = vadd.f32 0.0, %v3057
        %v3059 = vpop.f32.mrb[0].mxu0
        %3060 = vmatprep.mubr.f32.mxu0 0.0
        %3061 = vmatmul.mubr.f32.gmra.mrb[0].mxu0 %v2839
        %v3062 = vpop.f32.mrb[0].mxu0
        %v3063 = vadd.f32 0.0, %v3062
        %v3064 = vpop.f32.mrb[0].mxu0
        %3065 = vdwg.mxu0
        %v3066 = vadd.f32 %v2800, %v2908
        %v3067 = vadd.f32 %v2801, %v2913
        %v3068 = vadd.f32 %v2802, %v2918
        %v3069 = vadd.f32 %v2803, %v2923
        %v3070 = vadd.f32 %v2804, %v2928
        %v3071 = vadd.f32 %v2805, %v2933
        %v3072 = vadd.f32 %v2806, %v2938
        %v3073 = vadd.f32 %v2807, %v2943
        %v3074 = vadd.f32 %v2808, %v2948
        %v3075 = vadd.f32 %v2809, %v2953
        %v3076 = vadd.f32 %v2810, %v2958
        %v3077 = vadd.f32 %v2811, %v2963
        %v3078 = vadd.f32 %v2812, %v2968
        %v3079 = vadd.f32 %v2813, %v2973
        %v3080 = vadd.f32 %v2814, %v2978
        %v3081 = vadd.f32 %v2815, %v2983
        %v3082 = vadd.f32 %v2816, %v2988
        %v3083 = vadd.f32 %v2817, %v2993
        %v3084 = vadd.f32 %v2818, %v2998
        %v3085 = vadd.f32 %v2819, %v3003
        %v3086 = vadd.f32 %v2820, %v3008
        %v3087 = vadd.f32 %v2821, %v3013
        %v3088 = vadd.f32 %v2822, %v3018
        %v3089 = vadd.f32 %v2823, %v3023
        %v3090 = vadd.f32 %v2824, %v3028
        %v3091 = vadd.f32 %v2825, %v3033
        %v3092 = vadd.f32 %v2826, %v3038
        %v3093 = vadd.f32 %v2827, %v3043
        %v3094 = vadd.f32 %v2828, %v3048
        %v3095 = vadd.f32 %v2829, %v3053
        %v3096 = vadd.f32 %v2830, %v3058
        %v3097 = vadd.f32 %v2831, %v3063
        %v3098 = vld [vmem:[%s2] sm:$0x1]
        %v3100 = vlaneseq
        %v3101 = vshrl.u32 %v3100, 7
        %v3102 = vsub.s32 0, %v3101
        %v3103 = vrot.slane %v3098, %v3102
        %v3105 = vadd.f32 %v3066, %v3103
        %v3106 = vadd.f32 %v3067, %v3103
        %v3107 = vadd.f32 %v3068, %v3103
        %v3108 = vadd.f32 %v3069, %v3103
        %v3109 = vadd.f32 %v3070, %v3103
        %v3110 = vadd.f32 %v3071, %v3103
        %v3111 = vadd.f32 %v3072, %v3103
        %v3112 = vadd.f32 %v3073, %v3103
        %v3113 = vadd.f32 %v3074, %v3103
        %v3114 = vadd.f32 %v3075, %v3103
        %v3115 = vadd.f32 %v3076, %v3103
        %v3116 = vadd.f32 %v3077, %v3103
        %v3117 = vadd.f32 %v3078, %v3103
        %v3118 = vadd.f32 %v3079, %v3103
        %v3119 = vadd.f32 %v3080, %v3103
        %v3120 = vadd.f32 %v3081, %v3103
        %v3121 = vadd.f32 %v3082, %v3103
        %v3122 = vadd.f32 %v3083, %v3103
        %v3123 = vadd.f32 %v3084, %v3103
        %v3124 = vadd.f32 %v3085, %v3103
        %v3125 = vadd.f32 %v3086, %v3103
        %v3126 = vadd.f32 %v3087, %v3103
        %v3127 = vadd.f32 %v3088, %v3103
        %v3128 = vadd.f32 %v3089, %v3103
        %v3129 = vadd.f32 %v3090, %v3103
        %v3130 = vadd.f32 %v3091, %v3103
        %v3131 = vadd.f32 %v3092, %v3103
        %v3132 = vadd.f32 %v3093, %v3103
        %v3133 = vadd.f32 %v3094, %v3103
        %v3134 = vadd.f32 %v3095, %v3103
        %v3135 = vadd.f32 %v3096, %v3103
        %v3136 = vadd.f32 %v3097, %v3103
        %v3137 = vmax.f32 %v3105, 0.0
        %v3138 = vmax.f32 %v3106, 0.0
        %v3139 = vmax.f32 %v3107, 0.0
        %v3140 = vmax.f32 %v3108, 0.0
        %v3141 = vmax.f32 %v3109, 0.0
        %v3142 = vmax.f32 %v3110, 0.0
        %v3143 = vmax.f32 %v3111, 0.0
        %v3144 = vmax.f32 %v3112, 0.0
        %v3145 = vmax.f32 %v3113, 0.0
        %v3146 = vmax.f32 %v3114, 0.0
        %v3147 = vmax.f32 %v3115, 0.0
        %v3148 = vmax.f32 %v3116, 0.0
        %v3149 = vmax.f32 %v3117, 0.0
        %v3150 = vmax.f32 %v3118, 0.0
        %v3151 = vmax.f32 %v3119, 0.0
        %v3152 = vmax.f32 %v3120, 0.0
        %v3153 = vmax.f32 %v3121, 0.0
        %v3154 = vmax.f32 %v3122, 0.0
        %v3155 = vmax.f32 %v3123, 0.0
        %v3156 = vmax.f32 %v3124, 0.0
        %v3157 = vmax.f32 %v3125, 0.0
        %v3158 = vmax.f32 %v3126, 0.0
        %v3159 = vmax.f32 %v3127, 0.0
        %v3160 = vmax.f32 %v3128, 0.0
        %v3161 = vmax.f32 %v3129, 0.0
        %v3162 = vmax.f32 %v3130, 0.0
        %v3163 = vmax.f32 %v3131, 0.0
        %v3164 = vmax.f32 %v3132, 0.0
        %v3165 = vmax.f32 %v3133, 0.0
        %v3166 = vmax.f32 %v3134, 0.0
        %v3167 = vmax.f32 %v3135, 0.0
        %v3168 = vmax.f32 %v3136, 0.0
        %vm3169 = vcmask 523264
        %3170 = vst.msk [vmem:[%s203] sm:$0xff] %vm3169, %v3137
        %3171 = vst.msk [vmem:[%s203 + $0x8] sm:$0xff] %vm3169, %v3138
        %3172 = vst.msk [vmem:[%s203 + $0x10] sm:$0xff] %vm3169, %v3139
        %3173 = vst.msk [vmem:[%s203 + $0x18] sm:$0xff] %vm3169, %v3140
        %3174 = vst.msk [vmem:[%s203 + $0x20] sm:$0xff] %vm3169, %v3141
        %3175 = vst.msk [vmem:[%s203 + $0x28] sm:$0xff] %vm3169, %v3142
        %3176 = vst.msk [vmem:[%s203 + $0x30] sm:$0xff] %vm3169, %v3143
        %3177 = vst.msk [vmem:[%s203 + $0x38] sm:$0xff] %vm3169, %v3144
        %3178 = vst.msk [vmem:[%s203 + $0x40] sm:$0xff] %vm3169, %v3145
        %3179 = vst.msk [vmem:[%s203 + $0x48] sm:$0xff] %vm3169, %v3146
        %3180 = vst.msk [vmem:[%s203 + $0x50] sm:$0xff] %vm3169, %v3147
        %3181 = vst.msk [vmem:[%s203 + $0x58] sm:$0xff] %vm3169, %v3148
        %3182 = vst.msk [vmem:[%s203 + $0x60] sm:$0xff] %vm3169, %v3149
        %3183 = vst.msk [vmem:[%s203 + $0x68] sm:$0xff] %vm3169, %v3150
        %3184 = vst.msk [vmem:[%s203 + $0x70] sm:$0xff] %vm3169, %v3151
        %3185 = vst.msk [vmem:[%s203 + $0x78] sm:$0xff] %vm3169, %v3152
        %3186 = vst.msk [vmem:[%s203 + $0x80] sm:$0xff] %vm3169, %v3153
        %3187 = vst.msk [vmem:[%s203 + $0x88] sm:$0xff] %vm3169, %v3154
        %3188 = vst.msk [vmem:[%s203 + $0x90] sm:$0xff] %vm3169, %v3155
        %3189 = vst.msk [vmem:[%s203 + $0x98] sm:$0xff] %vm3169, %v3156
        %3190 = vst.msk [vmem:[%s203 + $0xa0] sm:$0xff] %vm3169, %v3157
        %3191 = vst.msk [vmem:[%s203 + $0xa8] sm:$0xff] %vm3169, %v3158
        %3192 = vst.msk [vmem:[%s203 + $0xb0] sm:$0xff] %vm3169, %v3159
        %3193 = vst.msk [vmem:[%s203 + $0xb8] sm:$0xff] %vm3169, %v3160
        %3194 = vst.msk [vmem:[%s203 + $0xc0] sm:$0xff] %vm3169, %v3161
        %3195 = vst.msk [vmem:[%s203 + $0xc8] sm:$0xff] %vm3169, %v3162
        %3196 = vst.msk [vmem:[%s203 + $0xd0] sm:$0xff] %vm3169, %v3163
        %3197 = vst.msk [vmem:[%s203 + $0xd8] sm:$0xff] %vm3169, %v3164
        %3198 = vst.msk [vmem:[%s203 + $0xe0] sm:$0xff] %vm3169, %v3165
        %3199 = vst.msk [vmem:[%s203 + $0xe8] sm:$0xff] %vm3169, %v3166
        %3200 = vst.msk [vmem:[%s203 + $0xf0] sm:$0xff] %vm3169, %v3167
        %3201 = vst.msk [vmem:[%s203 + $0xf8] sm:$0xff] %vm3169, %v3168
        %s3202 = sand.u32 %s97, 1
        %s3203 = scalar_lea.sflag [#allocation5], %s3202
        %s3204 = sand.u32 %s97, 1
        %s3205 = smul.addr %s3204, 256
        %s3206 = scalar_lea.vmem [#allocation8], %s3205
        // Predicated region
        $region41: #{tpu_custom_call.1} parent=31 // pred_check
          %p3207 = pneg %p107
        $region42: #{tpu_custom_call.1} parent=31 // pred_check_branch
          %3209 = sbr.rel (%p3207) target = $region44
        $region43: #{tpu_custom_call.1} parent=31 // pred_region
          %s3211 = ssub.s32 4096, 4096
          %3212 = vsyncadd %s3203, %s3211
          %s3213 = smul.addr %s21, 32
          %s3214 = smul.addr %s3213, 128
          %s3215 = scalar_lea.hbm %s3, %s3214
          %s3216 = sshll.u32 %s3206, 4
          %s3217 = int_to_ptr.vmem [resolvable:$true] %s3216
          %3222 = dma.vmem_to_hbm [thread:$0]  %s3217, 4096, %s3215, %s3203, 128, 128, 8
        $region44: #{tpu_custom_call.1} parent=31 // pred_fallthru
          _
      $region32: #{tpu_custom_call.1} parent=5 // pred_fallthru
        _
      %p3223 = scmp.le.s32.totalorder 2, %s16
      // Predicated region
      $region45: #{tpu_custom_call.1} parent=5 // pred_check
        %p3224 = pneg %p3223
      $region46: #{tpu_custom_call.1} parent=5 // pred_check_branch
        %3226 = sbr.rel (%p3224) target = $region48
      $region47: #{tpu_custom_call.1} parent=5 // pred_region
        %s3227 = ssub.s32 %s16, 2
        // Predicated region
        $region49: #{tpu_custom_call.1} parent=47 // pred_check
          %p3228 = pneg %p113
        $region50: #{tpu_custom_call.1} parent=47 // pred_check_branch
          %3230 = sbr.rel (%p3228) target = $region52
        $region51: #{tpu_custom_call.1} parent=47 // pred_region
          %s3231 = sand.u32 %s98, 1
          %s3232 = scalar_lea.sflag [#allocation5], %s3231
          %s3233 = sand.u32 %s98, 1
          %s3234 = smul.addr %s3233, 256
          %s3235 = scalar_lea.vmem [#allocation8], %s3234
          %3236 = dma.done %s3232, 4096
        $region52: #{tpu_custom_call.1} parent=47 // pred_fallthru
          _
      $region48: #{tpu_custom_call.1} parent=5 // pred_fallthru
        _
    $region6: #{tpu_custom_call.1} parent=1 // loop_footer
      %s20 = sadd.s32 1, %s16
    $region7: #{tpu_custom_call.1} parent=1 // loop_footer_branch
      %15 = sbr.rel target = $region3
    $region8: #{tpu_custom_call.1} parent=1 // loop_exit
      _
    %3237 = vsyncpa [#allocation4], 1
    %s3238 = scalar_lea.sflag [#allocation4], 1
    %3239 = vsyncpa %s3238, 1
    %3240 = vsyncpa [#allocation7], 1
    %3241 = vsyncpa [#allocation5], 1
    %s3242 = scalar_lea.sflag [#allocation5], 1
    %3243 = vsyncpa %s3242, 1

</llo_original>
